<compile_context>
chip_gen: v5e
topology: v5e:2x2
jax: 0.10.0
libtpu: 0.0.40
codegen_flags: <defaults>
</compile_context>

<pallas_src>
import functools

import jax
import jax.numpy as jnp
from jax.experimental import pallas as pl
from jax.experimental.pallas import tpu as pltpu

H1, H2, H3 = 512, 256, 128
OUT_LANES = 128  # lane-dense output slab width: [mean | sigma | value | zeros]
SIGMA_MIN = 1e-6


def _round_up(x, m):
    return (x + m - 1) // m * m


def _device_kind():
    try:
        return jax.devices()[0].device_kind.lower()
    except Exception:  # pragma: no cover - defensive
        return ""


def _default_block_b(kind):
    # v7x: 64 MiB VMEM (32 MiB scoped default) -> keep tiles <= 1024 rows.
    # v5e/v6e: 128 MiB VMEM -> 2048 rows to amortize per-step overhead.
    return 1024 if ("7" in kind or "ironwood" in kind) else 2048


def _default_tanh_bf16(kind):
    # bf16 VPU/EUP exist on v6e / v7x only; elsewhere keep f32 tanh.
    return ("v6" in kind) or ("7" in kind) or ("ironwood" in kind)


def _vmem_limit_bytes(tb, obs_dim, packed):
    """Computed (over-)estimate of scoped VMEM need, with 2x margin."""
    param_bytes = sum(int(p.size) * p.dtype.itemsize for p in packed)
    # Upper bound on per-row live activation bytes (layer-1 f32+bf16 dominates).
    act_per_row = (6 * (2 * H1) + 6 * (2 * H2) + 6 * (2 * H3)
                   + 8 * OUT_LANES + 6 * obs_dim)
    est = (2 * param_bytes                          # double-buffered weights
           + 2 * tb * (obs_dim + OUT_LANES) * 4     # double-buffered obs / out
           + tb * act_per_row)                      # in-kernel temporaries
    return int(min(max(2 * est, 32 << 20), 96 << 20))


# ----------------------------- Pallas kernel ------------------------------

def actor_critic_kernel(
    obs_ref,
    # fused layer 1 (actor | critic): (obs_dim, 1024), (1, 1024)
    w1_ref, b1_ref,
    # actor tower
    aw2_ref, ab2_ref, aw3_ref, ab3_ref,
    # critic tower
    cw2_ref, cb2_ref, cw3_ref, cb3_ref,
    # fused head [mean | sigma | value | 0]: (256, 128), (1, 128)
    wh_ref, bh_ref,
    # output slab (TB, 128)
    out_ref,
    *, action_dim, tanh_bf16,
):
    def act(pre_f32):
        # bf16 tanh on v6e/v7x (EUP bf16 packing, no separate cast op);
        # f32 tanh + cast on chips without bf16 EUP (v5e and older).
        if tanh_bf16:
            return jnp.tanh(pre_f32.astype(jnp.bfloat16))
        return jnp.tanh(pre_f32).astype(jnp.bfloat16)

    # Load obs once and reuse for both towers; bf16 MXU operands, f32 accum.
    x = obs_ref[...].astype(jnp.bfloat16)

    # ---- fused first layer: one (TB, obs)x(obs, 1024) matmul, then split ----
    h1 = act(jnp.dot(x, w1_ref[...], preferred_element_type=jnp.float32)
             + b1_ref[...])
    ha = h1[:, :H1]   # actor hidden (bf16)
    hc = h1[:, H1:]   # critic hidden (bf16)

    # ---- actor encoder (layers 2, 3) ----
    ha = act(jnp.dot(ha, aw2_ref[...], preferred_element_type=jnp.float32)
             + ab2_ref[...])
    ha = act(jnp.dot(ha, aw3_ref[...], preferred_element_type=jnp.float32)
             + ab3_ref[...])

    # ---- critic (layers 2, 3) ----
    hc = act(jnp.dot(hc, cw2_ref[...], preferred_element_type=jnp.float32)
             + cb2_ref[...])
    hc = act(jnp.dot(hc, cw3_ref[...], preferred_element_type=jnp.float32)
             + cb3_ref[...])

    # ---- fused head: two accumulated (TB,128)x(128,128) dots (no concat) ----
    # Static ref slices are zero-cost views; avoids materializing a (TB,256)
    # bf16 temp + lane shuffles every grid step.
    raw = (jnp.dot(ha, wh_ref[:H3, :], preferred_element_type=jnp.float32)
           + jnp.dot(hc, wh_ref[H3:, :], preferred_element_type=jnp.float32)
           + bh_ref[...])

    # Softplus only on the sigma lanes [A, 2A); EUP work on otherwise idle slot.
    # (If profiling on v5e shows EUP-bound, move this to the wrapper instead.)
    lane = jax.lax.broadcasted_iota(jnp.int32, raw.shape, 1)
    is_sigma = (lane >= action_dim) & (lane < 2 * action_dim)
    out_ref[...] = jnp.where(is_sigma, jax.nn.softplus(raw), raw).astype(out_ref.dtype)


# ------------------------------- Wrapper -----------------------------------

@functools.partial(jax.jit, static_argnames=("action_dim", "block_b", "tanh_bf16"))
def actor_critic_forward(obs, packed, *, action_dim, block_b=None, tanh_bf16=None):
    """Returns (mean, sigma, value) for a batch of observations."""
    assert 2 * action_dim + 1 <= OUT_LANES, "action_dim must be <= 63"

    kind = _device_kind()
    if block_b is None:
        block_b = _default_block_b(kind)
    if tanh_bf16 is None:
        tanh_bf16 = _default_tanh_bf16(kind)

    B, obs_dim = obs.shape

    # Choose the number of grid steps first: >= 2 when the batch allows (so
    # v7x's two TensorCores both get work via the "parallel" axis), then size
    # the tile so padding is at most ~one sublane group per step.
    min_steps = 2 if B >= 16 else 1
    n_steps = max(pl.cdiv(B, block_b), min_steps)
    tb = _round_up(pl.cdiv(B, n_steps), 8)
    b_pad = _round_up(B, tb)
    if b_pad != B:
        obs = jnp.pad(obs, ((0, b_pad - B), (0, 0)))
    grid = (b_pad // tb,)

    def _resident(p):  # weights/biases: constant block -> VMEM-resident
        return pl.BlockSpec(p.shape, lambda i: (0, 0))

    in_specs = [pl.BlockSpec((tb, obs_dim), lambda i: (i, 0))]
    in_specs += [_resident(p) for p in packed]
    out_spec = pl.BlockSpec((tb, OUT_LANES), lambda i: (i, 0))

    # Advisory cost estimate so XLA schedules this against surrounding PPO ops.
    flops = 2 * b_pad * (obs_dim * 2 * H1        # fused layer 1
                         + 2 * H1 * H2           # actor + critic layer 2
                         + 2 * H2 * H3           # actor + critic layer 3
                         + 2 * H3 * OUT_LANES)   # fused head (two 128x128 dots)
    # tanh lanes per row (1792) + softplus = exp + log1p on the 128-lane slab.
    transcendentals = b_pad * ((2 * H1 + 2 * H2 + 2 * H3) + 2 * OUT_LANES)
    param_bytes = sum(int(p.size) * p.dtype.itemsize for p in packed)
    bytes_accessed = 4 * b_pad * obs_dim + 4 * b_pad * OUT_LANES + param_bytes

    slab = pl.pallas_call(
        functools.partial(actor_critic_kernel,
                          action_dim=action_dim, tanh_bf16=tanh_bf16),
        out_shape=jax.ShapeDtypeStruct((b_pad, OUT_LANES), jnp.float32),
        grid=grid,
        in_specs=in_specs,
        out_specs=out_spec,
        compiler_params=pltpu.CompilerParams(
            dimension_semantics=("parallel",),
            vmem_limit_bytes=_vmem_limit_bytes(tb, obs_dim, packed),
        ),
        cost_estimate=pl.CostEstimate(
            flops=flops, transcendentals=transcendentals,
            bytes_accessed=bytes_accessed),
    )(obs, *packed)

    mean = slab[:B, :action_dim]
    # Clamp: f32 softplus underflows to exactly 0 for raw < ~-87; direct
    # consumers of sigma (log / divide) must never see 0.
    sigma = jnp.maximum(slab[:B, action_dim:2 * action_dim], SIGMA_MIN)
    value = slab[:B, 2 * action_dim:2 * action_dim + 1]
    return mean, sigma, value


def evaluate(obs, action, packed, *, action_dim, block_b=None, tanh_bf16=None):
    """Mirrors ActorCritic.evaluate: (log_probs, values, dist_entropy)."""
    mean, sigma, value = actor_critic_forward(
        obs, packed, action_dim=action_dim, block_b=block_b, tanh_bf16=tanh_bf16)
    k = action_dim
    log_det = 2.0 * jnp.sum(jnp.log(sigma), axis=-1)
    quad = jnp.sum(((action - mean) / sigma) ** 2, axis=-1)
    log_probs = -0.5 * (quad + k * jnp.log(2.0 * jnp.pi) + log_det)
    entropy = 0.5 * k * (1.0 + jnp.log(2.0 * jnp.pi)) + 0.5 * log_det
    values = value[:, 0]  # squeezed (B,)
    return log_probs, values, entropy


# --------------------------- Parameter creation -----------------------------

def _init_linear(key, fan_in, fan_out):
    # PyTorch default init: U(-1/sqrt(fan_in), 1/sqrt(fan_in)) for W and b.
    kw, kb = jax.random.split(key)
    bound = 1.0 / jnp.sqrt(fan_in)
    w = jax.random.uniform(kw, (fan_in, fan_out), jnp.float32, -bound, bound)
    b = jax.random.uniform(kb, (1, fan_out), jnp.float32, -bound, bound)
    return w, b


def init_raw_params(key, obs_dim, action_dim):
    keys = jax.random.split(key, 9)
    aw1, ab1 = _init_linear(keys[0], obs_dim, H1)
    aw2, ab2 = _init_linear(keys[1], H1, H2)
    aw3, ab3 = _init_linear(keys[2], H2, H3)
    wm, bm = _init_linear(keys[3], H3, action_dim)
    ws, bs = _init_linear(keys[4], H3, action_dim)
    cw1, cb1 = _init_linear(keys[5], obs_dim, H1)
    cw2, cb2 = _init_linear(keys[6], H1, H2)
    cw3, cb3 = _init_linear(keys[7], H2, H3)
    cw4, cb4 = _init_linear(keys[8], H3, 1)
    return dict(aw1=aw1, ab1=ab1, aw2=aw2, ab2=ab2, aw3=aw3, ab3=ab3,
                wm=wm, bm=bm, ws=ws, bs=bs,
                cw1=cw1, cb1=cb1, cw2=cw2, cb2=cb2, cw3=cw3, cb3=cb3,
                cw4=cw4, cb4=cb4)


def pack_params(raw, action_dim):
    """Pack raw (in, out) f32 Linear params into the fused/bf16 kernel layout.

    NOTE: weights are deliberately quantized to bf16 once here (MXU operands);
    this is a ~1e-3-level numerics deviation from the f32 PyTorch module.
    """
    A = action_dim
    # Fused layer-1 (actor | critic).
    w1 = jnp.concatenate([raw["aw1"], raw["cw1"]], axis=1).astype(jnp.bfloat16)
    b1 = jnp.concatenate([raw["ab1"], raw["cb1"]], axis=1)
    # Fused lane-dense head: rows [0:128] actor hidden, [128:256] critic hidden.
    wh = jnp.zeros((2 * H3, OUT_LANES), jnp.float32)
    wh = wh.at[:H3, :A].set(raw["wm"])
    wh = wh.at[:H3, A:2 * A].set(raw["ws"])
    wh = wh.at[H3:, 2 * A:2 * A + 1].set(raw["cw4"])
    bh = jnp.zeros((1, OUT_LANES), jnp.float32)
    bh = bh.at[:, :A].set(raw["bm"])
    bh = bh.at[:, A:2 * A].set(raw["bs"])
    bh = bh.at[:, 2 * A:2 * A + 1].set(raw["cb4"])
    return (
        w1, b1,
        raw["aw2"].astype(jnp.bfloat16), raw["ab2"],
        raw["aw3"].astype(jnp.bfloat16), raw["ab3"],
        raw["cw2"].astype(jnp.bfloat16), raw["cb2"],
        raw["cw3"].astype(jnp.bfloat16), raw["cb3"],
        wh.astype(jnp.bfloat16), bh,
    )


# ------------------------------ Reference -----------------------------------

def ref_forward(obs, packed, action_dim, tanh_bf16):
    """Pure-JAX reference mirroring the kernel's precision choices."""
    (w1, b1, aw2, ab2, aw3, ab3, cw2, cb2, cw3, cb3, wh, bh) = packed
    f32 = jnp.float32

    def act(pre):
        if tanh_bf16:
            return jnp.tanh(pre.astype(jnp.bfloat16))
        return jnp.tanh(pre).astype(jnp.bfloat16)

    x = obs.astype(jnp.bfloat16)
    h1 = act(jnp.dot(x, w1, preferred_element_type=f32) + b1)
    ha = h1[:, :H1]
    hc = h1[:, H1:]
    ha = act(jnp.dot(ha, aw2, preferred_element_type=f32) + ab2)
    ha = act(jnp.dot(ha, aw3, preferred_element_type=f32) + ab3)
    hc = act(jnp.dot(hc, cw2, preferred_element_type=f32) + cb2)
    hc = act(jnp.dot(hc, cw3, preferred_element_type=f32) + cb3)
    raw = (jnp.dot(ha, wh[:H3, :], preferred_element_type=f32)
           + jnp.dot(hc, wh[H3:, :], preferred_element_type=f32) + bh)
    A = action_dim
    return raw[:, :A], jax.nn.softplus(raw[:, A:2 * A]), raw[:, 2 * A:2 * A + 1]


# ---------------------------------- Main ------------------------------------

if __name__ == "__main__":
    B, OBS_DIM, ACTION_DIM = 256, 16, 4

    key = jax.random.PRNGKey(0)
    k_params, k_obs, k_act = jax.random.split(key, 3)

    raw = init_raw_params(k_params, OBS_DIM, ACTION_DIM)
    packed = pack_params(raw, ACTION_DIM)
    obs = jax.random.normal(k_obs, (B, OBS_DIM), jnp.float32)
    action = jax.random.normal(k_act, (B, ACTION_DIM), jnp.float32)

    # Resolve the device-dependent tanh precision once so the reference can
    # mirror the kernel exactly.
    tbf = _default_tanh_bf16(_device_kind())

    # Pallas kernel forward.  With B=256 the tile logic yields tb=128 and a
    # 2-step grid, so the grid / padding path is exercised.
    mean, sigma, value = actor_critic_forward(
        obs, packed, action_dim=ACTION_DIM, tanh_bf16=tbf)
    log_probs, values, entropy = evaluate(
        obs, action, packed, action_dim=ACTION_DIM, tanh_bf16=tbf)
    jax.block_until_ready((mean, sigma, value, log_probs, values, entropy))

    # Correctness vs. a precision-matched pure-JAX reference (same packed bf16
    # weights, same tanh precision).  Tolerance covers bf16-ULP-level
    # differences between the Mosaic EUP tanh and XLA's tanh when the bf16
    # path is active.
    m_ref, s_ref, v_ref = ref_forward(obs, packed, ACTION_DIM, tbf)
    s_ref = jnp.maximum(s_ref, SIGMA_MIN)
    assert jnp.allclose(mean, m_ref, atol=1e-2, rtol=1e-2)
    assert jnp.allclose(sigma, s_ref, atol=1e-2, rtol=1e-2)
    assert jnp.allclose(value, v_ref, atol=1e-2, rtol=1e-2)
    assert mean.shape == (B, ACTION_DIM)
    assert sigma.shape == (B, ACTION_DIM)
    assert value.shape == (B, 1)
    assert log_probs.shape == (B,)
    assert values.shape == (B,)
    assert entropy.shape == (B,)
    assert bool(jnp.all(sigma >= SIGMA_MIN))
    assert bool(jnp.all(jnp.isfinite(log_probs)))

    # TODO(synk): torch.distributions sampling (get_action_and_log_prob) is RNG
    # semantics, not a compute hot path; not reproduced bit-for-bit here.

    print("KERNEL_OK")
</pallas_src>

<mosaic_0001>
module attributes {stable_mosaic.version = 11 : i64} {
  func.func @actor_critic_kernel(%arg0: i32, %arg1: memref<128x16xf32, #tpu.memory_space<vmem>>, %arg2: memref<16x1024xbf16, #tpu.memory_space<vmem>>, %arg3: memref<1x1024xf32, #tpu.memory_space<vmem>>, %arg4: memref<512x256xbf16, #tpu.memory_space<vmem>>, %arg5: memref<1x256xf32, #tpu.memory_space<vmem>>, %arg6: memref<256x128xbf16, #tpu.memory_space<vmem>>, %arg7: memref<1x128xf32, #tpu.memory_space<vmem>>, %arg8: memref<512x256xbf16, #tpu.memory_space<vmem>>, %arg9: memref<1x256xf32, #tpu.memory_space<vmem>>, %arg10: memref<256x128xbf16, #tpu.memory_space<vmem>>, %arg11: memref<1x128xf32, #tpu.memory_space<vmem>>, %arg12: memref<256x128xbf16, #tpu.memory_space<vmem>>, %arg13: memref<1x128xf32, #tpu.memory_space<vmem>>, %arg14: memref<128x128xf32, #tpu.memory_space<vmem>>) attributes {dimension_semantics = [#tpu.dimension_semantics<parallel>], iteration_bounds = array<i64: 2>, scalar_prefetch = 0 : i64, scratch_operands = 0 : i64, tpu.core_type = #tpu.core_type<tc>, window_params = [{transform_indices = @transform_0, window_bounds = array<i64: 128, 16>}, {pipeline_mode = #tpu.pipeline_mode<synchronous>, transform_indices = @transform_1, window_bounds = array<i64: 16, 1024>}, {pipeline_mode = #tpu.pipeline_mode<synchronous>, transform_indices = @transform_2, window_bounds = array<i64: 1, 1024>}, {pipeline_mode = #tpu.pipeline_mode<synchronous>, transform_indices = @transform_3, window_bounds = array<i64: 512, 256>}, {pipeline_mode = #tpu.pipeline_mode<synchronous>, transform_indices = @transform_4, window_bounds = array<i64: 1, 256>}, {pipeline_mode = #tpu.pipeline_mode<synchronous>, transform_indices = @transform_5, window_bounds = array<i64: 256, 128>}, {pipeline_mode = #tpu.pipeline_mode<synchronous>, transform_indices = @transform_6, window_bounds = array<i64: 1, 128>}, {pipeline_mode = #tpu.pipeline_mode<synchronous>, transform_indices = @transform_7, window_bounds = array<i64: 512, 256>}, {pipeline_mode = #tpu.pipeline_mode<synchronous>, transform_indices = @transform_8, window_bounds = array<i64: 1, 256>}, {pipeline_mode = #tpu.pipeline_mode<synchronous>, transform_indices = @transform_9, window_bounds = array<i64: 256, 128>}, {pipeline_mode = #tpu.pipeline_mode<synchronous>, transform_indices = @transform_10, window_bounds = array<i64: 1, 128>}, {pipeline_mode = #tpu.pipeline_mode<synchronous>, transform_indices = @transform_11, window_bounds = array<i64: 256, 128>}, {pipeline_mode = #tpu.pipeline_mode<synchronous>, transform_indices = @transform_12, window_bounds = array<i64: 1, 128>}, {transform_indices = @transform_13, window_bounds = array<i64: 128, 128>}]} {
    %c0 = arith.constant 0 : index
    %c0_0 = arith.constant 0 : index
    %0 = vector.load %arg1[%c0, %c0_0] : memref<128x16xf32, #tpu.memory_space<vmem>>, vector<128x16xf32>
    %1 = arith.truncf %0 : vector<128x16xf32> to vector<128x16xbf16>
    %c0_1 = arith.constant 0 : index
    %c0_2 = arith.constant 0 : index
    %2 = vector.load %arg2[%c0_1, %c0_2] : memref<16x1024xbf16, #tpu.memory_space<vmem>>, vector<16x1024xbf16>
    %cst = arith.constant dense<0.000000e+00> : vector<128x1024xf32>
    %3 = tpu.matmul %1, %2, %cst {dimension_numbers = #tpu.dot_dimension_numbers<[1], [0], [0], [1], [0, 0, 1, 1], [], []>} : vector<128x16xbf16>, vector<16x1024xbf16>, vector<128x1024xf32> -> vector<128x1024xf32>
    %c0_3 = arith.constant 0 : index
    %c0_4 = arith.constant 0 : index
    %4 = vector.load %arg3[%c0_3, %c0_4] : memref<1x1024xf32, #tpu.memory_space<vmem>>, vector<1x1024xf32>
    %5 = vector.broadcast %4 : vector<1x1024xf32> to vector<128x1024xf32>
    %6 = arith.addf %3, %5 : vector<128x1024xf32>
    %7 = math.tanh %6 : vector<128x1024xf32>
    %8 = arith.truncf %7 : vector<128x1024xf32> to vector<128x1024xbf16>
    %9 = vector.extract_strided_slice %8 {offsets = [0, 0], sizes = [128, 512], strides = [1, 1]} : vector<128x1024xbf16> to vector<128x512xbf16>
    %10 = vector.extract_strided_slice %8 {offsets = [0, 512], sizes = [128, 512], strides = [1, 1]} : vector<128x1024xbf16> to vector<128x512xbf16>
    %c0_5 = arith.constant 0 : index
    %c0_6 = arith.constant 0 : index
    %11 = vector.load %arg4[%c0_5, %c0_6] : memref<512x256xbf16, #tpu.memory_space<vmem>>, vector<512x256xbf16>
    %cst_7 = arith.constant dense<0.000000e+00> : vector<128x256xf32>
    %12 = tpu.matmul %9, %11, %cst_7 {dimension_numbers = #tpu.dot_dimension_numbers<[1], [0], [0], [1], [0, 0, 1, 1], [], []>} : vector<128x512xbf16>, vector<512x256xbf16>, vector<128x256xf32> -> vector<128x256xf32>
    %c0_8 = arith.constant 0 : index
    %c0_9 = arith.constant 0 : index
    %13 = vector.load %arg5[%c0_8, %c0_9] : memref<1x256xf32, #tpu.memory_space<vmem>>, vector<1x256xf32>
    %14 = vector.broadcast %13 : vector<1x256xf32> to vector<128x256xf32>
    %15 = arith.addf %12, %14 : vector<128x256xf32>
    %16 = math.tanh %15 : vector<128x256xf32>
    %17 = arith.truncf %16 : vector<128x256xf32> to vector<128x256xbf16>
    %c0_10 = arith.constant 0 : index
    %c0_11 = arith.constant 0 : index
    %18 = vector.load %arg6[%c0_10, %c0_11] : memref<256x128xbf16, #tpu.memory_space<vmem>>, vector<256x128xbf16>
    %cst_12 = arith.constant dense<0.000000e+00> : vector<128x128xf32>
    %19 = tpu.matmul %17, %18, %cst_12 {dimension_numbers = #tpu.dot_dimension_numbers<[1], [0], [0], [1], [0, 0, 1, 1], [], []>} : vector<128x256xbf16>, vector<256x128xbf16>, vector<128x128xf32> -> vector<128x128xf32>
    %c0_13 = arith.constant 0 : index
    %c0_14 = arith.constant 0 : index
    %20 = vector.load %arg7[%c0_13, %c0_14] : memref<1x128xf32, #tpu.memory_space<vmem>>, vector<1x128xf32>
    %21 = vector.broadcast %20 : vector<1x128xf32> to vector<128x128xf32>
    %22 = arith.addf %19, %21 : vector<128x128xf32>
    %23 = math.tanh %22 : vector<128x128xf32>
    %24 = arith.truncf %23 : vector<128x128xf32> to vector<128x128xbf16>
    %c0_15 = arith.constant 0 : index
    %c0_16 = arith.constant 0 : index
    %25 = vector.load %arg8[%c0_15, %c0_16] : memref<512x256xbf16, #tpu.memory_space<vmem>>, vector<512x256xbf16>
    %cst_17 = arith.constant dense<0.000000e+00> : vector<128x256xf32>
    %26 = tpu.matmul %10, %25, %cst_17 {dimension_numbers = #tpu.dot_dimension_numbers<[1], [0], [0], [1], [0, 0, 1, 1], [], []>} : vector<128x512xbf16>, vector<512x256xbf16>, vector<128x256xf32> -> vector<128x256xf32>
    %c0_18 = arith.constant 0 : index
    %c0_19 = arith.constant 0 : index
    %27 = vector.load %arg9[%c0_18, %c0_19] : memref<1x256xf32, #tpu.memory_space<vmem>>, vector<1x256xf32>
    %28 = vector.broadcast %27 : vector<1x256xf32> to vector<128x256xf32>
    %29 = arith.addf %26, %28 : vector<128x256xf32>
    %30 = math.tanh %29 : vector<128x256xf32>
    %31 = arith.truncf %30 : vector<128x256xf32> to vector<128x256xbf16>
    %c0_20 = arith.constant 0 : index
    %c0_21 = arith.constant 0 : index
    %32 = vector.load %arg10[%c0_20, %c0_21] : memref<256x128xbf16, #tpu.memory_space<vmem>>, vector<256x128xbf16>
    %cst_22 = arith.constant dense<0.000000e+00> : vector<128x128xf32>
    %33 = tpu.matmul %31, %32, %cst_22 {dimension_numbers = #tpu.dot_dimension_numbers<[1], [0], [0], [1], [0, 0, 1, 1], [], []>} : vector<128x256xbf16>, vector<256x128xbf16>, vector<128x128xf32> -> vector<128x128xf32>
    %c0_23 = arith.constant 0 : index
    %c0_24 = arith.constant 0 : index
    %34 = vector.load %arg11[%c0_23, %c0_24] : memref<1x128xf32, #tpu.memory_space<vmem>>, vector<1x128xf32>
    %35 = vector.broadcast %34 : vector<1x128xf32> to vector<128x128xf32>
    %36 = arith.addf %33, %35 : vector<128x128xf32>
    %37 = math.tanh %36 : vector<128x128xf32>
    %38 = arith.truncf %37 : vector<128x128xf32> to vector<128x128xbf16>
    %c0_25 = arith.constant 0 : index
    %c0_26 = arith.constant 0 : index
    %39 = vector.load %arg12[%c0_25, %c0_26] : memref<256x128xbf16, #tpu.memory_space<vmem>>, vector<128x128xbf16>
    %cst_27 = arith.constant dense<0.000000e+00> : vector<128x128xf32>
    %40 = tpu.matmul %24, %39, %cst_27 {dimension_numbers = #tpu.dot_dimension_numbers<[1], [0], [0], [1], [0, 0, 1, 1], [], []>} : vector<128x128xbf16>, vector<128x128xbf16>, vector<128x128xf32> -> vector<128x128xf32>
    %c128 = arith.constant 128 : index
    %c0_28 = arith.constant 0 : index
    %41 = vector.load %arg12[%c128, %c0_28] : memref<256x128xbf16, #tpu.memory_space<vmem>>, vector<128x128xbf16>
    %cst_29 = arith.constant dense<0.000000e+00> : vector<128x128xf32>
    %42 = tpu.matmul %38, %41, %cst_29 {dimension_numbers = #tpu.dot_dimension_numbers<[1], [0], [0], [1], [0, 0, 1, 1], [], []>} : vector<128x128xbf16>, vector<128x128xbf16>, vector<128x128xf32> -> vector<128x128xf32>
    %43 = arith.addf %40, %42 : vector<128x128xf32>
    %c0_30 = arith.constant 0 : index
    %c0_31 = arith.constant 0 : index
    %44 = vector.load %arg13[%c0_30, %c0_31] : memref<1x128xf32, #tpu.memory_space<vmem>>, vector<1x128xf32>
    %45 = vector.broadcast %44 : vector<1x128xf32> to vector<128x128xf32>
    %46 = arith.addf %43, %45 : vector<128x128xf32>
    %47 = tpu.iota {dimensions = array<i32: 1>} : vector<128x128xi32>
    %c4_i32 = arith.constant 4 : i32
    %48 = vector.broadcast %c4_i32 : i32 to vector<128x128xi32>
    %49 = arith.cmpi sge, %47, %48 : vector<128x128xi32>
    %c8_i32 = arith.constant 8 : i32
    %50 = vector.broadcast %c8_i32 : i32 to vector<128x128xi32>
    %51 = arith.cmpi slt, %47, %50 : vector<128x128xi32>
    %52 = arith.andi %49, %51 : vector<128x128xi1>
    %cst_32 = arith.constant 0.000000e+00 : f32
    %53 = vector.broadcast %cst_32 : f32 to vector<128x128xf32>
    %54 = arith.maximumf %46, %53 : vector<128x128xf32>
    %55 = vector.broadcast %cst_32 : f32 to vector<128x128xf32>
    %56 = arith.subf %46, %55 : vector<128x128xf32>
    %57 = arith.cmpf one, %56, %56 : vector<128x128xf32>
    %58 = vector.broadcast %cst_32 : f32 to vector<128x128xf32>
    %59 = arith.addf %46, %58 : vector<128x128xf32>
    %60 = math.absf %56 : vector<128x128xf32>
    %cst_33 = arith.constant 0.000000e+00 : f32
    %61 = vector.broadcast %cst_33 : f32 to vector<128x128xf32>
    %62 = arith.subf %61, %60 : vector<128x128xf32>
    %63 = math.exp %62 : vector<128x128xf32>
    %64 = math.log1p %63 : vector<128x128xf32>
    %65 = arith.addf %54, %64 : vector<128x128xf32>
    %66 = arith.select %57, %59, %65 : vector<128x128xi1>, vector<128x128xf32>
    %67 = arith.select %52, %66, %46 : vector<128x128xi1>, vector<128x128xf32>
    %c0_34 = arith.constant 0 : index
    %c0_35 = arith.constant 0 : index
    %68 = vector.load %arg14[%c0_34, %c0_35] : memref<128x128xf32, #tpu.memory_space<vmem>>, vector<128x128xf32>
    tpu.vector_store %arg14[%c0_34, %c0_35], %67 {strides = array<i32>} : memref<128x128xf32, #tpu.memory_space<vmem>>, vector<128x128xf32>,
    return
  }
  func.func @transform_0(%arg0: i32) -> (i32, i32) {
    %c0_i32 = arith.constant 0 : i32
    %c0_i32_0 = arith.constant 0 : i32
    return %arg0, %c0_i32 : i32, i32
  }
  func.func @transform_1(%arg0: i32) -> (i32, i32) {
    %c0_i32 = arith.constant 0 : i32
    %c0_i32_0 = arith.constant 0 : i32
    %c0_i32_1 = arith.constant 0 : i32
    return %c0_i32, %c0_i32_0 : i32, i32
  }
  func.func @transform_2(%arg0: i32) -> (i32, i32) {
    %c0_i32 = arith.constant 0 : i32
    %c0_i32_0 = arith.constant 0 : i32
    %c0_i32_1 = arith.constant 0 : i32
    return %c0_i32, %c0_i32_0 : i32, i32
  }
  func.func @transform_3(%arg0: i32) -> (i32, i32) {
    %c0_i32 = arith.constant 0 : i32
    %c0_i32_0 = arith.constant 0 : i32
    %c0_i32_1 = arith.constant 0 : i32
    return %c0_i32, %c0_i32_0 : i32, i32
  }
  func.func @transform_4(%arg0: i32) -> (i32, i32) {
    %c0_i32 = arith.constant 0 : i32
    %c0_i32_0 = arith.constant 0 : i32
    %c0_i32_1 = arith.constant 0 : i32
    return %c0_i32, %c0_i32_0 : i32, i32
  }
  func.func @transform_5(%arg0: i32) -> (i32, i32) {
    %c0_i32 = arith.constant 0 : i32
    %c0_i32_0 = arith.constant 0 : i32
    %c0_i32_1 = arith.constant 0 : i32
    return %c0_i32, %c0_i32_0 : i32, i32
  }
  func.func @transform_6(%arg0: i32) -> (i32, i32) {
    %c0_i32 = arith.constant 0 : i32
    %c0_i32_0 = arith.constant 0 : i32
    %c0_i32_1 = arith.constant 0 : i32
    return %c0_i32, %c0_i32_0 : i32, i32
  }
  func.func @transform_7(%arg0: i32) -> (i32, i32) {
    %c0_i32 = arith.constant 0 : i32
    %c0_i32_0 = arith.constant 0 : i32
    %c0_i32_1 = arith.constant 0 : i32
    return %c0_i32, %c0_i32_0 : i32, i32
  }
  func.func @transform_8(%arg0: i32) -> (i32, i32) {
    %c0_i32 = arith.constant 0 : i32
    %c0_i32_0 = arith.constant 0 : i32
    %c0_i32_1 = arith.constant 0 : i32
    return %c0_i32, %c0_i32_0 : i32, i32
  }
  func.func @transform_9(%arg0: i32) -> (i32, i32) {
    %c0_i32 = arith.constant 0 : i32
    %c0_i32_0 = arith.constant 0 : i32
    %c0_i32_1 = arith.constant 0 : i32
    return %c0_i32, %c0_i32_0 : i32, i32
  }
  func.func @transform_10(%arg0: i32) -> (i32, i32) {
    %c0_i32 = arith.constant 0 : i32
    %c0_i32_0 = arith.constant 0 : i32
    %c0_i32_1 = arith.constant 0 : i32
    return %c0_i32, %c0_i32_0 : i32, i32
  }
  func.func @transform_11(%arg0: i32) -> (i32, i32) {
    %c0_i32 = arith.constant 0 : i32
    %c0_i32_0 = arith.constant 0 : i32
    %c0_i32_1 = arith.constant 0 : i32
    return %c0_i32, %c0_i32_0 : i32, i32
  }
  func.func @transform_12(%arg0: i32) -> (i32, i32) {
    %c0_i32 = arith.constant 0 : i32
    %c0_i32_0 = arith.constant 0 : i32
    %c0_i32_1 = arith.constant 0 : i32
    return %c0_i32, %c0_i32_0 : i32, i32
  }
  func.func @transform_13(%arg0: i32) -> (i32, i32) {
    %c0_i32 = arith.constant 0 : i32
    %c0_i32_0 = arith.constant 0 : i32
    return %arg0, %c0_i32 : i32, i32
  }
}

</mosaic_0001>

<llo_original>
// kernel: actor_critic_forward.1
$region0: #{actor_critic_forward.1}
  #allocation0 [shape = 'u32[]', space=smem, size = 0x4, offset = 0x4, fixed_abs, tag = 'smem constant byte address 0x4 - core index']
  #allocation1 [shape = 'u32[72,128]{1,0:T(1,128)}', space=vmem, size = 0x9000, scoped, tag = 'internal scratch']
  %s0 = inlined_call_operand.vmem [shape: f32[256,16], index: 0, kind: input, shape index: {}]
  %s1 = inlined_call_operand.hbm [shape: bf16[16,1024], index: 1, kind: input, shape index: {}]
  %s2 = inlined_call_operand.vmem [shape: f32[1,1024], index: 2, kind: input, shape index: {}]
  %s3 = inlined_call_operand.hbm [shape: bf16[512,256], index: 3, kind: input, shape index: {}]
  %s4 = inlined_call_operand.vmem [shape: f32[1,256], index: 4, kind: input, shape index: {}]
  %s5 = inlined_call_operand.vmem [shape: bf16[256,128], index: 5, kind: input, shape index: {}]
  %s6 = inlined_call_operand.vmem [shape: f32[1,128], index: 6, kind: input, shape index: {}]
  %s7 = inlined_call_operand.hbm [shape: bf16[512,256], index: 7, kind: input, shape index: {}]
  %s8 = inlined_call_operand.vmem [shape: f32[1,256], index: 8, kind: input, shape index: {}]
  %s9 = inlined_call_operand.vmem [shape: bf16[256,128], index: 9, kind: input, shape index: {}]
  %s10 = inlined_call_operand.vmem [shape: f32[1,128], index: 10, kind: input, shape index: {}]
  %s11 = inlined_call_operand.hbm [shape: bf16[256,128], index: 11, kind: input, shape index: {}]
  %s12 = inlined_call_operand.vmem [shape: f32[1,128], index: 12, kind: input, shape index: {}]
  %s13 = inlined_call_operand.vmem [shape: f32[256,128], index: 13, kind: output, shape index: {}]
  %s14 = sld [smem:[#allocation0]]
  $region101: #{actor_critic_forward.1} parent=0
    _
  %s16 = ssub.s32 1, %s14
  %s17 = scalar_select 0, %s16, %s14
  $region1: #{actor_critic_forward.1} parent=0
    #allocation2 [shape = 'u8[32768]{0}', space=vmem, size = 0x8000, scoped, tag = 'input window, operand 1, single buffered']
    #allocation3 [shape = 's32[2]{0}', space=sflag, size = 0x8, scoped, tag = 'scoped memory for actor_critic_forward.1']
    #allocation4 [shape = 'u8[262144]{0}', space=vmem, size = 0x40000, scoped, tag = 'input window, operand 3, single buffered']
    #allocation5 [shape = 's32[1]{0}', space=sflag, size = 0x4, scoped, tag = 'scoped memory for actor_critic_forward.1']
    #allocation6 [shape = 'u8[262144]{0}', space=vmem, size = 0x40000, scoped, tag = 'input window, operand 7, single buffered']
    #allocation7 [shape = 'u8[65536]{0}', space=vmem, size = 0x10000, scoped, tag = 'input window, operand 11, single buffered']
    #allocation8 [shape = 's32[1]{0}', space=sflag, size = 0x4, scoped, tag = 'scoped memory for actor_critic_forward.1']
    %18 = vsyncpa [#allocation3], 0
    %19 = vsyncpa [#allocation5], 0
    %20 = vsyncpa [#allocation8], 0
    loop: start=0, step=1, limit=4
    $region2: #{actor_critic_forward.1} parent=1 // loop_pre_header
      _
    $region3: #{actor_critic_forward.1} parent=1 // loop_header
      %s22 = sphi 0, %s26
      %p23 = scmp.ge.s32.totalorder %s22, 4
      %s32 = sphi 0, %s34
      %s35 = sphi 0, %s32
      %s36 = sphi 0, %s35
      %s52 = sphi 0, %s36
      %s56 = sphi 0, %s56
      %s58 = sphi 0, %s56
      %s59 = sphi 0, %s58
      %s73 = sphi 0, %s59
      %s77 = sphi 0, %s77
      %s79 = sphi 0, %s77
      %s80 = sphi 0, %s79
      %s94 = sphi 0, %s80
      %s98 = sphi 0, %s98
      %s100 = sphi 0, %s98
      %s101 = sphi 0, %s100
      %s115 = sphi 0, %s101
      %s119 = sphi 0, %s119
      %s121 = sphi 0, %s119
      %s122 = sphi 0, %s121
      %s136 = sphi 0, %s122
      %s140 = sphi 0, %s140
      %s142 = sphi 0, %s140
      %s143 = sphi 0, %s142
      %s157 = sphi 0, %s143
      %s161 = sphi 0, %s161
      %s163 = sphi 0, %s161
      %s164 = sphi 0, %s163
      %s178 = sphi 0, %s164
      %s182 = sphi 0, %s182
      %s184 = sphi 0, %s182
      %s185 = sphi 0, %s184
      %s199 = sphi 0, %s185
      %s203 = sphi 0, %s203
      %s205 = sphi 0, %s203
      %s206 = sphi 0, %s205
      %s220 = sphi 0, %s206
      %s224 = sphi 0, %s224
      %s226 = sphi 0, %s224
      %s227 = sphi 0, %s226
      %s241 = sphi 0, %s227
      %s245 = sphi 0, %s245
      %s247 = sphi 0, %s245
      %s248 = sphi 0, %s247
      %s262 = sphi 0, %s248
      %s266 = sphi 0, %s266
      %s268 = sphi 0, %s266
      %s269 = sphi 0, %s268
      %s283 = sphi 0, %s269
      %s287 = sphi 0, %s287
      %s289 = sphi 0, %s287
      %s290 = sphi 0, %s289
      %s304 = sphi 0, %s290
      %s310 = sphi 0, %s312
      %s313 = sphi 0, %s310
      %s314 = sphi 0, %s313
      %s330 = sphi 0, %s314
    $region4: #{actor_critic_forward.1} parent=1 // loop_header_branch
      %25 = sbr.rel (%p23) target = $region8
    $region5: #{actor_critic_forward.1} parent=1 // loop_body
      %s27 = ssub.s32 %s22, 1
      %s28 = ssub.s32 %s22, 2
      %s29 = sadd.s32 %s22, 1
      %s30 = ssub.s32 %s22, %s29
      %p31 = scmp.eq.s32.totalorder %s30, 0
      %s33 = sadd.s32 %s32, 1
      %s34 = scalar_select %p31, %s32, %s33
      %p37 = pneg %p31
      %p38 = scmp.eq.s32.totalorder %s22, 1
      %p39 = por %p37, %p38
      %p40 = scmp.ne.s32.totalorder %s32, %s35
      %p41 = scmp.eq.s32.totalorder %s22, 0
      %p42 = por %p40, %p41
      %p43 = scmp.ne.s32.totalorder %s32, %s35
      %p44 = scmp.eq.s32.totalorder %s27, 1
      %p45 = por %p43, %p44
      %p46 = scmp.ne.s32.totalorder %s35, %s36
      %p47 = scmp.eq.s32.totalorder %s27, 0
      %p48 = por %p46, %p47
      %p49 = scmp.ne.s32.totalorder %s35, %s36
      %p50 = scmp.eq.s32.totalorder %s28, 1
      %p51 = por %p49, %p50
      %p53 = scmp.ne.s32.totalorder %s36, %s52
      %p54 = scmp.eq.s32.totalorder %s28, 0
      %p55 = por %p53, %p54
      %s57 = sadd.s32 %s56, 1
      %p60 = scmp.eq.s32.totalorder %s22, 1
      %p61 = scmp.ne.s32.totalorder %s56, %s58
      %p62 = scmp.eq.s32.totalorder %s22, 0
      %p63 = por %p61, %p62
      %p64 = scmp.ne.s32.totalorder %s56, %s58
      %p65 = scmp.eq.s32.totalorder %s27, 1
      %p66 = por %p64, %p65
      %p67 = scmp.ne.s32.totalorder %s58, %s59
      %p68 = scmp.eq.s32.totalorder %s27, 0
      %p69 = por %p67, %p68
      %p70 = scmp.ne.s32.totalorder %s58, %s59
      %p71 = scmp.eq.s32.totalorder %s28, 1
      %p72 = por %p70, %p71
      %p74 = scmp.ne.s32.totalorder %s59, %s73
      %p75 = scmp.eq.s32.totalorder %s28, 0
      %p76 = por %p74, %p75
      %s78 = sadd.s32 %s77, 1
      %p81 = scmp.eq.s32.totalorder %s22, 1
      %p82 = scmp.ne.s32.totalorder %s77, %s79
      %p83 = scmp.eq.s32.totalorder %s22, 0
      %p84 = por %p82, %p83
      %p85 = scmp.ne.s32.totalorder %s77, %s79
      %p86 = scmp.eq.s32.totalorder %s27, 1
      %p87 = por %p85, %p86
      %p88 = scmp.ne.s32.totalorder %s79, %s80
      %p89 = scmp.eq.s32.totalorder %s27, 0
      %p90 = por %p88, %p89
      %p91 = scmp.ne.s32.totalorder %s79, %s80
      %p92 = scmp.eq.s32.totalorder %s28, 1
      %p93 = por %p91, %p92
      %p95 = scmp.ne.s32.totalorder %s80, %s94
      %p96 = scmp.eq.s32.totalorder %s28, 0
      %p97 = por %p95, %p96
      %s99 = sadd.s32 %s98, 1
      %p102 = scmp.eq.s32.totalorder %s22, 1
      %p103 = scmp.ne.s32.totalorder %s98, %s100
      %p104 = scmp.eq.s32.totalorder %s22, 0
      %p105 = por %p103, %p104
      %p106 = scmp.ne.s32.totalorder %s98, %s100
      %p107 = scmp.eq.s32.totalorder %s27, 1
      %p108 = por %p106, %p107
      %p109 = scmp.ne.s32.totalorder %s100, %s101
      %p110 = scmp.eq.s32.totalorder %s27, 0
      %p111 = por %p109, %p110
      %p112 = scmp.ne.s32.totalorder %s100, %s101
      %p113 = scmp.eq.s32.totalorder %s28, 1
      %p114 = por %p112, %p113
      %p116 = scmp.ne.s32.totalorder %s101, %s115
      %p117 = scmp.eq.s32.totalorder %s28, 0
      %p118 = por %p116, %p117
      %s120 = sadd.s32 %s119, 1
      %p123 = scmp.eq.s32.totalorder %s22, 1
      %p124 = scmp.ne.s32.totalorder %s119, %s121
      %p125 = scmp.eq.s32.totalorder %s22, 0
      %p126 = por %p124, %p125
      %p127 = scmp.ne.s32.totalorder %s119, %s121
      %p128 = scmp.eq.s32.totalorder %s27, 1
      %p129 = por %p127, %p128
      %p130 = scmp.ne.s32.totalorder %s121, %s122
      %p131 = scmp.eq.s32.totalorder %s27, 0
      %p132 = por %p130, %p131
      %p133 = scmp.ne.s32.totalorder %s121, %s122
      %p134 = scmp.eq.s32.totalorder %s28, 1
      %p135 = por %p133, %p134
      %p137 = scmp.ne.s32.totalorder %s122, %s136
      %p138 = scmp.eq.s32.totalorder %s28, 0
      %p139 = por %p137, %p138
      %s141 = sadd.s32 %s140, 1
      %p144 = scmp.eq.s32.totalorder %s22, 1
      %p145 = scmp.ne.s32.totalorder %s140, %s142
      %p146 = scmp.eq.s32.totalorder %s22, 0
      %p147 = por %p145, %p146
      %p148 = scmp.ne.s32.totalorder %s140, %s142
      %p149 = scmp.eq.s32.totalorder %s27, 1
      %p150 = por %p148, %p149
      %p151 = scmp.ne.s32.totalorder %s142, %s143
      %p152 = scmp.eq.s32.totalorder %s27, 0
      %p153 = por %p151, %p152
      %p154 = scmp.ne.s32.totalorder %s142, %s143
      %p155 = scmp.eq.s32.totalorder %s28, 1
      %p156 = por %p154, %p155
      %p158 = scmp.ne.s32.totalorder %s143, %s157
      %p159 = scmp.eq.s32.totalorder %s28, 0
      %p160 = por %p158, %p159
      %s162 = sadd.s32 %s161, 1
      %p165 = scmp.eq.s32.totalorder %s22, 1
      %p166 = scmp.ne.s32.totalorder %s161, %s163
      %p167 = scmp.eq.s32.totalorder %s22, 0
      %p168 = por %p166, %p167
      %p169 = scmp.ne.s32.totalorder %s161, %s163
      %p170 = scmp.eq.s32.totalorder %s27, 1
      %p171 = por %p169, %p170
      %p172 = scmp.ne.s32.totalorder %s163, %s164
      %p173 = scmp.eq.s32.totalorder %s27, 0
      %p174 = por %p172, %p173
      %p175 = scmp.ne.s32.totalorder %s163, %s164
      %p176 = scmp.eq.s32.totalorder %s28, 1
      %p177 = por %p175, %p176
      %p179 = scmp.ne.s32.totalorder %s164, %s178
      %p180 = scmp.eq.s32.totalorder %s28, 0
      %p181 = por %p179, %p180
      %s183 = sadd.s32 %s182, 1
      %p186 = scmp.eq.s32.totalorder %s22, 1
      %p187 = scmp.ne.s32.totalorder %s182, %s184
      %p188 = scmp.eq.s32.totalorder %s22, 0
      %p189 = por %p187, %p188
      %p190 = scmp.ne.s32.totalorder %s182, %s184
      %p191 = scmp.eq.s32.totalorder %s27, 1
      %p192 = por %p190, %p191
      %p193 = scmp.ne.s32.totalorder %s184, %s185
      %p194 = scmp.eq.s32.totalorder %s27, 0
      %p195 = por %p193, %p194
      %p196 = scmp.ne.s32.totalorder %s184, %s185
      %p197 = scmp.eq.s32.totalorder %s28, 1
      %p198 = por %p196, %p197
      %p200 = scmp.ne.s32.totalorder %s185, %s199
      %p201 = scmp.eq.s32.totalorder %s28, 0
      %p202 = por %p200, %p201
      %s204 = sadd.s32 %s203, 1
      %p207 = scmp.eq.s32.totalorder %s22, 1
      %p208 = scmp.ne.s32.totalorder %s203, %s205
      %p209 = scmp.eq.s32.totalorder %s22, 0
      %p210 = por %p208, %p209
      %p211 = scmp.ne.s32.totalorder %s203, %s205
      %p212 = scmp.eq.s32.totalorder %s27, 1
      %p213 = por %p211, %p212
      %p214 = scmp.ne.s32.totalorder %s205, %s206
      %p215 = scmp.eq.s32.totalorder %s27, 0
      %p216 = por %p214, %p215
      %p217 = scmp.ne.s32.totalorder %s205, %s206
      %p218 = scmp.eq.s32.totalorder %s28, 1
      %p219 = por %p217, %p218
      %p221 = scmp.ne.s32.totalorder %s206, %s220
      %p222 = scmp.eq.s32.totalorder %s28, 0
      %p223 = por %p221, %p222
      %s225 = sadd.s32 %s224, 1
      %p228 = scmp.eq.s32.totalorder %s22, 1
      %p229 = scmp.ne.s32.totalorder %s224, %s226
      %p230 = scmp.eq.s32.totalorder %s22, 0
      %p231 = por %p229, %p230
      %p232 = scmp.ne.s32.totalorder %s224, %s226
      %p233 = scmp.eq.s32.totalorder %s27, 1
      %p234 = por %p232, %p233
      %p235 = scmp.ne.s32.totalorder %s226, %s227
      %p236 = scmp.eq.s32.totalorder %s27, 0
      %p237 = por %p235, %p236
      %p238 = scmp.ne.s32.totalorder %s226, %s227
      %p239 = scmp.eq.s32.totalorder %s28, 1
      %p240 = por %p238, %p239
      %p242 = scmp.ne.s32.totalorder %s227, %s241
      %p243 = scmp.eq.s32.totalorder %s28, 0
      %p244 = por %p242, %p243
      %s246 = sadd.s32 %s245, 1
      %p249 = scmp.eq.s32.totalorder %s22, 1
      %p250 = scmp.ne.s32.totalorder %s245, %s247
      %p251 = scmp.eq.s32.totalorder %s22, 0
      %p252 = por %p250, %p251
      %p253 = scmp.ne.s32.totalorder %s245, %s247
      %p254 = scmp.eq.s32.totalorder %s27, 1
      %p255 = por %p253, %p254
      %p256 = scmp.ne.s32.totalorder %s247, %s248
      %p257 = scmp.eq.s32.totalorder %s27, 0
      %p258 = por %p256, %p257
      %p259 = scmp.ne.s32.totalorder %s247, %s248
      %p260 = scmp.eq.s32.totalorder %s28, 1
      %p261 = por %p259, %p260
      %p263 = scmp.ne.s32.totalorder %s248, %s262
      %p264 = scmp.eq.s32.totalorder %s28, 0
      %p265 = por %p263, %p264
      %s267 = sadd.s32 %s266, 1
      %p270 = scmp.eq.s32.totalorder %s22, 1
      %p271 = scmp.ne.s32.totalorder %s266, %s268
      %p272 = scmp.eq.s32.totalorder %s22, 0
      %p273 = por %p271, %p272
      %p274 = scmp.ne.s32.totalorder %s266, %s268
      %p275 = scmp.eq.s32.totalorder %s27, 1
      %p276 = por %p274, %p275
      %p277 = scmp.ne.s32.totalorder %s268, %s269
      %p278 = scmp.eq.s32.totalorder %s27, 0
      %p279 = por %p277, %p278
      %p280 = scmp.ne.s32.totalorder %s268, %s269
      %p281 = scmp.eq.s32.totalorder %s28, 1
      %p282 = por %p280, %p281
      %p284 = scmp.ne.s32.totalorder %s269, %s283
      %p285 = scmp.eq.s32.totalorder %s28, 0
      %p286 = por %p284, %p285
      %s288 = sadd.s32 %s287, 1
      %p291 = scmp.eq.s32.totalorder %s22, 1
      %p292 = scmp.ne.s32.totalorder %s287, %s289
      %p293 = scmp.eq.s32.totalorder %s22, 0
      %p294 = por %p292, %p293
      %p295 = scmp.ne.s32.totalorder %s287, %s289
      %p296 = scmp.eq.s32.totalorder %s27, 1
      %p297 = por %p295, %p296
      %p298 = scmp.ne.s32.totalorder %s289, %s290
      %p299 = scmp.eq.s32.totalorder %s27, 0
      %p300 = por %p298, %p299
      %p301 = scmp.ne.s32.totalorder %s289, %s290
      %p302 = scmp.eq.s32.totalorder %s28, 1
      %p303 = por %p301, %p302
      %p305 = scmp.ne.s32.totalorder %s290, %s304
      %p306 = scmp.eq.s32.totalorder %s28, 0
      %p307 = por %p305, %p306
      %s308 = ssub.s32 %s22, %s29
      %p309 = scmp.eq.s32.totalorder %s308, 0
      %s311 = sadd.s32 %s310, 1
      %s312 = scalar_select %p309, %s310, %s311
      %p315 = pneg %p309
      %p316 = scmp.eq.s32.totalorder %s22, 1
      %p317 = por %p315, %p316
      %p318 = scmp.ne.s32.totalorder %s310, %s313
      %p319 = scmp.eq.s32.totalorder %s22, 0
      %p320 = por %p318, %p319
      %p321 = scmp.ne.s32.totalorder %s310, %s313
      %p322 = scmp.eq.s32.totalorder %s27, 1
      %p323 = por %p321, %p322
      %p324 = scmp.ne.s32.totalorder %s313, %s314
      %p325 = scmp.eq.s32.totalorder %s27, 0
      %p326 = por %p324, %p325
      %p327 = scmp.ne.s32.totalorder %s313, %s314
      %p328 = scmp.eq.s32.totalorder %s28, 1
      %p329 = por %p327, %p328
      %p331 = scmp.ne.s32.totalorder %s314, %s330
      %p332 = scmp.eq.s32.totalorder %s28, 0
      %p333 = por %p331, %p332
      %p334 = scmp.le.s32.totalorder 1, %s22
      %p335 = scmp.lt.s32.totalorder %s22, 3
      %p336 = pnand %p334, %p335
      %p337 = pneg %p336
      // Predicated region
      $region9: #{actor_critic_forward.1} parent=5 // pred_check
        _
      $region10: #{actor_critic_forward.1} parent=5 // pred_check_branch
        %339 = sbr.rel (%p336) target = $region12
      $region11: #{actor_critic_forward.1} parent=5 // pred_region
        %s340 = ssub.s32 %s22, 1
        // Predicated region
        $region13: #{actor_critic_forward.1} parent=11 // pred_check
          %p341 = pneg %p69
        $region14: #{actor_critic_forward.1} parent=11 // pred_check_branch
          %343 = sbr.rel (%p341) target = $region16
        $region15: #{actor_critic_forward.1} parent=11 // pred_region
          %345 = vsyncadd [#allocation3], 0
          %s346 = sshll.u32 %s1, 4
          %s347 = int_to_ptr.hbm [resolvable:$true] %s346
          %s348 = sshll.u32 [#allocation2], 4
          %s349 = int_to_ptr.vmem [resolvable:$true] %s348
          %354 = dma.hbm_to_vmem [thread:$0]  %s347, 1024, %s349, [#allocation3], 512, 512, 32
        $region16: #{actor_critic_forward.1} parent=11 // pred_fallthru
          _
        // Predicated region
        $region17: #{actor_critic_forward.1} parent=11 // pred_check
          %p355 = pneg %p90
        $region18: #{actor_critic_forward.1} parent=11 // pred_check_branch
          %357 = sbr.rel (%p355) target = $region20
        $region19: #{actor_critic_forward.1} parent=11 // pred_region
          _
        $region20: #{actor_critic_forward.1} parent=11 // pred_fallthru
          _
        // Predicated region
        $region21: #{actor_critic_forward.1} parent=11 // pred_check
          %p358 = pneg %p111
        $region22: #{actor_critic_forward.1} parent=11 // pred_check_branch
          %360 = sbr.rel (%p358) target = $region24
        $region23: #{actor_critic_forward.1} parent=11 // pred_region
          %362 = vsyncadd [#allocation5], 0
          %s363 = sshll.u32 %s3, 4
          %s364 = int_to_ptr.hbm [resolvable:$true] %s363
          %s365 = sshll.u32 [#allocation4], 4
          %s366 = int_to_ptr.vmem [resolvable:$true] %s365
          %371 = dma.hbm_to_vmem [thread:$0]  %s364, 8192, %s366, [#allocation5], 128, 128, 8
        $region24: #{actor_critic_forward.1} parent=11 // pred_fallthru
          _
        // Predicated region
        $region25: #{actor_critic_forward.1} parent=11 // pred_check
          %p372 = pneg %p132
        $region26: #{actor_critic_forward.1} parent=11 // pred_check_branch
          %374 = sbr.rel (%p372) target = $region28
        $region27: #{actor_critic_forward.1} parent=11 // pred_region
          _
        $region28: #{actor_critic_forward.1} parent=11 // pred_fallthru
          _
        // Predicated region
        $region29: #{actor_critic_forward.1} parent=11 // pred_check
          %p375 = pneg %p153
        $region30: #{actor_critic_forward.1} parent=11 // pred_check_branch
          %377 = sbr.rel (%p375) target = $region32
        $region31: #{actor_critic_forward.1} parent=11 // pred_region
          _
        $region32: #{actor_critic_forward.1} parent=11 // pred_fallthru
          _
        // Predicated region
        $region33: #{actor_critic_forward.1} parent=11 // pred_check
          %p378 = pneg %p174
        $region34: #{actor_critic_forward.1} parent=11 // pred_check_branch
          %380 = sbr.rel (%p378) target = $region36
        $region35: #{actor_critic_forward.1} parent=11 // pred_region
          _
        $region36: #{actor_critic_forward.1} parent=11 // pred_fallthru
          _
        // Predicated region
        $region37: #{actor_critic_forward.1} parent=11 // pred_check
          %p381 = pneg %p195
        $region38: #{actor_critic_forward.1} parent=11 // pred_check_branch
          %383 = sbr.rel (%p381) target = $region40
        $region39: #{actor_critic_forward.1} parent=11 // pred_region
          %385 = vsyncadd [#allocation5], 0
          %s386 = sshll.u32 %s7, 4
          %s387 = int_to_ptr.hbm [resolvable:$true] %s386
          %s388 = sshll.u32 [#allocation6], 4
          %s389 = int_to_ptr.vmem [resolvable:$true] %s388
          %394 = dma.hbm_to_vmem [thread:$0]  %s387, 8192, %s389, [#allocation5], 128, 128, 8
        $region40: #{actor_critic_forward.1} parent=11 // pred_fallthru
          _
        // Predicated region
        $region41: #{actor_critic_forward.1} parent=11 // pred_check
          %p395 = pneg %p216
        $region42: #{actor_critic_forward.1} parent=11 // pred_check_branch
          %397 = sbr.rel (%p395) target = $region44
        $region43: #{actor_critic_forward.1} parent=11 // pred_region
          _
        $region44: #{actor_critic_forward.1} parent=11 // pred_fallthru
          _
        // Predicated region
        $region45: #{actor_critic_forward.1} parent=11 // pred_check
          %p398 = pneg %p237
        $region46: #{actor_critic_forward.1} parent=11 // pred_check_branch
          %400 = sbr.rel (%p398) target = $region48
        $region47: #{actor_critic_forward.1} parent=11 // pred_region
          _
        $region48: #{actor_critic_forward.1} parent=11 // pred_fallthru
          _
        // Predicated region
        $region49: #{actor_critic_forward.1} parent=11 // pred_check
          %p401 = pneg %p258
        $region50: #{actor_critic_forward.1} parent=11 // pred_check_branch
          %403 = sbr.rel (%p401) target = $region52
        $region51: #{actor_critic_forward.1} parent=11 // pred_region
          _
        $region52: #{actor_critic_forward.1} parent=11 // pred_fallthru
          _
        // Predicated region
        $region53: #{actor_critic_forward.1} parent=11 // pred_check
          %p404 = pneg %p279
        $region54: #{actor_critic_forward.1} parent=11 // pred_check_branch
          %406 = sbr.rel (%p404) target = $region56
        $region55: #{actor_critic_forward.1} parent=11 // pred_region
          %408 = vsyncadd [#allocation8], 0
          %s409 = sshll.u32 %s11, 4
          %s410 = int_to_ptr.hbm [resolvable:$true] %s409
          %s411 = sshll.u32 [#allocation7], 4
          %s412 = int_to_ptr.vmem [resolvable:$true] %s411
          %417 = dma.hbm_to_vmem [thread:$0]  %s410, 2048, %s412, [#allocation8], 64, 64, 4
        $region56: #{actor_critic_forward.1} parent=11 // pred_fallthru
          _
        // Predicated region
        $region57: #{actor_critic_forward.1} parent=11 // pred_check
          %p418 = pneg %p300
        $region58: #{actor_critic_forward.1} parent=11 // pred_check_branch
          %420 = sbr.rel (%p418) target = $region60
        $region59: #{actor_critic_forward.1} parent=11 // pred_region
          _
        $region60: #{actor_critic_forward.1} parent=11 // pred_fallthru
          _
      $region12: #{actor_critic_forward.1} parent=5 // pred_fallthru
        _
      %p421 = scmp.lt.s32.totalorder %s22, 2
      // Predicated region
      $region61: #{actor_critic_forward.1} parent=5 // pred_check
        %p422 = pneg %p421
      $region62: #{actor_critic_forward.1} parent=5 // pred_check_branch
        %424 = sbr.rel (%p422) target = $region64
      $region63: #{actor_critic_forward.1} parent=5 // pred_region
        // Predicated region
        $region65: #{actor_critic_forward.1} parent=63 // pred_check
          %p425 = pneg %p42
        $region66: #{actor_critic_forward.1} parent=63 // pred_check_branch
          %427 = sbr.rel (%p425) target = $region68
        $region67: #{actor_critic_forward.1} parent=63 // pred_region
          %s428 = smul.u32 16, %s22
          %p429 = scmp.lt.s32.totalorder %s428, 31
          %s430 = scalar_select %p429, %s428, 31
          %s431 = smul.addr %s430, 8
          %s432 = scalar_lea.vmem %s0, %s431
          %s433 = smul.u32 16, %s22
        $region68: #{actor_critic_forward.1} parent=63 // pred_fallthru
          _
      $region64: #{actor_critic_forward.1} parent=5 // pred_fallthru
        _
      %p434 = scmp.le.s32.totalorder 1, %s22
      %p435 = scmp.lt.s32.totalorder %s22, 3
      %p436 = pnand %p434, %p435
      %p437 = pneg %p436
      // Predicated region
      $region69: #{actor_critic_forward.1} parent=5 // pred_check
        _
      $region70: #{actor_critic_forward.1} parent=5 // pred_check_branch
        %439 = sbr.rel (%p436) target = $region72
      $region71: #{actor_critic_forward.1} parent=5 // pred_region
        %s440 = ssub.s32 %s22, 1
        // Predicated region
        $region73: #{actor_critic_forward.1} parent=71 // pred_check
          %p441 = pneg %p69
        $region74: #{actor_critic_forward.1} parent=71 // pred_check_branch
          %443 = sbr.rel (%p441) target = $region76
        $region75: #{actor_critic_forward.1} parent=71 // pred_region
          %445 = dma.done [#allocation3], 1024
        $region76: #{actor_critic_forward.1} parent=71 // pred_fallthru
          _
        // Predicated region
        $region77: #{actor_critic_forward.1} parent=71 // pred_check
          %p446 = pneg %p111
        $region78: #{actor_critic_forward.1} parent=71 // pred_check_branch
          %448 = sbr.rel (%p446) target = $region80
        $region79: #{actor_critic_forward.1} parent=71 // pred_region
          %450 = dma.done [#allocation5], 8192
        $region80: #{actor_critic_forward.1} parent=71 // pred_fallthru
          _
        // Predicated region
        $region81: #{actor_critic_forward.1} parent=71 // pred_check
          %p451 = pneg %p195
        $region82: #{actor_critic_forward.1} parent=71 // pred_check_branch
          %453 = sbr.rel (%p451) target = $region84
        $region83: #{actor_critic_forward.1} parent=71 // pred_region
          %455 = dma.done [#allocation5], 8192
        $region84: #{actor_critic_forward.1} parent=71 // pred_fallthru
          _
        // Predicated region
        $region85: #{actor_critic_forward.1} parent=71 // pred_check
          %p456 = pneg %p279
        $region86: #{actor_critic_forward.1} parent=71 // pred_check_branch
          %458 = sbr.rel (%p456) target = $region88
        $region87: #{actor_critic_forward.1} parent=71 // pred_region
          %460 = dma.done [#allocation8], 2048
        $region88: #{actor_critic_forward.1} parent=71 // pred_fallthru
          _
        %s461 = smul.u32 16, %s27
        %p462 = scmp.lt.s32.totalorder %s461, 31
        %s463 = scalar_select %p462, %s461, 31
        %s464 = smul.addr %s463, 8
        %s465 = scalar_lea.vmem %s0, %s464
        %p466 = pneg %p48
        %p467 = pneg %p45
        %p468 = pneg %p69
        %p469 = pneg %p66
        %p470 = pneg %p90
        %p471 = pneg %p87
        %p472 = pneg %p111
        %p473 = pneg %p108
        %p474 = pneg %p132
        %p475 = pneg %p129
        %p476 = pneg %p153
        %p477 = pneg %p150
        %p478 = pneg %p174
        %p479 = pneg %p171
        %p480 = pneg %p195
        %p481 = pneg %p192
        %p482 = pneg %p216
        %p483 = pneg %p213
        %p484 = pneg %p237
        %p485 = pneg %p234
        %p486 = pneg %p258
        %p487 = pneg %p255
        %p488 = pneg %p279
        %p489 = pneg %p276
        %p490 = pneg %p300
        %p491 = pneg %p297
        %p492 = pneg %p326
        %p493 = pneg %p323
        %s494 = smul.u32 16, %s27
        %p495 = scmp.lt.s32.totalorder %s494, 31
        %s496 = scalar_select %p495, %s494, 31
        %s497 = smul.addr %s496, 8
        %s498 = scalar_lea.vmem %s13, %s497
        %s499 = smul.u32 16, %s27
        %p500 = scmp.lt.s32.totalorder %s499, 31
        %s501 = scalar_select %p500, %s499, 31
        %s502 = smul.addr %s501, 8
        %s503 = scalar_lea.vmem %s0, %s502
        %s504 = smul.u32 16, %s27
        %s505 = smul.u32 16, %s27
        %p506 = scmp.lt.s32.totalorder %s505, 31
        %s507 = scalar_select %p506, %s505, 31
        %s508 = smul.addr %s507, 8
        %s509 = scalar_lea.vmem %s13, %s508
        %s510 = smul.u32 16, %s27
        %v512 = vld [vmem:[%s503] sm:$0xff]
        %v513 = vld [vmem:[%s503 + $0x8] sm:$0xff]
        %v514 = vld [vmem:[%s503 + $0x10] sm:$0xff]
        %v515 = vld [vmem:[%s503 + $0x18] sm:$0xff]
        %v516 = vld [vmem:[%s503 + $0x20] sm:$0xff]
        %v517 = vld [vmem:[%s503 + $0x28] sm:$0xff]
        %v518 = vld [vmem:[%s503 + $0x30] sm:$0xff]
        %v519 = vld [vmem:[%s503 + $0x38] sm:$0xff]
        %v520 = vld [vmem:[%s503 + $0x40] sm:$0xff]
        %v521 = vld [vmem:[%s503 + $0x48] sm:$0xff]
        %v522 = vld [vmem:[%s503 + $0x50] sm:$0xff]
        %v523 = vld [vmem:[%s503 + $0x58] sm:$0xff]
        %v524 = vld [vmem:[%s503 + $0x60] sm:$0xff]
        %v525 = vld [vmem:[%s503 + $0x68] sm:$0xff]
        %v526 = vld [vmem:[%s503 + $0x70] sm:$0xff]
        %v527 = vld [vmem:[%s503 + $0x78] sm:$0xff]
        %v528 = vpack.c.bf16 %v513, %v512
        %v529 = vpack.c.bf16 %v515, %v514
        %v530 = vpack.c.bf16 %v517, %v516
        %v531 = vpack.c.bf16 %v519, %v518
        %v532 = vpack.c.bf16 %v521, %v520
        %v533 = vpack.c.bf16 %v523, %v522
        %v534 = vpack.c.bf16 %v525, %v524
        %v535 = vpack.c.bf16 %v527, %v526
        %v536 = vld [vmem:[#allocation2] sm:$0xff]
        %v537 = vld [vmem:[#allocation2 + $0x8] sm:$0xff]
        %v538 = vld [vmem:[#allocation2 + $0x10] sm:$0xff]
        %v539 = vld [vmem:[#allocation2 + $0x18] sm:$0xff]
        %v540 = vld [vmem:[#allocation2 + $0x20] sm:$0xff]
        %v541 = vld [vmem:[#allocation2 + $0x28] sm:$0xff]
        %v542 = vld [vmem:[#allocation2 + $0x30] sm:$0xff]
        %v543 = vld [vmem:[#allocation2 + $0x38] sm:$0xff]
        %v544 = vld [vmem:[%s2] sm:$0xff]
        %v546 = vperm.slane %v544, 0
        %v547 = vperm.slane %v544, 1
        %v548 = vperm.slane %v544, 2
        %v549 = vperm.slane %v544, 3
        %v550 = vperm.slane %v544, 4
        %v551 = vperm.slane %v544, 5
        %v552 = vperm.slane %v544, 6
        %v553 = vperm.slane %v544, 7
        %v570 = vunpack.c.l.b16 %v536
        %v571 = vunpack.c.h.b16 %v536
        %v572 = vunpack.c.l.b16 %v537
        %v573 = vunpack.c.h.b16 %v537
        %v574 = vunpack.c.l.b16 %v538
        %v575 = vunpack.c.h.b16 %v538
        %v576 = vunpack.c.l.b16 %v539
        %v577 = vunpack.c.h.b16 %v539
        %v578 = vunpack.c.l.b16 %v540
        %v579 = vunpack.c.h.b16 %v540
        %v580 = vunpack.c.l.b16 %v541
        %v581 = vunpack.c.h.b16 %v541
        %v582 = vunpack.c.l.b16 %v542
        %v583 = vunpack.c.h.b16 %v542
        %v584 = vunpack.c.l.b16 %v543
        %v585 = vunpack.c.h.b16 %v543
        %v586 = vpack.c.b16 %v578, %v570
        %v587 = vpack.c.b16 %v579, %v571
        %v588 = vpack.c.b16 %v580, %v572
        %v589 = vpack.c.b16 %v581, %v573
        %v590 = vpack.c.b16 %v582, %v574
        %v591 = vpack.c.b16 %v583, %v575
        %v592 = vpack.c.b16 %v584, %v576
        %v593 = vpack.c.b16 %v585, %v577
        %vm602 = vcmask 130048
        %v604 = vsel %vm602, %v528, 0
        %v607 = vsel %vm602, %v529, 0
        %v610 = vsel %vm602, %v530, 0
        %v613 = vsel %vm602, %v531, 0
        %v616 = vsel %vm602, %v532, 0
        %v619 = vsel %vm602, %v533, 0
        %v622 = vsel %vm602, %v534, 0
        %v625 = vsel %vm602, %v535, 0
        %627 = vmatpush.bf16.msra.mxu0 0
        %628 = vmatpush.bf16.msra.mxu0 0
        %629 = vmatpush.bf16.msra.mxu0 0
        %630 = vmatpush.bf16.msra.mxu0 0
        %631 = vmatpush.bf16.msra.mxu0 0
        %632 = vmatpush.bf16.msra.mxu0 0
        %633 = vmatpush.bf16.msra.mxu0 0
        %634 = vmatpush.bf16.msra.mxu0 %v586
        %635 = vmatmul.bf16.gmra.mxu0 %v604
        %v636 = vpop.f32.mrf.mxu0
        %v637 = vadd.f32 %v546, %v636
        %v638 = vpop.f32.mrf.mxu0
        %v639 = vadd.f32 %v546, %v638
        %640 = vmatmul.bf16.gmra.mxu0 %v607
        %v641 = vpop.f32.mrf.mxu0
        %v642 = vadd.f32 %v546, %v641
        %v643 = vpop.f32.mrf.mxu0
        %v644 = vadd.f32 %v546, %v643
        %645 = vmatmul.bf16.gmra.mxu0 %v610
        %v646 = vpop.f32.mrf.mxu0
        %v647 = vadd.f32 %v546, %v646
        %v648 = vpop.f32.mrf.mxu0
        %v649 = vadd.f32 %v546, %v648
        %650 = vmatmul.bf16.gmra.mxu0 %v613
        %v651 = vpop.f32.mrf.mxu0
        %v652 = vadd.f32 %v546, %v651
        %v653 = vpop.f32.mrf.mxu0
        %v654 = vadd.f32 %v546, %v653
        %655 = vmatmul.bf16.gmra.mxu0 %v616
        %v656 = vpop.f32.mrf.mxu0
        %v657 = vadd.f32 %v546, %v656
        %v658 = vpop.f32.mrf.mxu0
        %v659 = vadd.f32 %v546, %v658
        %660 = vmatmul.bf16.gmra.mxu0 %v619
        %v661 = vpop.f32.mrf.mxu0
        %v662 = vadd.f32 %v546, %v661
        %v663 = vpop.f32.mrf.mxu0
        %v664 = vadd.f32 %v546, %v663
        %665 = vmatmul.bf16.gmra.mxu0 %v622
        %v666 = vpop.f32.mrf.mxu0
        %v667 = vadd.f32 %v546, %v666
        %v668 = vpop.f32.mrf.mxu0
        %v669 = vadd.f32 %v546, %v668
        %670 = vmatmul.bf16.gmra.mxu0 %v625
        %v671 = vpop.f32.mrf.mxu0
        %v672 = vadd.f32 %v546, %v671
        %v673 = vpop.f32.mrf.mxu0
        %v674 = vadd.f32 %v546, %v673
        %675 = vdwg.mxu0
        %676 = vmatpush.bf16.msra.mxu0 0
        %677 = vmatpush.bf16.msra.mxu0 0
        %678 = vmatpush.bf16.msra.mxu0 0
        %679 = vmatpush.bf16.msra.mxu0 0
        %680 = vmatpush.bf16.msra.mxu0 0
        %681 = vmatpush.bf16.msra.mxu0 0
        %682 = vmatpush.bf16.msra.mxu0 0
        %683 = vmatpush.bf16.msra.mxu0 %v587
        %684 = vmatmul.bf16.gmra.mxu0 %v604
        %v685 = vpop.f32.mrf.mxu0
        %v686 = vadd.f32 %v547, %v685
        %v687 = vpop.f32.mrf.mxu0
        %v688 = vadd.f32 %v547, %v687
        %689 = vmatmul.bf16.gmra.mxu0 %v607
        %v690 = vpop.f32.mrf.mxu0
        %v691 = vadd.f32 %v547, %v690
        %v692 = vpop.f32.mrf.mxu0
        %v693 = vadd.f32 %v547, %v692
        %694 = vmatmul.bf16.gmra.mxu0 %v610
        %v695 = vpop.f32.mrf.mxu0
        %v696 = vadd.f32 %v547, %v695
        %v697 = vpop.f32.mrf.mxu0
        %v698 = vadd.f32 %v547, %v697
        %699 = vmatmul.bf16.gmra.mxu0 %v613
        %v700 = vpop.f32.mrf.mxu0
        %v701 = vadd.f32 %v547, %v700
        %v702 = vpop.f32.mrf.mxu0
        %v703 = vadd.f32 %v547, %v702
        %704 = vmatmul.bf16.gmra.mxu0 %v616
        %v705 = vpop.f32.mrf.mxu0
        %v706 = vadd.f32 %v547, %v705
        %v707 = vpop.f32.mrf.mxu0
        %v708 = vadd.f32 %v547, %v707
        %709 = vmatmul.bf16.gmra.mxu0 %v619
        %v710 = vpop.f32.mrf.mxu0
        %v711 = vadd.f32 %v547, %v710
        %v712 = vpop.f32.mrf.mxu0
        %v713 = vadd.f32 %v547, %v712
        %714 = vmatmul.bf16.gmra.mxu0 %v622
        %v715 = vpop.f32.mrf.mxu0
        %v716 = vadd.f32 %v547, %v715
        %v717 = vpop.f32.mrf.mxu0
        %v718 = vadd.f32 %v547, %v717
        %719 = vmatmul.bf16.gmra.mxu0 %v625
        %v720 = vpop.f32.mrf.mxu0
        %v721 = vadd.f32 %v547, %v720
        %v722 = vpop.f32.mrf.mxu0
        %v723 = vadd.f32 %v547, %v722
        %724 = vdwg.mxu0
        %725 = vmatpush.bf16.msra.mxu0 0
        %726 = vmatpush.bf16.msra.mxu0 0
        %727 = vmatpush.bf16.msra.mxu0 0
        %728 = vmatpush.bf16.msra.mxu0 0
        %729 = vmatpush.bf16.msra.mxu0 0
        %730 = vmatpush.bf16.msra.mxu0 0
        %731 = vmatpush.bf16.msra.mxu0 0
        %732 = vmatpush.bf16.msra.mxu0 %v588
        %733 = vmatmul.bf16.gmra.mxu0 %v604
        %v734 = vpop.f32.mrf.mxu0
        %v735 = vadd.f32 %v548, %v734
        %v736 = vpop.f32.mrf.mxu0
        %v737 = vadd.f32 %v548, %v736
        %738 = vmatmul.bf16.gmra.mxu0 %v607
        %v739 = vpop.f32.mrf.mxu0
        %v740 = vadd.f32 %v548, %v739
        %v741 = vpop.f32.mrf.mxu0
        %v742 = vadd.f32 %v548, %v741
        %743 = vmatmul.bf16.gmra.mxu0 %v610
        %v744 = vpop.f32.mrf.mxu0
        %v745 = vadd.f32 %v548, %v744
        %v746 = vpop.f32.mrf.mxu0
        %v747 = vadd.f32 %v548, %v746
        %748 = vmatmul.bf16.gmra.mxu0 %v613
        %v749 = vpop.f32.mrf.mxu0
        %v750 = vadd.f32 %v548, %v749
        %v751 = vpop.f32.mrf.mxu0
        %v752 = vadd.f32 %v548, %v751
        %753 = vmatmul.bf16.gmra.mxu0 %v616
        %v754 = vpop.f32.mrf.mxu0
        %v755 = vadd.f32 %v548, %v754
        %v756 = vpop.f32.mrf.mxu0
        %v757 = vadd.f32 %v548, %v756
        %758 = vmatmul.bf16.gmra.mxu0 %v619
        %v759 = vpop.f32.mrf.mxu0
        %v760 = vadd.f32 %v548, %v759
        %v761 = vpop.f32.mrf.mxu0
        %v762 = vadd.f32 %v548, %v761
        %763 = vmatmul.bf16.gmra.mxu0 %v622
        %v764 = vpop.f32.mrf.mxu0
        %v765 = vadd.f32 %v548, %v764
        %v766 = vpop.f32.mrf.mxu0
        %v767 = vadd.f32 %v548, %v766
        %768 = vmatmul.bf16.gmra.mxu0 %v625
        %v769 = vpop.f32.mrf.mxu0
        %v770 = vadd.f32 %v548, %v769
        %v771 = vpop.f32.mrf.mxu0
        %v772 = vadd.f32 %v548, %v771
        %773 = vdwg.mxu0
        %774 = vmatpush.bf16.msra.mxu0 0
        %775 = vmatpush.bf16.msra.mxu0 0
        %776 = vmatpush.bf16.msra.mxu0 0
        %777 = vmatpush.bf16.msra.mxu0 0
        %778 = vmatpush.bf16.msra.mxu0 0
        %779 = vmatpush.bf16.msra.mxu0 0
        %780 = vmatpush.bf16.msra.mxu0 0
        %781 = vmatpush.bf16.msra.mxu0 %v589
        %782 = vmatmul.bf16.gmra.mxu0 %v604
        %v783 = vpop.f32.mrf.mxu0
        %v784 = vadd.f32 %v549, %v783
        %v785 = vpop.f32.mrf.mxu0
        %v786 = vadd.f32 %v549, %v785
        %787 = vmatmul.bf16.gmra.mxu0 %v607
        %v788 = vpop.f32.mrf.mxu0
        %v789 = vadd.f32 %v549, %v788
        %v790 = vpop.f32.mrf.mxu0
        %v791 = vadd.f32 %v549, %v790
        %792 = vmatmul.bf16.gmra.mxu0 %v610
        %v793 = vpop.f32.mrf.mxu0
        %v794 = vadd.f32 %v549, %v793
        %v795 = vpop.f32.mrf.mxu0
        %v796 = vadd.f32 %v549, %v795
        %797 = vmatmul.bf16.gmra.mxu0 %v613
        %v798 = vpop.f32.mrf.mxu0
        %v799 = vadd.f32 %v549, %v798
        %v800 = vpop.f32.mrf.mxu0
        %v801 = vadd.f32 %v549, %v800
        %802 = vmatmul.bf16.gmra.mxu0 %v616
        %v803 = vpop.f32.mrf.mxu0
        %v804 = vadd.f32 %v549, %v803
        %v805 = vpop.f32.mrf.mxu0
        %v806 = vadd.f32 %v549, %v805
        %807 = vmatmul.bf16.gmra.mxu0 %v619
        %v808 = vpop.f32.mrf.mxu0
        %v809 = vadd.f32 %v549, %v808
        %v810 = vpop.f32.mrf.mxu0
        %v811 = vadd.f32 %v549, %v810
        %812 = vmatmul.bf16.gmra.mxu0 %v622
        %v813 = vpop.f32.mrf.mxu0
        %v814 = vadd.f32 %v549, %v813
        %v815 = vpop.f32.mrf.mxu0
        %v816 = vadd.f32 %v549, %v815
        %817 = vmatmul.bf16.gmra.mxu0 %v625
        %v818 = vpop.f32.mrf.mxu0
        %v819 = vadd.f32 %v549, %v818
        %v820 = vpop.f32.mrf.mxu0
        %v821 = vadd.f32 %v549, %v820
        %822 = vdwg.mxu0
        %823 = vmatpush.bf16.msra.mxu0 0
        %824 = vmatpush.bf16.msra.mxu0 0
        %825 = vmatpush.bf16.msra.mxu0 0
        %826 = vmatpush.bf16.msra.mxu0 0
        %827 = vmatpush.bf16.msra.mxu0 0
        %828 = vmatpush.bf16.msra.mxu0 0
        %829 = vmatpush.bf16.msra.mxu0 0
        %830 = vmatpush.bf16.msra.mxu0 %v590
        %831 = vmatmul.bf16.gmra.mxu0 %v604
        %v832 = vpop.f32.mrf.mxu0
        %v833 = vadd.f32 %v550, %v832
        %v834 = vpop.f32.mrf.mxu0
        %v835 = vadd.f32 %v550, %v834
        %836 = vmatmul.bf16.gmra.mxu0 %v607
        %v837 = vpop.f32.mrf.mxu0
        %v838 = vadd.f32 %v550, %v837
        %v839 = vpop.f32.mrf.mxu0
        %v840 = vadd.f32 %v550, %v839
        %841 = vmatmul.bf16.gmra.mxu0 %v610
        %v842 = vpop.f32.mrf.mxu0
        %v843 = vadd.f32 %v550, %v842
        %v844 = vpop.f32.mrf.mxu0
        %v845 = vadd.f32 %v550, %v844
        %846 = vmatmul.bf16.gmra.mxu0 %v613
        %v847 = vpop.f32.mrf.mxu0
        %v848 = vadd.f32 %v550, %v847
        %v849 = vpop.f32.mrf.mxu0
        %v850 = vadd.f32 %v550, %v849
        %851 = vmatmul.bf16.gmra.mxu0 %v616
        %v852 = vpop.f32.mrf.mxu0
        %v853 = vadd.f32 %v550, %v852
        %v854 = vpop.f32.mrf.mxu0
        %v855 = vadd.f32 %v550, %v854
        %856 = vmatmul.bf16.gmra.mxu0 %v619
        %v857 = vpop.f32.mrf.mxu0
        %v858 = vadd.f32 %v550, %v857
        %v859 = vpop.f32.mrf.mxu0
        %v860 = vadd.f32 %v550, %v859
        %861 = vmatmul.bf16.gmra.mxu0 %v622
        %v862 = vpop.f32.mrf.mxu0
        %v863 = vadd.f32 %v550, %v862
        %v864 = vpop.f32.mrf.mxu0
        %v865 = vadd.f32 %v550, %v864
        %866 = vmatmul.bf16.gmra.mxu0 %v625
        %v867 = vpop.f32.mrf.mxu0
        %v868 = vadd.f32 %v550, %v867
        %v869 = vpop.f32.mrf.mxu0
        %v870 = vadd.f32 %v550, %v869
        %871 = vdwg.mxu0
        %872 = vmatpush.bf16.msra.mxu0 0
        %873 = vmatpush.bf16.msra.mxu0 0
        %874 = vmatpush.bf16.msra.mxu0 0
        %875 = vmatpush.bf16.msra.mxu0 0
        %876 = vmatpush.bf16.msra.mxu0 0
        %877 = vmatpush.bf16.msra.mxu0 0
        %878 = vmatpush.bf16.msra.mxu0 0
        %879 = vmatpush.bf16.msra.mxu0 %v591
        %880 = vmatmul.bf16.gmra.mxu0 %v604
        %v881 = vpop.f32.mrf.mxu0
        %v882 = vadd.f32 %v551, %v881
        %v883 = vpop.f32.mrf.mxu0
        %v884 = vadd.f32 %v551, %v883
        %885 = vmatmul.bf16.gmra.mxu0 %v607
        %v886 = vpop.f32.mrf.mxu0
        %v887 = vadd.f32 %v551, %v886
        %v888 = vpop.f32.mrf.mxu0
        %v889 = vadd.f32 %v551, %v888
        %890 = vmatmul.bf16.gmra.mxu0 %v610
        %v891 = vpop.f32.mrf.mxu0
        %v892 = vadd.f32 %v551, %v891
        %v893 = vpop.f32.mrf.mxu0
        %v894 = vadd.f32 %v551, %v893
        %895 = vmatmul.bf16.gmra.mxu0 %v613
        %v896 = vpop.f32.mrf.mxu0
        %v897 = vadd.f32 %v551, %v896
        %v898 = vpop.f32.mrf.mxu0
        %v899 = vadd.f32 %v551, %v898
        %900 = vmatmul.bf16.gmra.mxu0 %v616
        %v901 = vpop.f32.mrf.mxu0
        %v902 = vadd.f32 %v551, %v901
        %v903 = vpop.f32.mrf.mxu0
        %v904 = vadd.f32 %v551, %v903
        %905 = vmatmul.bf16.gmra.mxu0 %v619
        %v906 = vpop.f32.mrf.mxu0
        %v907 = vadd.f32 %v551, %v906
        %v908 = vpop.f32.mrf.mxu0
        %v909 = vadd.f32 %v551, %v908
        %910 = vmatmul.bf16.gmra.mxu0 %v622
        %v911 = vpop.f32.mrf.mxu0
        %v912 = vadd.f32 %v551, %v911
        %v913 = vpop.f32.mrf.mxu0
        %v914 = vadd.f32 %v551, %v913
        %915 = vmatmul.bf16.gmra.mxu0 %v625
        %v916 = vpop.f32.mrf.mxu0
        %v917 = vadd.f32 %v551, %v916
        %v918 = vpop.f32.mrf.mxu0
        %v919 = vadd.f32 %v551, %v918
        %920 = vdwg.mxu0
        %921 = vmatpush.bf16.msra.mxu0 0
        %922 = vmatpush.bf16.msra.mxu0 0
        %923 = vmatpush.bf16.msra.mxu0 0
        %924 = vmatpush.bf16.msra.mxu0 0
        %925 = vmatpush.bf16.msra.mxu0 0
        %926 = vmatpush.bf16.msra.mxu0 0
        %927 = vmatpush.bf16.msra.mxu0 0
        %928 = vmatpush.bf16.msra.mxu0 %v592
        %929 = vmatmul.bf16.gmra.mxu0 %v604
        %v930 = vpop.f32.mrf.mxu0
        %v931 = vadd.f32 %v552, %v930
        %v932 = vpop.f32.mrf.mxu0
        %v933 = vadd.f32 %v552, %v932
        %934 = vmatmul.bf16.gmra.mxu0 %v607
        %v935 = vpop.f32.mrf.mxu0
        %v936 = vadd.f32 %v552, %v935
        %v937 = vpop.f32.mrf.mxu0
        %v938 = vadd.f32 %v552, %v937
        %939 = vmatmul.bf16.gmra.mxu0 %v610
        %v940 = vpop.f32.mrf.mxu0
        %v941 = vadd.f32 %v552, %v940
        %v942 = vpop.f32.mrf.mxu0
        %v943 = vadd.f32 %v552, %v942
        %944 = vmatmul.bf16.gmra.mxu0 %v613
        %v945 = vpop.f32.mrf.mxu0
        %v946 = vadd.f32 %v552, %v945
        %v947 = vpop.f32.mrf.mxu0
        %v948 = vadd.f32 %v552, %v947
        %949 = vmatmul.bf16.gmra.mxu0 %v616
        %v950 = vpop.f32.mrf.mxu0
        %v951 = vadd.f32 %v552, %v950
        %v952 = vpop.f32.mrf.mxu0
        %v953 = vadd.f32 %v552, %v952
        %954 = vmatmul.bf16.gmra.mxu0 %v619
        %v955 = vpop.f32.mrf.mxu0
        %v956 = vadd.f32 %v552, %v955
        %v957 = vpop.f32.mrf.mxu0
        %v958 = vadd.f32 %v552, %v957
        %959 = vmatmul.bf16.gmra.mxu0 %v622
        %v960 = vpop.f32.mrf.mxu0
        %v961 = vadd.f32 %v552, %v960
        %v962 = vpop.f32.mrf.mxu0
        %v963 = vadd.f32 %v552, %v962
        %964 = vmatmul.bf16.gmra.mxu0 %v625
        %v965 = vpop.f32.mrf.mxu0
        %v966 = vadd.f32 %v552, %v965
        %v967 = vpop.f32.mrf.mxu0
        %v968 = vadd.f32 %v552, %v967
        %969 = vdwg.mxu0
        %970 = vmatpush.bf16.msra.mxu0 0
        %971 = vmatpush.bf16.msra.mxu0 0
        %972 = vmatpush.bf16.msra.mxu0 0
        %973 = vmatpush.bf16.msra.mxu0 0
        %974 = vmatpush.bf16.msra.mxu0 0
        %975 = vmatpush.bf16.msra.mxu0 0
        %976 = vmatpush.bf16.msra.mxu0 0
        %977 = vmatpush.bf16.msra.mxu0 %v593
        %978 = vmatmul.bf16.gmra.mxu0 %v604
        %v979 = vpop.f32.mrf.mxu0
        %v980 = vadd.f32 %v553, %v979
        %v981 = vpop.f32.mrf.mxu0
        %v982 = vadd.f32 %v553, %v981
        %983 = vmatmul.bf16.gmra.mxu0 %v607
        %v984 = vpop.f32.mrf.mxu0
        %v985 = vadd.f32 %v553, %v984
        %v986 = vpop.f32.mrf.mxu0
        %v987 = vadd.f32 %v553, %v986
        %988 = vmatmul.bf16.gmra.mxu0 %v610
        %v989 = vpop.f32.mrf.mxu0
        %v990 = vadd.f32 %v553, %v989
        %v991 = vpop.f32.mrf.mxu0
        %v992 = vadd.f32 %v553, %v991
        %993 = vmatmul.bf16.gmra.mxu0 %v613
        %v994 = vpop.f32.mrf.mxu0
        %v995 = vadd.f32 %v553, %v994
        %v996 = vpop.f32.mrf.mxu0
        %v997 = vadd.f32 %v553, %v996
        %998 = vmatmul.bf16.gmra.mxu0 %v616
        %v999 = vpop.f32.mrf.mxu0
        %v1000 = vadd.f32 %v553, %v999
        %v1001 = vpop.f32.mrf.mxu0
        %v1002 = vadd.f32 %v553, %v1001
        %1003 = vmatmul.bf16.gmra.mxu0 %v619
        %v1004 = vpop.f32.mrf.mxu0
        %v1005 = vadd.f32 %v553, %v1004
        %v1006 = vpop.f32.mrf.mxu0
        %v1007 = vadd.f32 %v553, %v1006
        %1008 = vmatmul.bf16.gmra.mxu0 %v622
        %v1009 = vpop.f32.mrf.mxu0
        %v1010 = vadd.f32 %v553, %v1009
        %v1011 = vpop.f32.mrf.mxu0
        %v1012 = vadd.f32 %v553, %v1011
        %1013 = vmatmul.bf16.gmra.mxu0 %v625
        %v1014 = vpop.f32.mrf.mxu0
        %v1015 = vadd.f32 %v553, %v1014
        %v1016 = vpop.f32.mrf.mxu0
        %v1017 = vadd.f32 %v553, %v1016
        %1018 = vdwg.mxu0
        %v1019 = vtanh.pop %v637
        %v1020 = vtanh.pop %v686
        %v1021 = vtanh.pop %v735
        %v1022 = vtanh.pop %v784
        %v1023 = vtanh.pop %v833
        %v1024 = vtanh.pop %v882
        %v1025 = vtanh.pop %v931
        %v1026 = vtanh.pop %v980
        %v1027 = vtanh.pop %v639
        %v1028 = vtanh.pop %v688
        %v1029 = vtanh.pop %v737
        %v1030 = vtanh.pop %v786
        %v1031 = vtanh.pop %v835
        %v1032 = vtanh.pop %v884
        %v1033 = vtanh.pop %v933
        %v1034 = vtanh.pop %v982
        %v1035 = vtanh.pop %v642
        %v1036 = vtanh.pop %v691
        %v1037 = vtanh.pop %v740
        %v1038 = vtanh.pop %v789
        %v1039 = vtanh.pop %v838
        %v1040 = vtanh.pop %v887
        %v1041 = vtanh.pop %v936
        %v1042 = vtanh.pop %v985
        %v1043 = vtanh.pop %v644
        %v1044 = vtanh.pop %v693
        %v1045 = vtanh.pop %v742
        %v1046 = vtanh.pop %v791
        %v1047 = vtanh.pop %v840
        %v1048 = vtanh.pop %v889
        %v1049 = vtanh.pop %v938
        %v1050 = vtanh.pop %v987
        %v1051 = vtanh.pop %v647
        %v1052 = vtanh.pop %v696
        %v1053 = vtanh.pop %v745
        %v1054 = vtanh.pop %v794
        %v1055 = vtanh.pop %v843
        %v1056 = vtanh.pop %v892
        %v1057 = vtanh.pop %v941
        %v1058 = vtanh.pop %v990
        %v1059 = vtanh.pop %v649
        %v1060 = vtanh.pop %v698
        %v1061 = vtanh.pop %v747
        %v1062 = vtanh.pop %v796
        %v1063 = vtanh.pop %v845
        %v1064 = vtanh.pop %v894
        %v1065 = vtanh.pop %v943
        %v1066 = vtanh.pop %v992
        %v1067 = vtanh.pop %v652
        %v1068 = vtanh.pop %v701
        %v1069 = vtanh.pop %v750
        %v1070 = vtanh.pop %v799
        %v1071 = vtanh.pop %v848
        %v1072 = vtanh.pop %v897
        %v1073 = vtanh.pop %v946
        %v1074 = vtanh.pop %v995
        %v1075 = vtanh.pop %v654
        %v1076 = vtanh.pop %v703
        %v1077 = vtanh.pop %v752
        %v1078 = vtanh.pop %v801
        %v1079 = vtanh.pop %v850
        %v1080 = vtanh.pop %v899
        %v1081 = vtanh.pop %v948
        %v1082 = vtanh.pop %v997
        %v1083 = vtanh.pop %v657
        %v1084 = vtanh.pop %v706
        %v1085 = vtanh.pop %v755
        %v1086 = vtanh.pop %v804
        %v1087 = vtanh.pop %v853
        %v1088 = vtanh.pop %v902
        %v1089 = vtanh.pop %v951
        %v1090 = vtanh.pop %v1000
        %v1091 = vtanh.pop %v659
        %v1092 = vtanh.pop %v708
        %v1093 = vtanh.pop %v757
        %v1094 = vtanh.pop %v806
        %v1095 = vtanh.pop %v855
        %v1096 = vtanh.pop %v904
        %v1097 = vtanh.pop %v953
        %v1098 = vtanh.pop %v1002
        %v1099 = vtanh.pop %v662
        %v1100 = vtanh.pop %v711
        %v1101 = vtanh.pop %v760
        %v1102 = vtanh.pop %v809
        %v1103 = vtanh.pop %v858
        %v1104 = vtanh.pop %v907
        %v1105 = vtanh.pop %v956
        %v1106 = vtanh.pop %v1005
        %v1107 = vtanh.pop %v664
        %v1108 = vtanh.pop %v713
        %v1109 = vtanh.pop %v762
        %v1110 = vtanh.pop %v811
        %v1111 = vtanh.pop %v860
        %v1112 = vtanh.pop %v909
        %v1113 = vtanh.pop %v958
        %v1114 = vtanh.pop %v1007
        %v1115 = vtanh.pop %v667
        %v1116 = vtanh.pop %v716
        %v1117 = vtanh.pop %v765
        %v1118 = vtanh.pop %v814
        %v1119 = vtanh.pop %v863
        %v1120 = vtanh.pop %v912
        %v1121 = vtanh.pop %v961
        %v1122 = vtanh.pop %v1010
        %v1123 = vtanh.pop %v669
        %v1124 = vtanh.pop %v718
        %v1125 = vtanh.pop %v767
        %v1126 = vtanh.pop %v816
        %v1127 = vtanh.pop %v865
        %v1128 = vtanh.pop %v914
        %v1129 = vtanh.pop %v963
        %v1130 = vtanh.pop %v1012
        %v1131 = vtanh.pop %v672
        %v1132 = vtanh.pop %v721
        %v1133 = vtanh.pop %v770
        %v1134 = vtanh.pop %v819
        %v1135 = vtanh.pop %v868
        %v1136 = vtanh.pop %v917
        %v1137 = vtanh.pop %v966
        %v1138 = vtanh.pop %v1015
        %v1139 = vtanh.pop %v674
        %v1140 = vtanh.pop %v723
        %v1141 = vtanh.pop %v772
        %v1142 = vtanh.pop %v821
        %v1143 = vtanh.pop %v870
        %v1144 = vtanh.pop %v919
        %v1145 = vtanh.pop %v968
        %v1146 = vtanh.pop %v1017
        %v1147 = vpack.c.bf16 %v1020, %v1019
        %v1148 = vpack.c.bf16 %v1022, %v1021
        %v1149 = vpack.c.bf16 %v1024, %v1023
        %v1150 = vpack.c.bf16 %v1026, %v1025
        %v1151 = vpack.c.bf16 %v1028, %v1027
        %v1152 = vpack.c.bf16 %v1030, %v1029
        %v1153 = vpack.c.bf16 %v1032, %v1031
        %v1154 = vpack.c.bf16 %v1034, %v1033
        %v1155 = vpack.c.bf16 %v1036, %v1035
        %v1156 = vpack.c.bf16 %v1038, %v1037
        %v1157 = vpack.c.bf16 %v1040, %v1039
        %v1158 = vpack.c.bf16 %v1042, %v1041
        %v1159 = vpack.c.bf16 %v1044, %v1043
        %v1160 = vpack.c.bf16 %v1046, %v1045
        %v1161 = vpack.c.bf16 %v1048, %v1047
        %v1162 = vpack.c.bf16 %v1050, %v1049
        %v1163 = vpack.c.bf16 %v1052, %v1051
        %v1164 = vpack.c.bf16 %v1054, %v1053
        %v1165 = vpack.c.bf16 %v1056, %v1055
        %v1166 = vpack.c.bf16 %v1058, %v1057
        %v1167 = vpack.c.bf16 %v1060, %v1059
        %v1168 = vpack.c.bf16 %v1062, %v1061
        %v1169 = vpack.c.bf16 %v1064, %v1063
        %v1170 = vpack.c.bf16 %v1066, %v1065
        %v1171 = vpack.c.bf16 %v1068, %v1067
        %v1172 = vpack.c.bf16 %v1070, %v1069
        %v1173 = vpack.c.bf16 %v1072, %v1071
        %v1174 = vpack.c.bf16 %v1074, %v1073
        %v1175 = vpack.c.bf16 %v1076, %v1075
        %v1176 = vpack.c.bf16 %v1078, %v1077
        %v1177 = vpack.c.bf16 %v1080, %v1079
        %v1178 = vpack.c.bf16 %v1082, %v1081
        %v1179 = vpack.c.bf16 %v1084, %v1083
        %v1180 = vpack.c.bf16 %v1086, %v1085
        %v1181 = vpack.c.bf16 %v1088, %v1087
        %v1182 = vpack.c.bf16 %v1090, %v1089
        %v1183 = vpack.c.bf16 %v1092, %v1091
        %v1184 = vpack.c.bf16 %v1094, %v1093
        %v1185 = vpack.c.bf16 %v1096, %v1095
        %v1186 = vpack.c.bf16 %v1098, %v1097
        %v1187 = vpack.c.bf16 %v1100, %v1099
        %v1188 = vpack.c.bf16 %v1102, %v1101
        %v1189 = vpack.c.bf16 %v1104, %v1103
        %v1190 = vpack.c.bf16 %v1106, %v1105
        %v1191 = vpack.c.bf16 %v1108, %v1107
        %v1192 = vpack.c.bf16 %v1110, %v1109
        %v1193 = vpack.c.bf16 %v1112, %v1111
        %v1194 = vpack.c.bf16 %v1114, %v1113
        %v1195 = vpack.c.bf16 %v1116, %v1115
        %v1196 = vpack.c.bf16 %v1118, %v1117
        %v1197 = vpack.c.bf16 %v1120, %v1119
        %v1198 = vpack.c.bf16 %v1122, %v1121
        %v1199 = vpack.c.bf16 %v1124, %v1123
        %v1200 = vpack.c.bf16 %v1126, %v1125
        %v1201 = vpack.c.bf16 %v1128, %v1127
        %v1202 = vpack.c.bf16 %v1130, %v1129
        %v1203 = vpack.c.bf16 %v1132, %v1131
        %v1204 = vpack.c.bf16 %v1134, %v1133
        %v1205 = vpack.c.bf16 %v1136, %v1135
        %v1206 = vpack.c.bf16 %v1138, %v1137
        %v1207 = vpack.c.bf16 %v1140, %v1139
        %v1208 = vpack.c.bf16 %v1142, %v1141
        %v1209 = vpack.c.bf16 %v1144, %v1143
        %v1210 = vpack.c.bf16 %v1146, %v1145
        %v1211 = vld [vmem:[#allocation4] sm:$0xff]
        %v1212 = vld [vmem:[#allocation4 + $0x8] sm:$0xff]
        %v1213 = vld [vmem:[#allocation4 + $0x10] sm:$0xff]
        %v1214 = vld [vmem:[#allocation4 + $0x18] sm:$0xff]
        %v1215 = vld [vmem:[#allocation4 + $0x20] sm:$0xff]
        %v1216 = vld [vmem:[#allocation4 + $0x28] sm:$0xff]
        %v1217 = vld [vmem:[#allocation4 + $0x30] sm:$0xff]
        %v1218 = vld [vmem:[#allocation4 + $0x38] sm:$0xff]
        %v1219 = vld [vmem:[#allocation4 + $0x40] sm:$0xff]
        %v1220 = vld [vmem:[#allocation4 + $0x48] sm:$0xff]
        %v1221 = vld [vmem:[#allocation4 + $0x50] sm:$0xff]
        %v1222 = vld [vmem:[#allocation4 + $0x58] sm:$0xff]
        %v1223 = vld [vmem:[#allocation4 + $0x60] sm:$0xff]
        %v1224 = vld [vmem:[#allocation4 + $0x68] sm:$0xff]
        %v1225 = vld [vmem:[#allocation4 + $0x70] sm:$0xff]
        %v1226 = vld [vmem:[#allocation4 + $0x78] sm:$0xff]
        %v1227 = vld [vmem:[#allocation4 + $0x80] sm:$0xff]
        %v1228 = vld [vmem:[#allocation4 + $0x88] sm:$0xff]
        %v1229 = vld [vmem:[#allocation4 + $0x90] sm:$0xff]
        %v1230 = vld [vmem:[#allocation4 + $0x98] sm:$0xff]
        %v1231 = vld [vmem:[#allocation4 + $0xa0] sm:$0xff]
        %v1232 = vld [vmem:[#allocation4 + $0xa8] sm:$0xff]
        %v1233 = vld [vmem:[#allocation4 + $0xb0] sm:$0xff]
        %v1234 = vld [vmem:[#allocation4 + $0xb8] sm:$0xff]
        %v1235 = vld [vmem:[#allocation4 + $0xc0] sm:$0xff]
        %v1236 = vld [vmem:[#allocation4 + $0xc8] sm:$0xff]
        %v1237 = vld [vmem:[#allocation4 + $0xd0] sm:$0xff]
        %v1238 = vld [vmem:[#allocation4 + $0xd8] sm:$0xff]
        %v1239 = vld [vmem:[#allocation4 + $0xe0] sm:$0xff]
        %v1240 = vld [vmem:[#allocation4 + $0xe8] sm:$0xff]
        %v1241 = vld [vmem:[#allocation4 + $0xf0] sm:$0xff]
        %v1242 = vld [vmem:[#allocation4 + $0xf8] sm:$0xff]
        %v1243 = vld [vmem:[#allocation4 + $0x100] sm:$0xff]
        %v1244 = vld [vmem:[#allocation4 + $0x108] sm:$0xff]
        %v1245 = vld [vmem:[#allocation4 + $0x110] sm:$0xff]
        %v1246 = vld [vmem:[#allocation4 + $0x118] sm:$0xff]
        %v1247 = vld [vmem:[#allocation4 + $0x120] sm:$0xff]
        %v1248 = vld [vmem:[#allocation4 + $0x128] sm:$0xff]
        %v1249 = vld [vmem:[#allocation4 + $0x130] sm:$0xff]
        %v1250 = vld [vmem:[#allocation4 + $0x138] sm:$0xff]
        %v1251 = vld [vmem:[#allocation4 + $0x140] sm:$0xff]
        %v1252 = vld [vmem:[#allocation4 + $0x148] sm:$0xff]
        %v1253 = vld [vmem:[#allocation4 + $0x150] sm:$0xff]
        %v1254 = vld [vmem:[#allocation4 + $0x158] sm:$0xff]
        %v1255 = vld [vmem:[#allocation4 + $0x160] sm:$0xff]
        %v1256 = vld [vmem:[#allocation4 + $0x168] sm:$0xff]
        %v1257 = vld [vmem:[#allocation4 + $0x170] sm:$0xff]
        %v1258 = vld [vmem:[#allocation4 + $0x178] sm:$0xff]
        %v1259 = vld [vmem:[#allocation4 + $0x180] sm:$0xff]
        %v1260 = vld [vmem:[#allocation4 + $0x188] sm:$0xff]
        %v1261 = vld [vmem:[#allocation4 + $0x190] sm:$0xff]
        %v1262 = vld [vmem:[#allocation4 + $0x198] sm:$0xff]
        %v1263 = vld [vmem:[#allocation4 + $0x1a0] sm:$0xff]
        %v1264 = vld [vmem:[#allocation4 + $0x1a8] sm:$0xff]
        %v1265 = vld [vmem:[#allocation4 + $0x1b0] sm:$0xff]
        %v1266 = vld [vmem:[#allocation4 + $0x1b8] sm:$0xff]
        %v1267 = vld [vmem:[#allocation4 + $0x1c0] sm:$0xff]
        %v1268 = vld [vmem:[#allocation4 + $0x1c8] sm:$0xff]
        %v1269 = vld [vmem:[#allocation4 + $0x1d0] sm:$0xff]
        %v1270 = vld [vmem:[#allocation4 + $0x1d8] sm:$0xff]
        %v1271 = vld [vmem:[#allocation4 + $0x1e0] sm:$0xff]
        %v1272 = vld [vmem:[#allocation4 + $0x1e8] sm:$0xff]
        %v1273 = vld [vmem:[#allocation4 + $0x1f0] sm:$0xff]
        %v1274 = vld [vmem:[#allocation4 + $0x1f8] sm:$0xff]
        %v1275 = vld [vmem:[%s4] sm:$0x3]
        %v1277 = vperm.slane %v1275, 0
        %v1278 = vperm.slane %v1275, 1
        %v1313 = vunpack.c.l.b16 %v1147
        %v1314 = vunpack.c.h.b16 %v1147
        %v1315 = vunpack.c.l.b16 %v1148
        %v1316 = vunpack.c.h.b16 %v1148
        %v1317 = vunpack.c.l.b16 %v1151
        %v1318 = vunpack.c.h.b16 %v1151
        %v1319 = vunpack.c.l.b16 %v1152
        %v1320 = vunpack.c.h.b16 %v1152
        %v1321 = vunpack.c.l.b16 %v1155
        %v1322 = vunpack.c.h.b16 %v1155
        %v1323 = vunpack.c.l.b16 %v1156
        %v1324 = vunpack.c.h.b16 %v1156
        %v1325 = vunpack.c.l.b16 %v1159
        %v1326 = vunpack.c.h.b16 %v1159
        %v1327 = vunpack.c.l.b16 %v1160
        %v1328 = vunpack.c.h.b16 %v1160
        %v1329 = vunpack.c.l.b16 %v1163
        %v1330 = vunpack.c.h.b16 %v1163
        %v1331 = vunpack.c.l.b16 %v1164
        %v1332 = vunpack.c.h.b16 %v1164
        %v1333 = vunpack.c.l.b16 %v1167
        %v1334 = vunpack.c.h.b16 %v1167
        %v1335 = vunpack.c.l.b16 %v1168
        %v1336 = vunpack.c.h.b16 %v1168
        %v1337 = vunpack.c.l.b16 %v1171
        %v1338 = vunpack.c.h.b16 %v1171
        %v1339 = vunpack.c.l.b16 %v1172
        %v1340 = vunpack.c.h.b16 %v1172
        %v1341 = vunpack.c.l.b16 %v1175
        %v1342 = vunpack.c.h.b16 %v1175
        %v1343 = vunpack.c.l.b16 %v1176
        %v1344 = vunpack.c.h.b16 %v1176
        %v1345 = vunpack.c.l.b16 %v1179
        %v1346 = vunpack.c.h.b16 %v1179
        %v1347 = vunpack.c.l.b16 %v1180
        %v1348 = vunpack.c.h.b16 %v1180
        %v1349 = vunpack.c.l.b16 %v1183
        %v1350 = vunpack.c.h.b16 %v1183
        %v1351 = vunpack.c.l.b16 %v1184
        %v1352 = vunpack.c.h.b16 %v1184
        %v1353 = vunpack.c.l.b16 %v1187
        %v1354 = vunpack.c.h.b16 %v1187
        %v1355 = vunpack.c.l.b16 %v1188
        %v1356 = vunpack.c.h.b16 %v1188
        %v1357 = vunpack.c.l.b16 %v1191
        %v1358 = vunpack.c.h.b16 %v1191
        %v1359 = vunpack.c.l.b16 %v1192
        %v1360 = vunpack.c.h.b16 %v1192
        %v1361 = vunpack.c.l.b16 %v1195
        %v1362 = vunpack.c.h.b16 %v1195
        %v1363 = vunpack.c.l.b16 %v1196
        %v1364 = vunpack.c.h.b16 %v1196
        %v1365 = vunpack.c.l.b16 %v1199
        %v1366 = vunpack.c.h.b16 %v1199
        %v1367 = vunpack.c.l.b16 %v1200
        %v1368 = vunpack.c.h.b16 %v1200
        %v1369 = vunpack.c.l.b16 %v1203
        %v1370 = vunpack.c.h.b16 %v1203
        %v1371 = vunpack.c.l.b16 %v1204
        %v1372 = vunpack.c.h.b16 %v1204
        %v1373 = vunpack.c.l.b16 %v1207
        %v1374 = vunpack.c.h.b16 %v1207
        %v1375 = vunpack.c.l.b16 %v1208
        %v1376 = vunpack.c.h.b16 %v1208
        %v1377 = vpack.c.b16 %v1317, %v1313
        %v1378 = vpack.c.b16 %v1318, %v1314
        %v1379 = vpack.c.b16 %v1319, %v1315
        %v1380 = vpack.c.b16 %v1320, %v1316
        %v1381 = vpack.c.b16 %v1325, %v1321
        %v1382 = vpack.c.b16 %v1326, %v1322
        %v1383 = vpack.c.b16 %v1327, %v1323
        %v1384 = vpack.c.b16 %v1328, %v1324
        %v1385 = vpack.c.b16 %v1333, %v1329
        %v1386 = vpack.c.b16 %v1334, %v1330
        %v1387 = vpack.c.b16 %v1335, %v1331
        %v1388 = vpack.c.b16 %v1336, %v1332
        %v1389 = vpack.c.b16 %v1341, %v1337
        %v1390 = vpack.c.b16 %v1342, %v1338
        %v1391 = vpack.c.b16 %v1343, %v1339
        %v1392 = vpack.c.b16 %v1344, %v1340
        %v1393 = vpack.c.b16 %v1349, %v1345
        %v1394 = vpack.c.b16 %v1350, %v1346
        %v1395 = vpack.c.b16 %v1351, %v1347
        %v1396 = vpack.c.b16 %v1352, %v1348
        %v1397 = vpack.c.b16 %v1357, %v1353
        %v1398 = vpack.c.b16 %v1358, %v1354
        %v1399 = vpack.c.b16 %v1359, %v1355
        %v1400 = vpack.c.b16 %v1360, %v1356
        %v1401 = vpack.c.b16 %v1365, %v1361
        %v1402 = vpack.c.b16 %v1366, %v1362
        %v1403 = vpack.c.b16 %v1367, %v1363
        %v1404 = vpack.c.b16 %v1368, %v1364
        %v1405 = vpack.c.b16 %v1373, %v1369
        %v1406 = vpack.c.b16 %v1374, %v1370
        %v1407 = vpack.c.b16 %v1375, %v1371
        %v1408 = vpack.c.b16 %v1376, %v1372
        %v1505 = vunpack.c.l.b16 %v1211
        %v1506 = vunpack.c.h.b16 %v1211
        %v1507 = vunpack.c.l.b16 %v1212
        %v1508 = vunpack.c.h.b16 %v1212
        %v1509 = vunpack.c.l.b16 %v1213
        %v1510 = vunpack.c.h.b16 %v1213
        %v1511 = vunpack.c.l.b16 %v1214
        %v1512 = vunpack.c.h.b16 %v1214
        %v1513 = vunpack.c.l.b16 %v1215
        %v1514 = vunpack.c.h.b16 %v1215
        %v1515 = vunpack.c.l.b16 %v1216
        %v1516 = vunpack.c.h.b16 %v1216
        %v1517 = vunpack.c.l.b16 %v1217
        %v1518 = vunpack.c.h.b16 %v1217
        %v1519 = vunpack.c.l.b16 %v1218
        %v1520 = vunpack.c.h.b16 %v1218
        %v1521 = vunpack.c.l.b16 %v1219
        %v1522 = vunpack.c.h.b16 %v1219
        %v1523 = vunpack.c.l.b16 %v1220
        %v1524 = vunpack.c.h.b16 %v1220
        %v1525 = vunpack.c.l.b16 %v1221
        %v1526 = vunpack.c.h.b16 %v1221
        %v1527 = vunpack.c.l.b16 %v1222
        %v1528 = vunpack.c.h.b16 %v1222
        %v1529 = vunpack.c.l.b16 %v1223
        %v1530 = vunpack.c.h.b16 %v1223
        %v1531 = vunpack.c.l.b16 %v1224
        %v1532 = vunpack.c.h.b16 %v1224
        %v1533 = vunpack.c.l.b16 %v1225
        %v1534 = vunpack.c.h.b16 %v1225
        %v1535 = vunpack.c.l.b16 %v1226
        %v1536 = vunpack.c.h.b16 %v1226
        %v1537 = vunpack.c.l.b16 %v1227
        %v1538 = vunpack.c.h.b16 %v1227
        %v1539 = vunpack.c.l.b16 %v1228
        %v1540 = vunpack.c.h.b16 %v1228
        %v1541 = vunpack.c.l.b16 %v1229
        %v1542 = vunpack.c.h.b16 %v1229
        %v1543 = vunpack.c.l.b16 %v1230
        %v1544 = vunpack.c.h.b16 %v1230
        %v1545 = vunpack.c.l.b16 %v1231
        %v1546 = vunpack.c.h.b16 %v1231
        %v1547 = vunpack.c.l.b16 %v1232
        %v1548 = vunpack.c.h.b16 %v1232
        %v1549 = vunpack.c.l.b16 %v1233
        %v1550 = vunpack.c.h.b16 %v1233
        %v1551 = vunpack.c.l.b16 %v1234
        %v1552 = vunpack.c.h.b16 %v1234
        %v1553 = vunpack.c.l.b16 %v1235
        %v1554 = vunpack.c.h.b16 %v1235
        %v1555 = vunpack.c.l.b16 %v1236
        %v1556 = vunpack.c.h.b16 %v1236
        %v1557 = vunpack.c.l.b16 %v1237
        %v1558 = vunpack.c.h.b16 %v1237
        %v1559 = vunpack.c.l.b16 %v1238
        %v1560 = vunpack.c.h.b16 %v1238
        %v1561 = vunpack.c.l.b16 %v1239
        %v1562 = vunpack.c.h.b16 %v1239
        %v1563 = vunpack.c.l.b16 %v1240
        %v1564 = vunpack.c.h.b16 %v1240
        %v1565 = vunpack.c.l.b16 %v1241
        %v1566 = vunpack.c.h.b16 %v1241
        %v1567 = vunpack.c.l.b16 %v1242
        %v1568 = vunpack.c.h.b16 %v1242
        %v1569 = vunpack.c.l.b16 %v1243
        %v1570 = vunpack.c.h.b16 %v1243
        %v1571 = vunpack.c.l.b16 %v1244
        %v1572 = vunpack.c.h.b16 %v1244
        %v1573 = vunpack.c.l.b16 %v1245
        %v1574 = vunpack.c.h.b16 %v1245
        %v1575 = vunpack.c.l.b16 %v1246
        %v1576 = vunpack.c.h.b16 %v1246
        %v1577 = vunpack.c.l.b16 %v1247
        %v1578 = vunpack.c.h.b16 %v1247
        %v1579 = vunpack.c.l.b16 %v1248
        %v1580 = vunpack.c.h.b16 %v1248
        %v1581 = vunpack.c.l.b16 %v1249
        %v1582 = vunpack.c.h.b16 %v1249
        %v1583 = vunpack.c.l.b16 %v1250
        %v1584 = vunpack.c.h.b16 %v1250
        %v1585 = vunpack.c.l.b16 %v1251
        %v1586 = vunpack.c.h.b16 %v1251
        %v1587 = vunpack.c.l.b16 %v1252
        %v1588 = vunpack.c.h.b16 %v1252
        %v1589 = vunpack.c.l.b16 %v1253
        %v1590 = vunpack.c.h.b16 %v1253
        %v1591 = vunpack.c.l.b16 %v1254
        %v1592 = vunpack.c.h.b16 %v1254
        %v1593 = vunpack.c.l.b16 %v1255
        %v1594 = vunpack.c.h.b16 %v1255
        %v1595 = vunpack.c.l.b16 %v1256
        %v1596 = vunpack.c.h.b16 %v1256
        %v1597 = vunpack.c.l.b16 %v1257
        %v1598 = vunpack.c.h.b16 %v1257
        %v1599 = vunpack.c.l.b16 %v1258
        %v1600 = vunpack.c.h.b16 %v1258
        %v1601 = vunpack.c.l.b16 %v1259
        %v1602 = vunpack.c.h.b16 %v1259
        %v1603 = vunpack.c.l.b16 %v1260
        %v1604 = vunpack.c.h.b16 %v1260
        %v1605 = vunpack.c.l.b16 %v1261
        %v1606 = vunpack.c.h.b16 %v1261
        %v1607 = vunpack.c.l.b16 %v1262
        %v1608 = vunpack.c.h.b16 %v1262
        %v1609 = vunpack.c.l.b16 %v1263
        %v1610 = vunpack.c.h.b16 %v1263
        %v1611 = vunpack.c.l.b16 %v1264
        %v1612 = vunpack.c.h.b16 %v1264
        %v1613 = vunpack.c.l.b16 %v1265
        %v1614 = vunpack.c.h.b16 %v1265
        %v1615 = vunpack.c.l.b16 %v1266
        %v1616 = vunpack.c.h.b16 %v1266
        %v1617 = vunpack.c.l.b16 %v1267
        %v1618 = vunpack.c.h.b16 %v1267
        %v1619 = vunpack.c.l.b16 %v1268
        %v1620 = vunpack.c.h.b16 %v1268
        %v1621 = vunpack.c.l.b16 %v1269
        %v1622 = vunpack.c.h.b16 %v1269
        %v1623 = vunpack.c.l.b16 %v1270
        %v1624 = vunpack.c.h.b16 %v1270
        %v1625 = vunpack.c.l.b16 %v1271
        %v1626 = vunpack.c.h.b16 %v1271
        %v1627 = vunpack.c.l.b16 %v1272
        %v1628 = vunpack.c.h.b16 %v1272
        %v1629 = vunpack.c.l.b16 %v1273
        %v1630 = vunpack.c.h.b16 %v1273
        %v1631 = vunpack.c.l.b16 %v1274
        %v1632 = vunpack.c.h.b16 %v1274
        %v1633 = vpack.c.b16 %v1507, %v1505
        %v1634 = vpack.c.b16 %v1508, %v1506
        %v1635 = vpack.c.b16 %v1511, %v1509
        %v1636 = vpack.c.b16 %v1512, %v1510
        %v1637 = vpack.c.b16 %v1515, %v1513
        %v1638 = vpack.c.b16 %v1516, %v1514
        %v1639 = vpack.c.b16 %v1519, %v1517
        %v1640 = vpack.c.b16 %v1520, %v1518
        %v1641 = vpack.c.b16 %v1523, %v1521
        %v1642 = vpack.c.b16 %v1524, %v1522
        %v1643 = vpack.c.b16 %v1527, %v1525
        %v1644 = vpack.c.b16 %v1528, %v1526
        %v1645 = vpack.c.b16 %v1531, %v1529
        %v1646 = vpack.c.b16 %v1532, %v1530
        %v1647 = vpack.c.b16 %v1535, %v1533
        %v1648 = vpack.c.b16 %v1536, %v1534
        %v1649 = vpack.c.b16 %v1539, %v1537
        %v1650 = vpack.c.b16 %v1540, %v1538
        %v1651 = vpack.c.b16 %v1543, %v1541
        %v1652 = vpack.c.b16 %v1544, %v1542
        %v1653 = vpack.c.b16 %v1547, %v1545
        %v1654 = vpack.c.b16 %v1548, %v1546
        %v1655 = vpack.c.b16 %v1551, %v1549
        %v1656 = vpack.c.b16 %v1552, %v1550
        %v1657 = vpack.c.b16 %v1555, %v1553
        %v1658 = vpack.c.b16 %v1556, %v1554
        %v1659 = vpack.c.b16 %v1559, %v1557
        %v1660 = vpack.c.b16 %v1560, %v1558
        %v1661 = vpack.c.b16 %v1563, %v1561
        %v1662 = vpack.c.b16 %v1564, %v1562
        %v1663 = vpack.c.b16 %v1567, %v1565
        %v1664 = vpack.c.b16 %v1568, %v1566
        %v1665 = vpack.c.b16 %v1571, %v1569
        %v1666 = vpack.c.b16 %v1572, %v1570
        %v1667 = vpack.c.b16 %v1575, %v1573
        %v1668 = vpack.c.b16 %v1576, %v1574
        %v1669 = vpack.c.b16 %v1579, %v1577
        %v1670 = vpack.c.b16 %v1580, %v1578
        %v1671 = vpack.c.b16 %v1583, %v1581
        %v1672 = vpack.c.b16 %v1584, %v1582
        %v1673 = vpack.c.b16 %v1587, %v1585
        %v1674 = vpack.c.b16 %v1588, %v1586
        %v1675 = vpack.c.b16 %v1591, %v1589
        %v1676 = vpack.c.b16 %v1592, %v1590
        %v1677 = vpack.c.b16 %v1595, %v1593
        %v1678 = vpack.c.b16 %v1596, %v1594
        %v1679 = vpack.c.b16 %v1599, %v1597
        %v1680 = vpack.c.b16 %v1600, %v1598
        %v1681 = vpack.c.b16 %v1603, %v1601
        %v1682 = vpack.c.b16 %v1604, %v1602
        %v1683 = vpack.c.b16 %v1607, %v1605
        %v1684 = vpack.c.b16 %v1608, %v1606
        %v1685 = vpack.c.b16 %v1611, %v1609
        %v1686 = vpack.c.b16 %v1612, %v1610
        %v1687 = vpack.c.b16 %v1615, %v1613
        %v1688 = vpack.c.b16 %v1616, %v1614
        %v1689 = vpack.c.b16 %v1619, %v1617
        %v1690 = vpack.c.b16 %v1620, %v1618
        %v1691 = vpack.c.b16 %v1623, %v1621
        %v1692 = vpack.c.b16 %v1624, %v1622
        %v1693 = vpack.c.b16 %v1627, %v1625
        %v1694 = vpack.c.b16 %v1628, %v1626
        %v1695 = vpack.c.b16 %v1631, %v1629
        %v1696 = vpack.c.b16 %v1632, %v1630
        %1761 = vmatpush.bf16.msra.mxu0 %v1647
        %1762 = vmatpush.bf16.msra.mxu0 %v1645
        %1763 = vmatpush.bf16.msra.mxu0 %v1643
        %1764 = vmatpush.bf16.msra.mxu0 %v1641
        %1765 = vmatpush.bf16.msra.mxu0 %v1639
        %1766 = vmatpush.bf16.msra.mxu0 %v1637
        %1767 = vmatpush.bf16.msra.mxu0 %v1635
        %1768 = vmatpush.bf16.msra.mxu0 %v1633
        %1769 = vmatmul.bf16.gmra.mxu0 %v1377
        %v1770 = vpop.f32.mrf.mxu0
        %v1771 = vadd.f32 %v1277, %v1770
        %v1772 = vpop.f32.mrf.mxu0
        %v1773 = vadd.f32 %v1277, %v1772
        %1774 = vmatmul.bf16.gmra.mxu0 %v1381
        %v1775 = vpop.f32.mrf.mxu0
        %v1776 = vadd.f32 %v1277, %v1775
        %v1777 = vpop.f32.mrf.mxu0
        %v1778 = vadd.f32 %v1277, %v1777
        %1779 = vmatmul.bf16.gmra.mxu0 %v1385
        %v1780 = vpop.f32.mrf.mxu0
        %v1781 = vadd.f32 %v1277, %v1780
        %v1782 = vpop.f32.mrf.mxu0
        %v1783 = vadd.f32 %v1277, %v1782
        %1784 = vmatmul.bf16.gmra.mxu0 %v1389
        %v1785 = vpop.f32.mrf.mxu0
        %v1786 = vadd.f32 %v1277, %v1785
        %v1787 = vpop.f32.mrf.mxu0
        %v1788 = vadd.f32 %v1277, %v1787
        %1789 = vmatmul.bf16.gmra.mxu0 %v1393
        %v1790 = vpop.f32.mrf.mxu0
        %v1791 = vadd.f32 %v1277, %v1790
        %v1792 = vpop.f32.mrf.mxu0
        %v1793 = vadd.f32 %v1277, %v1792
        %1794 = vmatmul.bf16.gmra.mxu0 %v1397
        %v1795 = vpop.f32.mrf.mxu0
        %v1796 = vadd.f32 %v1277, %v1795
        %v1797 = vpop.f32.mrf.mxu0
        %v1798 = vadd.f32 %v1277, %v1797
        %1799 = vmatmul.bf16.gmra.mxu0 %v1401
        %v1800 = vpop.f32.mrf.mxu0
        %v1801 = vadd.f32 %v1277, %v1800
        %v1802 = vpop.f32.mrf.mxu0
        %v1803 = vadd.f32 %v1277, %v1802
        %1804 = vmatmul.bf16.gmra.mxu0 %v1405
        %v1805 = vpop.f32.mrf.mxu0
        %v1806 = vadd.f32 %v1277, %v1805
        %v1807 = vpop.f32.mrf.mxu0
        %v1808 = vadd.f32 %v1277, %v1807
        %1809 = vdwg.mxu0
        %1810 = vmatpush.bf16.msra.mxu0 %v1663
        %1811 = vmatpush.bf16.msra.mxu0 %v1661
        %1812 = vmatpush.bf16.msra.mxu0 %v1659
        %1813 = vmatpush.bf16.msra.mxu0 %v1657
        %1814 = vmatpush.bf16.msra.mxu0 %v1655
        %1815 = vmatpush.bf16.msra.mxu0 %v1653
        %1816 = vmatpush.bf16.msra.mxu0 %v1651
        %1817 = vmatpush.bf16.msra.mxu0 %v1649
        %1818 = vmatmul.bf16.gmra.mxu0 %v1378
        %v1819 = vpop.f32.mrf.mxu0
        %v1820 = vadd.f32 %v1771, %v1819
        %v1821 = vpop.f32.mrf.mxu0
        %v1822 = vadd.f32 %v1773, %v1821
        %1823 = vmatmul.bf16.gmra.mxu0 %v1382
        %v1824 = vpop.f32.mrf.mxu0
        %v1825 = vadd.f32 %v1776, %v1824
        %v1826 = vpop.f32.mrf.mxu0
        %v1827 = vadd.f32 %v1778, %v1826
        %1828 = vmatmul.bf16.gmra.mxu0 %v1386
        %v1829 = vpop.f32.mrf.mxu0
        %v1830 = vadd.f32 %v1781, %v1829
        %v1831 = vpop.f32.mrf.mxu0
        %v1832 = vadd.f32 %v1783, %v1831
        %1833 = vmatmul.bf16.gmra.mxu0 %v1390
        %v1834 = vpop.f32.mrf.mxu0
        %v1835 = vadd.f32 %v1786, %v1834
        %v1836 = vpop.f32.mrf.mxu0
        %v1837 = vadd.f32 %v1788, %v1836
        %1838 = vmatmul.bf16.gmra.mxu0 %v1394
        %v1839 = vpop.f32.mrf.mxu0
        %v1840 = vadd.f32 %v1791, %v1839
        %v1841 = vpop.f32.mrf.mxu0
        %v1842 = vadd.f32 %v1793, %v1841
        %1843 = vmatmul.bf16.gmra.mxu0 %v1398
        %v1844 = vpop.f32.mrf.mxu0
        %v1845 = vadd.f32 %v1796, %v1844
        %v1846 = vpop.f32.mrf.mxu0
        %v1847 = vadd.f32 %v1798, %v1846
        %1848 = vmatmul.bf16.gmra.mxu0 %v1402
        %v1849 = vpop.f32.mrf.mxu0
        %v1850 = vadd.f32 %v1801, %v1849
        %v1851 = vpop.f32.mrf.mxu0
        %v1852 = vadd.f32 %v1803, %v1851
        %1853 = vmatmul.bf16.gmra.mxu0 %v1406
        %v1854 = vpop.f32.mrf.mxu0
        %v1855 = vadd.f32 %v1806, %v1854
        %v1856 = vpop.f32.mrf.mxu0
        %v1857 = vadd.f32 %v1808, %v1856
        %1858 = vdwg.mxu0
        %1859 = vmatpush.bf16.msra.mxu0 %v1679
        %1860 = vmatpush.bf16.msra.mxu0 %v1677
        %1861 = vmatpush.bf16.msra.mxu0 %v1675
        %1862 = vmatpush.bf16.msra.mxu0 %v1673
        %1863 = vmatpush.bf16.msra.mxu0 %v1671
        %1864 = vmatpush.bf16.msra.mxu0 %v1669
        %1865 = vmatpush.bf16.msra.mxu0 %v1667
        %1866 = vmatpush.bf16.msra.mxu0 %v1665
        %1867 = vmatmul.bf16.gmra.mxu0 %v1379
        %v1868 = vpop.f32.mrf.mxu0
        %v1869 = vadd.f32 %v1820, %v1868
        %v1870 = vpop.f32.mrf.mxu0
        %v1871 = vadd.f32 %v1822, %v1870
        %1872 = vmatmul.bf16.gmra.mxu0 %v1383
        %v1873 = vpop.f32.mrf.mxu0
        %v1874 = vadd.f32 %v1825, %v1873
        %v1875 = vpop.f32.mrf.mxu0
        %v1876 = vadd.f32 %v1827, %v1875
        %1877 = vmatmul.bf16.gmra.mxu0 %v1387
        %v1878 = vpop.f32.mrf.mxu0
        %v1879 = vadd.f32 %v1830, %v1878
        %v1880 = vpop.f32.mrf.mxu0
        %v1881 = vadd.f32 %v1832, %v1880
        %1882 = vmatmul.bf16.gmra.mxu0 %v1391
        %v1883 = vpop.f32.mrf.mxu0
        %v1884 = vadd.f32 %v1835, %v1883
        %v1885 = vpop.f32.mrf.mxu0
        %v1886 = vadd.f32 %v1837, %v1885
        %1887 = vmatmul.bf16.gmra.mxu0 %v1395
        %v1888 = vpop.f32.mrf.mxu0
        %v1889 = vadd.f32 %v1840, %v1888
        %v1890 = vpop.f32.mrf.mxu0
        %v1891 = vadd.f32 %v1842, %v1890
        %1892 = vmatmul.bf16.gmra.mxu0 %v1399
        %v1893 = vpop.f32.mrf.mxu0
        %v1894 = vadd.f32 %v1845, %v1893
        %v1895 = vpop.f32.mrf.mxu0
        %v1896 = vadd.f32 %v1847, %v1895
        %1897 = vmatmul.bf16.gmra.mxu0 %v1403
        %v1898 = vpop.f32.mrf.mxu0
        %v1899 = vadd.f32 %v1850, %v1898
        %v1900 = vpop.f32.mrf.mxu0
        %v1901 = vadd.f32 %v1852, %v1900
        %1902 = vmatmul.bf16.gmra.mxu0 %v1407
        %v1903 = vpop.f32.mrf.mxu0
        %v1904 = vadd.f32 %v1855, %v1903
        %v1905 = vpop.f32.mrf.mxu0
        %v1906 = vadd.f32 %v1857, %v1905
        %1907 = vdwg.mxu0
        %1908 = vmatpush.bf16.msra.mxu0 %v1695
        %1909 = vmatpush.bf16.msra.mxu0 %v1693
        %1910 = vmatpush.bf16.msra.mxu0 %v1691
        %1911 = vmatpush.bf16.msra.mxu0 %v1689
        %1912 = vmatpush.bf16.msra.mxu0 %v1687
        %1913 = vmatpush.bf16.msra.mxu0 %v1685
        %1914 = vmatpush.bf16.msra.mxu0 %v1683
        %1915 = vmatpush.bf16.msra.mxu0 %v1681
        %1916 = vmatmul.bf16.gmra.mxu0 %v1380
        %v1917 = vpop.f32.mrf.mxu0
        %v1918 = vadd.f32 %v1869, %v1917
        %v1919 = vpop.f32.mrf.mxu0
        %v1920 = vadd.f32 %v1871, %v1919
        %1921 = vmatmul.bf16.gmra.mxu0 %v1384
        %v1922 = vpop.f32.mrf.mxu0
        %v1923 = vadd.f32 %v1874, %v1922
        %v1924 = vpop.f32.mrf.mxu0
        %v1925 = vadd.f32 %v1876, %v1924
        %1926 = vmatmul.bf16.gmra.mxu0 %v1388
        %v1927 = vpop.f32.mrf.mxu0
        %v1928 = vadd.f32 %v1879, %v1927
        %v1929 = vpop.f32.mrf.mxu0
        %v1930 = vadd.f32 %v1881, %v1929
        %1931 = vmatmul.bf16.gmra.mxu0 %v1392
        %v1932 = vpop.f32.mrf.mxu0
        %v1933 = vadd.f32 %v1884, %v1932
        %v1934 = vpop.f32.mrf.mxu0
        %v1935 = vadd.f32 %v1886, %v1934
        %1936 = vmatmul.bf16.gmra.mxu0 %v1396
        %v1937 = vpop.f32.mrf.mxu0
        %v1938 = vadd.f32 %v1889, %v1937
        %v1939 = vpop.f32.mrf.mxu0
        %v1940 = vadd.f32 %v1891, %v1939
        %1941 = vmatmul.bf16.gmra.mxu0 %v1400
        %v1942 = vpop.f32.mrf.mxu0
        %v1943 = vadd.f32 %v1894, %v1942
        %v1944 = vpop.f32.mrf.mxu0
        %v1945 = vadd.f32 %v1896, %v1944
        %1946 = vmatmul.bf16.gmra.mxu0 %v1404
        %v1947 = vpop.f32.mrf.mxu0
        %v1948 = vadd.f32 %v1899, %v1947
        %v1949 = vpop.f32.mrf.mxu0
        %v1950 = vadd.f32 %v1901, %v1949
        %1951 = vmatmul.bf16.gmra.mxu0 %v1408
        %v1952 = vpop.f32.mrf.mxu0
        %v1953 = vadd.f32 %v1904, %v1952
        %v1954 = vpop.f32.mrf.mxu0
        %v1955 = vadd.f32 %v1906, %v1954
        %1956 = vdwg.mxu0
        %1957 = vmatpush.bf16.msra.mxu0 %v1648
        %1958 = vmatpush.bf16.msra.mxu0 %v1646
        %1959 = vmatpush.bf16.msra.mxu0 %v1644
        %1960 = vmatpush.bf16.msra.mxu0 %v1642
        %1961 = vmatpush.bf16.msra.mxu0 %v1640
        %1962 = vmatpush.bf16.msra.mxu0 %v1638
        %1963 = vmatpush.bf16.msra.mxu0 %v1636
        %1964 = vmatpush.bf16.msra.mxu0 %v1634
        %1965 = vmatmul.bf16.gmra.mxu0 %v1377
        %v1966 = vpop.f32.mrf.mxu0
        %v1967 = vadd.f32 %v1278, %v1966
        %v1968 = vpop.f32.mrf.mxu0
        %v1969 = vadd.f32 %v1278, %v1968
        %1970 = vmatmul.bf16.gmra.mxu0 %v1381
        %v1971 = vpop.f32.mrf.mxu0
        %v1972 = vadd.f32 %v1278, %v1971
        %v1973 = vpop.f32.mrf.mxu0
        %v1974 = vadd.f32 %v1278, %v1973
        %1975 = vmatmul.bf16.gmra.mxu0 %v1385
        %v1976 = vpop.f32.mrf.mxu0
        %v1977 = vadd.f32 %v1278, %v1976
        %v1978 = vpop.f32.mrf.mxu0
        %v1979 = vadd.f32 %v1278, %v1978
        %1980 = vmatmul.bf16.gmra.mxu0 %v1389
        %v1981 = vpop.f32.mrf.mxu0
        %v1982 = vadd.f32 %v1278, %v1981
        %v1983 = vpop.f32.mrf.mxu0
        %v1984 = vadd.f32 %v1278, %v1983
        %1985 = vmatmul.bf16.gmra.mxu0 %v1393
        %v1986 = vpop.f32.mrf.mxu0
        %v1987 = vadd.f32 %v1278, %v1986
        %v1988 = vpop.f32.mrf.mxu0
        %v1989 = vadd.f32 %v1278, %v1988
        %1990 = vmatmul.bf16.gmra.mxu0 %v1397
        %v1991 = vpop.f32.mrf.mxu0
        %v1992 = vadd.f32 %v1278, %v1991
        %v1993 = vpop.f32.mrf.mxu0
        %v1994 = vadd.f32 %v1278, %v1993
        %1995 = vmatmul.bf16.gmra.mxu0 %v1401
        %v1996 = vpop.f32.mrf.mxu0
        %v1997 = vadd.f32 %v1278, %v1996
        %v1998 = vpop.f32.mrf.mxu0
        %v1999 = vadd.f32 %v1278, %v1998
        %2000 = vmatmul.bf16.gmra.mxu0 %v1405
        %v2001 = vpop.f32.mrf.mxu0
        %v2002 = vadd.f32 %v1278, %v2001
        %v2003 = vpop.f32.mrf.mxu0
        %v2004 = vadd.f32 %v1278, %v2003
        %2005 = vdwg.mxu0
        %2006 = vmatpush.bf16.msra.mxu0 %v1664
        %2007 = vmatpush.bf16.msra.mxu0 %v1662
        %2008 = vmatpush.bf16.msra.mxu0 %v1660
        %2009 = vmatpush.bf16.msra.mxu0 %v1658
        %2010 = vmatpush.bf16.msra.mxu0 %v1656
        %2011 = vmatpush.bf16.msra.mxu0 %v1654
        %2012 = vmatpush.bf16.msra.mxu0 %v1652
        %2013 = vmatpush.bf16.msra.mxu0 %v1650
        %2014 = vmatmul.bf16.gmra.mxu0 %v1378
        %v2015 = vpop.f32.mrf.mxu0
        %v2016 = vadd.f32 %v1967, %v2015
        %v2017 = vpop.f32.mrf.mxu0
        %v2018 = vadd.f32 %v1969, %v2017
        %2019 = vmatmul.bf16.gmra.mxu0 %v1382
        %v2020 = vpop.f32.mrf.mxu0
        %v2021 = vadd.f32 %v1972, %v2020
        %v2022 = vpop.f32.mrf.mxu0
        %v2023 = vadd.f32 %v1974, %v2022
        %2024 = vmatmul.bf16.gmra.mxu0 %v1386
        %v2025 = vpop.f32.mrf.mxu0
        %v2026 = vadd.f32 %v1977, %v2025
        %v2027 = vpop.f32.mrf.mxu0
        %v2028 = vadd.f32 %v1979, %v2027
        %2029 = vmatmul.bf16.gmra.mxu0 %v1390
        %v2030 = vpop.f32.mrf.mxu0
        %v2031 = vadd.f32 %v1982, %v2030
        %v2032 = vpop.f32.mrf.mxu0
        %v2033 = vadd.f32 %v1984, %v2032
        %2034 = vmatmul.bf16.gmra.mxu0 %v1394
        %v2035 = vpop.f32.mrf.mxu0
        %v2036 = vadd.f32 %v1987, %v2035
        %v2037 = vpop.f32.mrf.mxu0
        %v2038 = vadd.f32 %v1989, %v2037
        %2039 = vmatmul.bf16.gmra.mxu0 %v1398
        %v2040 = vpop.f32.mrf.mxu0
        %v2041 = vadd.f32 %v1992, %v2040
        %v2042 = vpop.f32.mrf.mxu0
        %v2043 = vadd.f32 %v1994, %v2042
        %2044 = vmatmul.bf16.gmra.mxu0 %v1402
        %v2045 = vpop.f32.mrf.mxu0
        %v2046 = vadd.f32 %v1997, %v2045
        %v2047 = vpop.f32.mrf.mxu0
        %v2048 = vadd.f32 %v1999, %v2047
        %2049 = vmatmul.bf16.gmra.mxu0 %v1406
        %v2050 = vpop.f32.mrf.mxu0
        %v2051 = vadd.f32 %v2002, %v2050
        %v2052 = vpop.f32.mrf.mxu0
        %v2053 = vadd.f32 %v2004, %v2052
        %2054 = vdwg.mxu0
        %2055 = vmatpush.bf16.msra.mxu0 %v1680
        %2056 = vmatpush.bf16.msra.mxu0 %v1678
        %2057 = vmatpush.bf16.msra.mxu0 %v1676
        %2058 = vmatpush.bf16.msra.mxu0 %v1674
        %2059 = vmatpush.bf16.msra.mxu0 %v1672
        %2060 = vmatpush.bf16.msra.mxu0 %v1670
        %2061 = vmatpush.bf16.msra.mxu0 %v1668
        %2062 = vmatpush.bf16.msra.mxu0 %v1666
        %2063 = vmatmul.bf16.gmra.mxu0 %v1379
        %v2064 = vpop.f32.mrf.mxu0
        %v2065 = vadd.f32 %v2016, %v2064
        %v2066 = vpop.f32.mrf.mxu0
        %v2067 = vadd.f32 %v2018, %v2066
        %2068 = vmatmul.bf16.gmra.mxu0 %v1383
        %v2069 = vpop.f32.mrf.mxu0
        %v2070 = vadd.f32 %v2021, %v2069
        %v2071 = vpop.f32.mrf.mxu0
        %v2072 = vadd.f32 %v2023, %v2071
        %2073 = vmatmul.bf16.gmra.mxu0 %v1387
        %v2074 = vpop.f32.mrf.mxu0
        %v2075 = vadd.f32 %v2026, %v2074
        %v2076 = vpop.f32.mrf.mxu0
        %v2077 = vadd.f32 %v2028, %v2076
        %2078 = vmatmul.bf16.gmra.mxu0 %v1391
        %v2079 = vpop.f32.mrf.mxu0
        %v2080 = vadd.f32 %v2031, %v2079
        %v2081 = vpop.f32.mrf.mxu0
        %v2082 = vadd.f32 %v2033, %v2081
        %2083 = vmatmul.bf16.gmra.mxu0 %v1395
        %v2084 = vpop.f32.mrf.mxu0
        %v2085 = vadd.f32 %v2036, %v2084
        %v2086 = vpop.f32.mrf.mxu0
        %v2087 = vadd.f32 %v2038, %v2086
        %2088 = vmatmul.bf16.gmra.mxu0 %v1399
        %v2089 = vpop.f32.mrf.mxu0
        %v2090 = vadd.f32 %v2041, %v2089
        %v2091 = vpop.f32.mrf.mxu0
        %v2092 = vadd.f32 %v2043, %v2091
        %2093 = vmatmul.bf16.gmra.mxu0 %v1403
        %v2094 = vpop.f32.mrf.mxu0
        %v2095 = vadd.f32 %v2046, %v2094
        %v2096 = vpop.f32.mrf.mxu0
        %v2097 = vadd.f32 %v2048, %v2096
        %2098 = vmatmul.bf16.gmra.mxu0 %v1407
        %v2099 = vpop.f32.mrf.mxu0
        %v2100 = vadd.f32 %v2051, %v2099
        %v2101 = vpop.f32.mrf.mxu0
        %v2102 = vadd.f32 %v2053, %v2101
        %2103 = vdwg.mxu0
        %2104 = vmatpush.bf16.msra.mxu0 %v1696
        %2105 = vmatpush.bf16.msra.mxu0 %v1694
        %2106 = vmatpush.bf16.msra.mxu0 %v1692
        %2107 = vmatpush.bf16.msra.mxu0 %v1690
        %2108 = vmatpush.bf16.msra.mxu0 %v1688
        %2109 = vmatpush.bf16.msra.mxu0 %v1686
        %2110 = vmatpush.bf16.msra.mxu0 %v1684
        %2111 = vmatpush.bf16.msra.mxu0 %v1682
        %2112 = vmatmul.bf16.gmra.mxu0 %v1380
        %v2113 = vpop.f32.mrf.mxu0
        %v2114 = vadd.f32 %v2065, %v2113
        %v2115 = vpop.f32.mrf.mxu0
        %v2116 = vadd.f32 %v2067, %v2115
        %2117 = vmatmul.bf16.gmra.mxu0 %v1384
        %v2118 = vpop.f32.mrf.mxu0
        %v2119 = vadd.f32 %v2070, %v2118
        %v2120 = vpop.f32.mrf.mxu0
        %v2121 = vadd.f32 %v2072, %v2120
        %2122 = vmatmul.bf16.gmra.mxu0 %v1388
        %v2123 = vpop.f32.mrf.mxu0
        %v2124 = vadd.f32 %v2075, %v2123
        %v2125 = vpop.f32.mrf.mxu0
        %v2126 = vadd.f32 %v2077, %v2125
        %2127 = vmatmul.bf16.gmra.mxu0 %v1392
        %v2128 = vpop.f32.mrf.mxu0
        %v2129 = vadd.f32 %v2080, %v2128
        %v2130 = vpop.f32.mrf.mxu0
        %v2131 = vadd.f32 %v2082, %v2130
        %2132 = vmatmul.bf16.gmra.mxu0 %v1396
        %v2133 = vpop.f32.mrf.mxu0
        %v2134 = vadd.f32 %v2085, %v2133
        %v2135 = vpop.f32.mrf.mxu0
        %v2136 = vadd.f32 %v2087, %v2135
        %2137 = vmatmul.bf16.gmra.mxu0 %v1400
        %v2138 = vpop.f32.mrf.mxu0
        %v2139 = vadd.f32 %v2090, %v2138
        %v2140 = vpop.f32.mrf.mxu0
        %v2141 = vadd.f32 %v2092, %v2140
        %2142 = vmatmul.bf16.gmra.mxu0 %v1404
        %v2143 = vpop.f32.mrf.mxu0
        %v2144 = vadd.f32 %v2095, %v2143
        %v2145 = vpop.f32.mrf.mxu0
        %v2146 = vadd.f32 %v2097, %v2145
        %2147 = vmatmul.bf16.gmra.mxu0 %v1408
        %v2148 = vpop.f32.mrf.mxu0
        %v2149 = vadd.f32 %v2100, %v2148
        %v2150 = vpop.f32.mrf.mxu0
        %v2151 = vadd.f32 %v2102, %v2150
        %2152 = vdwg.mxu0
        %v2153 = vtanh.pop %v1918
        %v2154 = vtanh.pop %v2114
        %v2155 = vtanh.pop %v1920
        %v2156 = vtanh.pop %v2116
        %v2157 = vtanh.pop %v1923
        %v2158 = vtanh.pop %v2119
        %v2159 = vtanh.pop %v1925
        %v2160 = vtanh.pop %v2121
        %v2161 = vtanh.pop %v1928
        %v2162 = vtanh.pop %v2124
        %v2163 = vtanh.pop %v1930
        %v2164 = vtanh.pop %v2126
        %v2165 = vtanh.pop %v1933
        %v2166 = vtanh.pop %v2129
        %v2167 = vtanh.pop %v1935
        %v2168 = vtanh.pop %v2131
        %v2169 = vtanh.pop %v1938
        %v2170 = vtanh.pop %v2134
        %v2171 = vtanh.pop %v1940
        %v2172 = vtanh.pop %v2136
        %v2173 = vtanh.pop %v1943
        %v2174 = vtanh.pop %v2139
        %v2175 = vtanh.pop %v1945
        %v2176 = vtanh.pop %v2141
        %v2177 = vtanh.pop %v1948
        %v2178 = vtanh.pop %v2144
        %v2179 = vtanh.pop %v1950
        %v2180 = vtanh.pop %v2146
        %v2181 = vtanh.pop %v1953
        %v2182 = vtanh.pop %v2149
        %v2183 = vtanh.pop %v1955
        %v2184 = vtanh.pop %v2151
        %v2185 = vpack.c.bf16 %v2155, %v2153
        %v2186 = vpack.c.bf16 %v2156, %v2154
        %v2187 = vpack.c.bf16 %v2159, %v2157
        %v2188 = vpack.c.bf16 %v2160, %v2158
        %v2189 = vpack.c.bf16 %v2163, %v2161
        %v2190 = vpack.c.bf16 %v2164, %v2162
        %v2191 = vpack.c.bf16 %v2167, %v2165
        %v2192 = vpack.c.bf16 %v2168, %v2166
        %v2193 = vpack.c.bf16 %v2171, %v2169
        %v2194 = vpack.c.bf16 %v2172, %v2170
        %v2195 = vpack.c.bf16 %v2175, %v2173
        %v2196 = vpack.c.bf16 %v2176, %v2174
        %v2197 = vpack.c.bf16 %v2179, %v2177
        %v2198 = vpack.c.bf16 %v2180, %v2178
        %v2199 = vpack.c.bf16 %v2183, %v2181
        %v2200 = vpack.c.bf16 %v2184, %v2182
        %v2201 = vld [vmem:[%s5] sm:$0xf]
        %v2202 = vld [vmem:[%s5 + $0x4] sm:$0xf]
        %v2203 = vld [vmem:[%s5 + $0x8] sm:$0xf]
        %v2204 = vld [vmem:[%s5 + $0xc] sm:$0xf]
        %v2205 = vld [vmem:[%s5 + $0x10] sm:$0xf]
        %v2206 = vld [vmem:[%s5 + $0x14] sm:$0xf]
        %v2207 = vld [vmem:[%s5 + $0x18] sm:$0xf]
        %v2208 = vld [vmem:[%s5 + $0x1c] sm:$0xf]
        %v2209 = vld [vmem:[%s5 + $0x20] sm:$0xf]
        %v2210 = vld [vmem:[%s5 + $0x24] sm:$0xf]
        %v2211 = vld [vmem:[%s5 + $0x28] sm:$0xf]
        %v2212 = vld [vmem:[%s5 + $0x2c] sm:$0xf]
        %v2213 = vld [vmem:[%s5 + $0x30] sm:$0xf]
        %v2214 = vld [vmem:[%s5 + $0x34] sm:$0xf]
        %v2215 = vld [vmem:[%s5 + $0x38] sm:$0xf]
        %v2216 = vld [vmem:[%s5 + $0x3c] sm:$0xf]
        %v2217 = vld [vmem:[%s5 + $0x40] sm:$0xf]
        %v2218 = vld [vmem:[%s5 + $0x44] sm:$0xf]
        %v2219 = vld [vmem:[%s5 + $0x48] sm:$0xf]
        %v2220 = vld [vmem:[%s5 + $0x4c] sm:$0xf]
        %v2221 = vld [vmem:[%s5 + $0x50] sm:$0xf]
        %v2222 = vld [vmem:[%s5 + $0x54] sm:$0xf]
        %v2223 = vld [vmem:[%s5 + $0x58] sm:$0xf]
        %v2224 = vld [vmem:[%s5 + $0x5c] sm:$0xf]
        %v2225 = vld [vmem:[%s5 + $0x60] sm:$0xf]
        %v2226 = vld [vmem:[%s5 + $0x64] sm:$0xf]
        %v2227 = vld [vmem:[%s5 + $0x68] sm:$0xf]
        %v2228 = vld [vmem:[%s5 + $0x6c] sm:$0xf]
        %v2229 = vld [vmem:[%s5 + $0x70] sm:$0xf]
        %v2230 = vld [vmem:[%s5 + $0x74] sm:$0xf]
        %v2231 = vld [vmem:[%s5 + $0x78] sm:$0xf]
        %v2232 = vld [vmem:[%s5 + $0x7c] sm:$0xf]
        %v2233 = vld [vmem:[%s6] sm:$0x1]
        %v2235 = vperm.slane %v2233, 0
        %v2269 = vunpack.c.l.b16 %v2201
        %v2270 = vunpack.c.l.b16 %v2202
        %v2271 = vunpack.c.l.b16 %v2203
        %v2272 = vunpack.c.l.b16 %v2204
        %v2273 = vunpack.c.l.b16 %v2205
        %v2274 = vunpack.c.l.b16 %v2206
        %v2275 = vunpack.c.l.b16 %v2207
        %v2276 = vunpack.c.l.b16 %v2208
        %v2277 = vunpack.c.l.b16 %v2209
        %v2278 = vunpack.c.l.b16 %v2210
        %v2279 = vunpack.c.l.b16 %v2211
        %v2280 = vunpack.c.l.b16 %v2212
        %v2281 = vunpack.c.l.b16 %v2213
        %v2282 = vunpack.c.l.b16 %v2214
        %v2283 = vunpack.c.l.b16 %v2215
        %v2284 = vunpack.c.l.b16 %v2216
        %v2285 = vunpack.c.l.b16 %v2217
        %v2286 = vunpack.c.l.b16 %v2218
        %v2287 = vunpack.c.l.b16 %v2219
        %v2288 = vunpack.c.l.b16 %v2220
        %v2289 = vunpack.c.l.b16 %v2221
        %v2290 = vunpack.c.l.b16 %v2222
        %v2291 = vunpack.c.l.b16 %v2223
        %v2292 = vunpack.c.l.b16 %v2224
        %v2293 = vunpack.c.l.b16 %v2225
        %v2294 = vunpack.c.l.b16 %v2226
        %v2295 = vunpack.c.l.b16 %v2227
        %v2296 = vunpack.c.l.b16 %v2228
        %v2297 = vunpack.c.l.b16 %v2229
        %v2298 = vunpack.c.l.b16 %v2230
        %v2299 = vunpack.c.l.b16 %v2231
        %v2300 = vunpack.c.l.b16 %v2232
        %v2301 = vpack.c.b16 %v2270, %v2269
        %v2302 = vpack.c.b16 %v2272, %v2271
        %v2303 = vpack.c.b16 %v2274, %v2273
        %v2304 = vpack.c.b16 %v2276, %v2275
        %v2305 = vpack.c.b16 %v2278, %v2277
        %v2306 = vpack.c.b16 %v2280, %v2279
        %v2307 = vpack.c.b16 %v2282, %v2281
        %v2308 = vpack.c.b16 %v2284, %v2283
        %v2309 = vpack.c.b16 %v2286, %v2285
        %v2310 = vpack.c.b16 %v2288, %v2287
        %v2311 = vpack.c.b16 %v2290, %v2289
        %v2312 = vpack.c.b16 %v2292, %v2291
        %v2313 = vpack.c.b16 %v2294, %v2293
        %v2314 = vpack.c.b16 %v2296, %v2295
        %v2315 = vpack.c.b16 %v2298, %v2297
        %v2316 = vpack.c.b16 %v2300, %v2299
        %2333 = vmatpush.bf16.msra.mxu0 %v2308
        %2334 = vmatpush.bf16.msra.mxu0 %v2307
        %2335 = vmatpush.bf16.msra.mxu0 %v2306
        %2336 = vmatpush.bf16.msra.mxu0 %v2305
        %2337 = vmatpush.bf16.msra.mxu0 %v2304
        %2338 = vmatpush.bf16.msra.mxu0 %v2303
        %2339 = vmatpush.bf16.msra.mxu0 %v2302
        %2340 = vmatpush.bf16.msra.mxu0 %v2301
        %2341 = vmatmul.bf16.gmra.mxu0 %v2185
        %v2342 = vpop.f32.mrf.mxu0
        %v2343 = vadd.f32 %v2235, %v2342
        %v2344 = vpop.f32.mrf.mxu0
        %v2345 = vadd.f32 %v2235, %v2344
        %2346 = vmatmul.bf16.gmra.mxu0 %v2187
        %v2347 = vpop.f32.mrf.mxu0
        %v2348 = vadd.f32 %v2235, %v2347
        %v2349 = vpop.f32.mrf.mxu0
        %v2350 = vadd.f32 %v2235, %v2349
        %2351 = vmatmul.bf16.gmra.mxu0 %v2189
        %v2352 = vpop.f32.mrf.mxu0
        %v2353 = vadd.f32 %v2235, %v2352
        %v2354 = vpop.f32.mrf.mxu0
        %v2355 = vadd.f32 %v2235, %v2354
        %2356 = vmatmul.bf16.gmra.mxu0 %v2191
        %v2357 = vpop.f32.mrf.mxu0
        %v2358 = vadd.f32 %v2235, %v2357
        %v2359 = vpop.f32.mrf.mxu0
        %v2360 = vadd.f32 %v2235, %v2359
        %2361 = vmatmul.bf16.gmra.mxu0 %v2193
        %v2362 = vpop.f32.mrf.mxu0
        %v2363 = vadd.f32 %v2235, %v2362
        %v2364 = vpop.f32.mrf.mxu0
        %v2365 = vadd.f32 %v2235, %v2364
        %2366 = vmatmul.bf16.gmra.mxu0 %v2195
        %v2367 = vpop.f32.mrf.mxu0
        %v2368 = vadd.f32 %v2235, %v2367
        %v2369 = vpop.f32.mrf.mxu0
        %v2370 = vadd.f32 %v2235, %v2369
        %2371 = vmatmul.bf16.gmra.mxu0 %v2197
        %v2372 = vpop.f32.mrf.mxu0
        %v2373 = vadd.f32 %v2235, %v2372
        %v2374 = vpop.f32.mrf.mxu0
        %v2375 = vadd.f32 %v2235, %v2374
        %2376 = vmatmul.bf16.gmra.mxu0 %v2199
        %v2377 = vpop.f32.mrf.mxu0
        %v2378 = vadd.f32 %v2235, %v2377
        %v2379 = vpop.f32.mrf.mxu0
        %v2380 = vadd.f32 %v2235, %v2379
        %2381 = vdwg.mxu0
        %2382 = vmatpush.bf16.msra.mxu0 %v2316
        %2383 = vmatpush.bf16.msra.mxu0 %v2315
        %2384 = vmatpush.bf16.msra.mxu0 %v2314
        %2385 = vmatpush.bf16.msra.mxu0 %v2313
        %2386 = vmatpush.bf16.msra.mxu0 %v2312
        %2387 = vmatpush.bf16.msra.mxu0 %v2311
        %2388 = vmatpush.bf16.msra.mxu0 %v2310
        %2389 = vmatpush.bf16.msra.mxu0 %v2309
        %2390 = vmatmul.bf16.gmra.mxu0 %v2186
        %v2391 = vpop.f32.mrf.mxu0
        %v2392 = vadd.f32 %v2343, %v2391
        %v2393 = vpop.f32.mrf.mxu0
        %v2394 = vadd.f32 %v2345, %v2393
        %2395 = vmatmul.bf16.gmra.mxu0 %v2188
        %v2396 = vpop.f32.mrf.mxu0
        %v2397 = vadd.f32 %v2348, %v2396
        %v2398 = vpop.f32.mrf.mxu0
        %v2399 = vadd.f32 %v2350, %v2398
        %2400 = vmatmul.bf16.gmra.mxu0 %v2190
        %v2401 = vpop.f32.mrf.mxu0
        %v2402 = vadd.f32 %v2353, %v2401
        %v2403 = vpop.f32.mrf.mxu0
        %v2404 = vadd.f32 %v2355, %v2403
        %2405 = vmatmul.bf16.gmra.mxu0 %v2192
        %v2406 = vpop.f32.mrf.mxu0
        %v2407 = vadd.f32 %v2358, %v2406
        %v2408 = vpop.f32.mrf.mxu0
        %v2409 = vadd.f32 %v2360, %v2408
        %2410 = vmatmul.bf16.gmra.mxu0 %v2194
        %v2411 = vpop.f32.mrf.mxu0
        %v2412 = vadd.f32 %v2363, %v2411
        %v2413 = vpop.f32.mrf.mxu0
        %v2414 = vadd.f32 %v2365, %v2413
        %2415 = vmatmul.bf16.gmra.mxu0 %v2196
        %v2416 = vpop.f32.mrf.mxu0
        %v2417 = vadd.f32 %v2368, %v2416
        %v2418 = vpop.f32.mrf.mxu0
        %v2419 = vadd.f32 %v2370, %v2418
        %2420 = vmatmul.bf16.gmra.mxu0 %v2198
        %v2421 = vpop.f32.mrf.mxu0
        %v2422 = vadd.f32 %v2373, %v2421
        %v2423 = vpop.f32.mrf.mxu0
        %v2424 = vadd.f32 %v2375, %v2423
        %2425 = vmatmul.bf16.gmra.mxu0 %v2200
        %v2426 = vpop.f32.mrf.mxu0
        %v2427 = vadd.f32 %v2378, %v2426
        %v2428 = vpop.f32.mrf.mxu0
        %v2429 = vadd.f32 %v2380, %v2428
        %2430 = vdwg.mxu0
        %v2431 = vtanh.pop %v2392
        %v2432 = vtanh.pop %v2394
        %v2433 = vtanh.pop %v2397
        %v2434 = vtanh.pop %v2399
        %v2435 = vtanh.pop %v2402
        %v2436 = vtanh.pop %v2404
        %v2437 = vtanh.pop %v2407
        %v2438 = vtanh.pop %v2409
        %v2439 = vtanh.pop %v2412
        %v2440 = vtanh.pop %v2414
        %v2441 = vtanh.pop %v2417
        %v2442 = vtanh.pop %v2419
        %v2443 = vtanh.pop %v2422
        %v2444 = vtanh.pop %v2424
        %v2445 = vtanh.pop %v2427
        %v2446 = vtanh.pop %v2429
        %v2447 = vpack.c.bf16 %v2432, %v2431
        %v2448 = vpack.c.bf16 %v2434, %v2433
        %v2449 = vpack.c.bf16 %v2436, %v2435
        %v2450 = vpack.c.bf16 %v2438, %v2437
        %v2451 = vpack.c.bf16 %v2440, %v2439
        %v2452 = vpack.c.bf16 %v2442, %v2441
        %v2453 = vpack.c.bf16 %v2444, %v2443
        %v2454 = vpack.c.bf16 %v2446, %v2445
        %v2455 = vld [vmem:[#allocation6] sm:$0xff]
        %v2456 = vld [vmem:[#allocation6 + $0x8] sm:$0xff]
        %v2457 = vld [vmem:[#allocation6 + $0x10] sm:$0xff]
        %v2458 = vld [vmem:[#allocation6 + $0x18] sm:$0xff]
        %v2459 = vld [vmem:[#allocation6 + $0x20] sm:$0xff]
        %v2460 = vld [vmem:[#allocation6 + $0x28] sm:$0xff]
        %v2461 = vld [vmem:[#allocation6 + $0x30] sm:$0xff]
        %v2462 = vld [vmem:[#allocation6 + $0x38] sm:$0xff]
        %v2463 = vld [vmem:[#allocation6 + $0x40] sm:$0xff]
        %v2464 = vld [vmem:[#allocation6 + $0x48] sm:$0xff]
        %v2465 = vld [vmem:[#allocation6 + $0x50] sm:$0xff]
        %v2466 = vld [vmem:[#allocation6 + $0x58] sm:$0xff]
        %v2467 = vld [vmem:[#allocation6 + $0x60] sm:$0xff]
        %v2468 = vld [vmem:[#allocation6 + $0x68] sm:$0xff]
        %v2469 = vld [vmem:[#allocation6 + $0x70] sm:$0xff]
        %v2470 = vld [vmem:[#allocation6 + $0x78] sm:$0xff]
        %v2471 = vld [vmem:[#allocation6 + $0x80] sm:$0xff]
        %v2472 = vld [vmem:[#allocation6 + $0x88] sm:$0xff]
        %v2473 = vld [vmem:[#allocation6 + $0x90] sm:$0xff]
        %v2474 = vld [vmem:[#allocation6 + $0x98] sm:$0xff]
        %v2475 = vld [vmem:[#allocation6 + $0xa0] sm:$0xff]
        %v2476 = vld [vmem:[#allocation6 + $0xa8] sm:$0xff]
        %v2477 = vld [vmem:[#allocation6 + $0xb0] sm:$0xff]
        %v2478 = vld [vmem:[#allocation6 + $0xb8] sm:$0xff]
        %v2479 = vld [vmem:[#allocation6 + $0xc0] sm:$0xff]
        %v2480 = vld [vmem:[#allocation6 + $0xc8] sm:$0xff]
        %v2481 = vld [vmem:[#allocation6 + $0xd0] sm:$0xff]
        %v2482 = vld [vmem:[#allocation6 + $0xd8] sm:$0xff]
        %v2483 = vld [vmem:[#allocation6 + $0xe0] sm:$0xff]
        %v2484 = vld [vmem:[#allocation6 + $0xe8] sm:$0xff]
        %v2485 = vld [vmem:[#allocation6 + $0xf0] sm:$0xff]
        %v2486 = vld [vmem:[#allocation6 + $0xf8] sm:$0xff]
        %v2487 = vld [vmem:[#allocation6 + $0x100] sm:$0xff]
        %v2488 = vld [vmem:[#allocation6 + $0x108] sm:$0xff]
        %v2489 = vld [vmem:[#allocation6 + $0x110] sm:$0xff]
        %v2490 = vld [vmem:[#allocation6 + $0x118] sm:$0xff]
        %v2491 = vld [vmem:[#allocation6 + $0x120] sm:$0xff]
        %v2492 = vld [vmem:[#allocation6 + $0x128] sm:$0xff]
        %v2493 = vld [vmem:[#allocation6 + $0x130] sm:$0xff]
        %v2494 = vld [vmem:[#allocation6 + $0x138] sm:$0xff]
        %v2495 = vld [vmem:[#allocation6 + $0x140] sm:$0xff]
        %v2496 = vld [vmem:[#allocation6 + $0x148] sm:$0xff]
        %v2497 = vld [vmem:[#allocation6 + $0x150] sm:$0xff]
        %v2498 = vld [vmem:[#allocation6 + $0x158] sm:$0xff]
        %v2499 = vld [vmem:[#allocation6 + $0x160] sm:$0xff]
        %v2500 = vld [vmem:[#allocation6 + $0x168] sm:$0xff]
        %v2501 = vld [vmem:[#allocation6 + $0x170] sm:$0xff]
        %v2502 = vld [vmem:[#allocation6 + $0x178] sm:$0xff]
        %v2503 = vld [vmem:[#allocation6 + $0x180] sm:$0xff]
        %v2504 = vld [vmem:[#allocation6 + $0x188] sm:$0xff]
        %v2505 = vld [vmem:[#allocation6 + $0x190] sm:$0xff]
        %v2506 = vld [vmem:[#allocation6 + $0x198] sm:$0xff]
        %v2507 = vld [vmem:[#allocation6 + $0x1a0] sm:$0xff]
        %v2508 = vld [vmem:[#allocation6 + $0x1a8] sm:$0xff]
        %v2509 = vld [vmem:[#allocation6 + $0x1b0] sm:$0xff]
        %v2510 = vld [vmem:[#allocation6 + $0x1b8] sm:$0xff]
        %v2511 = vld [vmem:[#allocation6 + $0x1c0] sm:$0xff]
        %v2512 = vld [vmem:[#allocation6 + $0x1c8] sm:$0xff]
        %v2513 = vld [vmem:[#allocation6 + $0x1d0] sm:$0xff]
        %v2514 = vld [vmem:[#allocation6 + $0x1d8] sm:$0xff]
        %v2515 = vld [vmem:[#allocation6 + $0x1e0] sm:$0xff]
        %v2516 = vld [vmem:[#allocation6 + $0x1e8] sm:$0xff]
        %v2517 = vld [vmem:[#allocation6 + $0x1f0] sm:$0xff]
        %v2518 = vld [vmem:[#allocation6 + $0x1f8] sm:$0xff]
        %v2519 = vld [vmem:[%s8] sm:$0x3]
        %v2521 = vperm.slane %v2519, 0
        %v2522 = vperm.slane %v2519, 1
        %v2557 = vunpack.c.l.b16 %v1149
        %v2558 = vunpack.c.h.b16 %v1149
        %v2559 = vunpack.c.l.b16 %v1150
        %v2560 = vunpack.c.h.b16 %v1150
        %v2561 = vunpack.c.l.b16 %v1153
        %v2562 = vunpack.c.h.b16 %v1153
        %v2563 = vunpack.c.l.b16 %v1154
        %v2564 = vunpack.c.h.b16 %v1154
        %v2565 = vunpack.c.l.b16 %v1157
        %v2566 = vunpack.c.h.b16 %v1157
        %v2567 = vunpack.c.l.b16 %v1158
        %v2568 = vunpack.c.h.b16 %v1158
        %v2569 = vunpack.c.l.b16 %v1161
        %v2570 = vunpack.c.h.b16 %v1161
        %v2571 = vunpack.c.l.b16 %v1162
        %v2572 = vunpack.c.h.b16 %v1162
        %v2573 = vunpack.c.l.b16 %v1165
        %v2574 = vunpack.c.h.b16 %v1165
        %v2575 = vunpack.c.l.b16 %v1166
        %v2576 = vunpack.c.h.b16 %v1166
        %v2577 = vunpack.c.l.b16 %v1169
        %v2578 = vunpack.c.h.b16 %v1169
        %v2579 = vunpack.c.l.b16 %v1170
        %v2580 = vunpack.c.h.b16 %v1170
        %v2581 = vunpack.c.l.b16 %v1173
        %v2582 = vunpack.c.h.b16 %v1173
        %v2583 = vunpack.c.l.b16 %v1174
        %v2584 = vunpack.c.h.b16 %v1174
        %v2585 = vunpack.c.l.b16 %v1177
        %v2586 = vunpack.c.h.b16 %v1177
        %v2587 = vunpack.c.l.b16 %v1178
        %v2588 = vunpack.c.h.b16 %v1178
        %v2589 = vunpack.c.l.b16 %v1181
        %v2590 = vunpack.c.h.b16 %v1181
        %v2591 = vunpack.c.l.b16 %v1182
        %v2592 = vunpack.c.h.b16 %v1182
        %v2593 = vunpack.c.l.b16 %v1185
        %v2594 = vunpack.c.h.b16 %v1185
        %v2595 = vunpack.c.l.b16 %v1186
        %v2596 = vunpack.c.h.b16 %v1186
        %v2597 = vunpack.c.l.b16 %v1189
        %v2598 = vunpack.c.h.b16 %v1189
        %v2599 = vunpack.c.l.b16 %v1190
        %v2600 = vunpack.c.h.b16 %v1190
        %v2601 = vunpack.c.l.b16 %v1193
        %v2602 = vunpack.c.h.b16 %v1193
        %v2603 = vunpack.c.l.b16 %v1194
        %v2604 = vunpack.c.h.b16 %v1194
        %v2605 = vunpack.c.l.b16 %v1197
        %v2606 = vunpack.c.h.b16 %v1197
        %v2607 = vunpack.c.l.b16 %v1198
        %v2608 = vunpack.c.h.b16 %v1198
        %v2609 = vunpack.c.l.b16 %v1201
        %v2610 = vunpack.c.h.b16 %v1201
        %v2611 = vunpack.c.l.b16 %v1202
        %v2612 = vunpack.c.h.b16 %v1202
        %v2613 = vunpack.c.l.b16 %v1205
        %v2614 = vunpack.c.h.b16 %v1205
        %v2615 = vunpack.c.l.b16 %v1206
        %v2616 = vunpack.c.h.b16 %v1206
        %v2617 = vunpack.c.l.b16 %v1209
        %v2618 = vunpack.c.h.b16 %v1209
        %v2619 = vunpack.c.l.b16 %v1210
        %v2620 = vunpack.c.h.b16 %v1210
        %v2621 = vpack.c.b16 %v2561, %v2557
        %v2622 = vpack.c.b16 %v2562, %v2558
        %v2623 = vpack.c.b16 %v2563, %v2559
        %v2624 = vpack.c.b16 %v2564, %v2560
        %v2625 = vpack.c.b16 %v2569, %v2565
        %v2626 = vpack.c.b16 %v2570, %v2566
        %v2627 = vpack.c.b16 %v2571, %v2567
        %v2628 = vpack.c.b16 %v2572, %v2568
        %v2629 = vpack.c.b16 %v2577, %v2573
        %v2630 = vpack.c.b16 %v2578, %v2574
        %v2631 = vpack.c.b16 %v2579, %v2575
        %v2632 = vpack.c.b16 %v2580, %v2576
        %v2633 = vpack.c.b16 %v2585, %v2581
        %v2634 = vpack.c.b16 %v2586, %v2582
        %v2635 = vpack.c.b16 %v2587, %v2583
        %v2636 = vpack.c.b16 %v2588, %v2584
        %v2637 = vpack.c.b16 %v2593, %v2589
        %v2638 = vpack.c.b16 %v2594, %v2590
        %v2639 = vpack.c.b16 %v2595, %v2591
        %v2640 = vpack.c.b16 %v2596, %v2592
        %v2641 = vpack.c.b16 %v2601, %v2597
        %v2642 = vpack.c.b16 %v2602, %v2598
        %v2643 = vpack.c.b16 %v2603, %v2599
        %v2644 = vpack.c.b16 %v2604, %v2600
        %v2645 = vpack.c.b16 %v2609, %v2605
        %v2646 = vpack.c.b16 %v2610, %v2606
        %v2647 = vpack.c.b16 %v2611, %v2607
        %v2648 = vpack.c.b16 %v2612, %v2608
        %v2649 = vpack.c.b16 %v2617, %v2613
        %v2650 = vpack.c.b16 %v2618, %v2614
        %v2651 = vpack.c.b16 %v2619, %v2615
        %v2652 = vpack.c.b16 %v2620, %v2616
        %v2749 = vunpack.c.l.b16 %v2455
        %v2750 = vunpack.c.h.b16 %v2455
        %v2751 = vunpack.c.l.b16 %v2456
        %v2752 = vunpack.c.h.b16 %v2456
        %v2753 = vunpack.c.l.b16 %v2457
        %v2754 = vunpack.c.h.b16 %v2457
        %v2755 = vunpack.c.l.b16 %v2458
        %v2756 = vunpack.c.h.b16 %v2458
        %v2757 = vunpack.c.l.b16 %v2459
        %v2758 = vunpack.c.h.b16 %v2459
        %v2759 = vunpack.c.l.b16 %v2460
        %v2760 = vunpack.c.h.b16 %v2460
        %v2761 = vunpack.c.l.b16 %v2461
        %v2762 = vunpack.c.h.b16 %v2461
        %v2763 = vunpack.c.l.b16 %v2462
        %v2764 = vunpack.c.h.b16 %v2462
        %v2765 = vunpack.c.l.b16 %v2463
        %v2766 = vunpack.c.h.b16 %v2463
        %v2767 = vunpack.c.l.b16 %v2464
        %v2768 = vunpack.c.h.b16 %v2464
        %v2769 = vunpack.c.l.b16 %v2465
        %v2770 = vunpack.c.h.b16 %v2465
        %v2771 = vunpack.c.l.b16 %v2466
        %v2772 = vunpack.c.h.b16 %v2466
        %v2773 = vunpack.c.l.b16 %v2467
        %v2774 = vunpack.c.h.b16 %v2467
        %v2775 = vunpack.c.l.b16 %v2468
        %v2776 = vunpack.c.h.b16 %v2468
        %v2777 = vunpack.c.l.b16 %v2469
        %v2778 = vunpack.c.h.b16 %v2469
        %v2779 = vunpack.c.l.b16 %v2470
        %v2780 = vunpack.c.h.b16 %v2470
        %v2781 = vunpack.c.l.b16 %v2471
        %v2782 = vunpack.c.h.b16 %v2471
        %v2783 = vunpack.c.l.b16 %v2472
        %v2784 = vunpack.c.h.b16 %v2472
        %v2785 = vunpack.c.l.b16 %v2473
        %v2786 = vunpack.c.h.b16 %v2473
        %v2787 = vunpack.c.l.b16 %v2474
        %v2788 = vunpack.c.h.b16 %v2474
        %v2789 = vunpack.c.l.b16 %v2475
        %v2790 = vunpack.c.h.b16 %v2475
        %v2791 = vunpack.c.l.b16 %v2476
        %v2792 = vunpack.c.h.b16 %v2476
        %v2793 = vunpack.c.l.b16 %v2477
        %v2794 = vunpack.c.h.b16 %v2477
        %v2795 = vunpack.c.l.b16 %v2478
        %v2796 = vunpack.c.h.b16 %v2478
        %v2797 = vunpack.c.l.b16 %v2479
        %v2798 = vunpack.c.h.b16 %v2479
        %v2799 = vunpack.c.l.b16 %v2480
        %v2800 = vunpack.c.h.b16 %v2480
        %v2801 = vunpack.c.l.b16 %v2481
        %v2802 = vunpack.c.h.b16 %v2481
        %v2803 = vunpack.c.l.b16 %v2482
        %v2804 = vunpack.c.h.b16 %v2482
        %v2805 = vunpack.c.l.b16 %v2483
        %v2806 = vunpack.c.h.b16 %v2483
        %v2807 = vunpack.c.l.b16 %v2484
        %v2808 = vunpack.c.h.b16 %v2484
        %v2809 = vunpack.c.l.b16 %v2485
        %v2810 = vunpack.c.h.b16 %v2485
        %v2811 = vunpack.c.l.b16 %v2486
        %v2812 = vunpack.c.h.b16 %v2486
        %v2813 = vunpack.c.l.b16 %v2487
        %v2814 = vunpack.c.h.b16 %v2487
        %v2815 = vunpack.c.l.b16 %v2488
        %v2816 = vunpack.c.h.b16 %v2488
        %v2817 = vunpack.c.l.b16 %v2489
        %v2818 = vunpack.c.h.b16 %v2489
        %v2819 = vunpack.c.l.b16 %v2490
        %v2820 = vunpack.c.h.b16 %v2490
        %v2821 = vunpack.c.l.b16 %v2491
        %v2822 = vunpack.c.h.b16 %v2491
        %v2823 = vunpack.c.l.b16 %v2492
        %v2824 = vunpack.c.h.b16 %v2492
        %v2825 = vunpack.c.l.b16 %v2493
        %v2826 = vunpack.c.h.b16 %v2493
        %v2827 = vunpack.c.l.b16 %v2494
        %v2828 = vunpack.c.h.b16 %v2494
        %v2829 = vunpack.c.l.b16 %v2495
        %v2830 = vunpack.c.h.b16 %v2495
        %v2831 = vunpack.c.l.b16 %v2496
        %v2832 = vunpack.c.h.b16 %v2496
        %v2833 = vunpack.c.l.b16 %v2497
        %v2834 = vunpack.c.h.b16 %v2497
        %v2835 = vunpack.c.l.b16 %v2498
        %v2836 = vunpack.c.h.b16 %v2498
        %v2837 = vunpack.c.l.b16 %v2499
        %v2838 = vunpack.c.h.b16 %v2499
        %v2839 = vunpack.c.l.b16 %v2500
        %v2840 = vunpack.c.h.b16 %v2500
        %v2841 = vunpack.c.l.b16 %v2501
        %v2842 = vunpack.c.h.b16 %v2501
        %v2843 = vunpack.c.l.b16 %v2502
        %v2844 = vunpack.c.h.b16 %v2502
        %v2845 = vunpack.c.l.b16 %v2503
        %v2846 = vunpack.c.h.b16 %v2503
        %v2847 = vunpack.c.l.b16 %v2504
        %v2848 = vunpack.c.h.b16 %v2504
        %v2849 = vunpack.c.l.b16 %v2505
        %v2850 = vunpack.c.h.b16 %v2505
        %v2851 = vunpack.c.l.b16 %v2506
        %v2852 = vunpack.c.h.b16 %v2506
        %v2853 = vunpack.c.l.b16 %v2507
        %v2854 = vunpack.c.h.b16 %v2507
        %v2855 = vunpack.c.l.b16 %v2508
        %v2856 = vunpack.c.h.b16 %v2508
        %v2857 = vunpack.c.l.b16 %v2509
        %v2858 = vunpack.c.h.b16 %v2509
        %v2859 = vunpack.c.l.b16 %v2510
        %v2860 = vunpack.c.h.b16 %v2510
        %v2861 = vunpack.c.l.b16 %v2511
        %v2862 = vunpack.c.h.b16 %v2511
        %v2863 = vunpack.c.l.b16 %v2512
        %v2864 = vunpack.c.h.b16 %v2512
        %v2865 = vunpack.c.l.b16 %v2513
        %v2866 = vunpack.c.h.b16 %v2513
        %v2867 = vunpack.c.l.b16 %v2514
        %v2868 = vunpack.c.h.b16 %v2514
        %v2869 = vunpack.c.l.b16 %v2515
        %v2870 = vunpack.c.h.b16 %v2515
        %v2871 = vunpack.c.l.b16 %v2516
        %v2872 = vunpack.c.h.b16 %v2516
        %v2873 = vunpack.c.l.b16 %v2517
        %v2874 = vunpack.c.h.b16 %v2517
        %v2875 = vunpack.c.l.b16 %v2518
        %v2876 = vunpack.c.h.b16 %v2518
        %v2877 = vpack.c.b16 %v2751, %v2749
        %v2878 = vpack.c.b16 %v2752, %v2750
        %v2879 = vpack.c.b16 %v2755, %v2753
        %v2880 = vpack.c.b16 %v2756, %v2754
        %v2881 = vpack.c.b16 %v2759, %v2757
        %v2882 = vpack.c.b16 %v2760, %v2758
        %v2883 = vpack.c.b16 %v2763, %v2761
        %v2884 = vpack.c.b16 %v2764, %v2762
        %v2885 = vpack.c.b16 %v2767, %v2765
        %v2886 = vpack.c.b16 %v2768, %v2766
        %v2887 = vpack.c.b16 %v2771, %v2769
        %v2888 = vpack.c.b16 %v2772, %v2770
        %v2889 = vpack.c.b16 %v2775, %v2773
        %v2890 = vpack.c.b16 %v2776, %v2774
        %v2891 = vpack.c.b16 %v2779, %v2777
        %v2892 = vpack.c.b16 %v2780, %v2778
        %v2893 = vpack.c.b16 %v2783, %v2781
        %v2894 = vpack.c.b16 %v2784, %v2782
        %v2895 = vpack.c.b16 %v2787, %v2785
        %v2896 = vpack.c.b16 %v2788, %v2786
        %v2897 = vpack.c.b16 %v2791, %v2789
        %v2898 = vpack.c.b16 %v2792, %v2790
        %v2899 = vpack.c.b16 %v2795, %v2793
        %v2900 = vpack.c.b16 %v2796, %v2794
        %v2901 = vpack.c.b16 %v2799, %v2797
        %v2902 = vpack.c.b16 %v2800, %v2798
        %v2903 = vpack.c.b16 %v2803, %v2801
        %v2904 = vpack.c.b16 %v2804, %v2802
        %v2905 = vpack.c.b16 %v2807, %v2805
        %v2906 = vpack.c.b16 %v2808, %v2806
        %v2907 = vpack.c.b16 %v2811, %v2809
        %v2908 = vpack.c.b16 %v2812, %v2810
        %v2909 = vpack.c.b16 %v2815, %v2813
        %v2910 = vpack.c.b16 %v2816, %v2814
        %v2911 = vpack.c.b16 %v2819, %v2817
        %v2912 = vpack.c.b16 %v2820, %v2818
        %v2913 = vpack.c.b16 %v2823, %v2821
        %v2914 = vpack.c.b16 %v2824, %v2822
        %v2915 = vpack.c.b16 %v2827, %v2825
        %v2916 = vpack.c.b16 %v2828, %v2826
        %v2917 = vpack.c.b16 %v2831, %v2829
        %v2918 = vpack.c.b16 %v2832, %v2830
        %v2919 = vpack.c.b16 %v2835, %v2833
        %v2920 = vpack.c.b16 %v2836, %v2834
        %v2921 = vpack.c.b16 %v2839, %v2837
        %v2922 = vpack.c.b16 %v2840, %v2838
        %v2923 = vpack.c.b16 %v2843, %v2841
        %v2924 = vpack.c.b16 %v2844, %v2842
        %v2925 = vpack.c.b16 %v2847, %v2845
        %v2926 = vpack.c.b16 %v2848, %v2846
        %v2927 = vpack.c.b16 %v2851, %v2849
        %v2928 = vpack.c.b16 %v2852, %v2850
        %v2929 = vpack.c.b16 %v2855, %v2853
        %v2930 = vpack.c.b16 %v2856, %v2854
        %v2931 = vpack.c.b16 %v2859, %v2857
        %v2932 = vpack.c.b16 %v2860, %v2858
        %v2933 = vpack.c.b16 %v2863, %v2861
        %v2934 = vpack.c.b16 %v2864, %v2862
        %v2935 = vpack.c.b16 %v2867, %v2865
        %v2936 = vpack.c.b16 %v2868, %v2866
        %v2937 = vpack.c.b16 %v2871, %v2869
        %v2938 = vpack.c.b16 %v2872, %v2870
        %v2939 = vpack.c.b16 %v2875, %v2873
        %v2940 = vpack.c.b16 %v2876, %v2874
        %3005 = vmatpush.bf16.msra.mxu0 %v2891
        %3006 = vmatpush.bf16.msra.mxu0 %v2889
        %3007 = vmatpush.bf16.msra.mxu0 %v2887
        %3008 = vmatpush.bf16.msra.mxu0 %v2885
        %3009 = vmatpush.bf16.msra.mxu0 %v2883
        %3010 = vmatpush.bf16.msra.mxu0 %v2881
        %3011 = vmatpush.bf16.msra.mxu0 %v2879
        %3012 = vmatpush.bf16.msra.mxu0 %v2877
        %3013 = vmatmul.bf16.gmra.mxu0 %v2621
        %v3014 = vpop.f32.mrf.mxu0
        %v3015 = vadd.f32 %v2521, %v3014
        %v3016 = vpop.f32.mrf.mxu0
        %v3017 = vadd.f32 %v2521, %v3016
        %3018 = vmatmul.bf16.gmra.mxu0 %v2625
        %v3019 = vpop.f32.mrf.mxu0
        %v3020 = vadd.f32 %v2521, %v3019
        %v3021 = vpop.f32.mrf.mxu0
        %v3022 = vadd.f32 %v2521, %v3021
        %3023 = vmatmul.bf16.gmra.mxu0 %v2629
        %v3024 = vpop.f32.mrf.mxu0
        %v3025 = vadd.f32 %v2521, %v3024
        %v3026 = vpop.f32.mrf.mxu0
        %v3027 = vadd.f32 %v2521, %v3026
        %3028 = vmatmul.bf16.gmra.mxu0 %v2633
        %v3029 = vpop.f32.mrf.mxu0
        %v3030 = vadd.f32 %v2521, %v3029
        %v3031 = vpop.f32.mrf.mxu0
        %v3032 = vadd.f32 %v2521, %v3031
        %3033 = vmatmul.bf16.gmra.mxu0 %v2637
        %v3034 = vpop.f32.mrf.mxu0
        %v3035 = vadd.f32 %v2521, %v3034
        %v3036 = vpop.f32.mrf.mxu0
        %v3037 = vadd.f32 %v2521, %v3036
        %3038 = vmatmul.bf16.gmra.mxu0 %v2641
        %v3039 = vpop.f32.mrf.mxu0
        %v3040 = vadd.f32 %v2521, %v3039
        %v3041 = vpop.f32.mrf.mxu0
        %v3042 = vadd.f32 %v2521, %v3041
        %3043 = vmatmul.bf16.gmra.mxu0 %v2645
        %v3044 = vpop.f32.mrf.mxu0
        %v3045 = vadd.f32 %v2521, %v3044
        %v3046 = vpop.f32.mrf.mxu0
        %v3047 = vadd.f32 %v2521, %v3046
        %3048 = vmatmul.bf16.gmra.mxu0 %v2649
        %v3049 = vpop.f32.mrf.mxu0
        %v3050 = vadd.f32 %v2521, %v3049
        %v3051 = vpop.f32.mrf.mxu0
        %v3052 = vadd.f32 %v2521, %v3051
        %3053 = vdwg.mxu0
        %3054 = vmatpush.bf16.msra.mxu0 %v2907
        %3055 = vmatpush.bf16.msra.mxu0 %v2905
        %3056 = vmatpush.bf16.msra.mxu0 %v2903
        %3057 = vmatpush.bf16.msra.mxu0 %v2901
        %3058 = vmatpush.bf16.msra.mxu0 %v2899
        %3059 = vmatpush.bf16.msra.mxu0 %v2897
        %3060 = vmatpush.bf16.msra.mxu0 %v2895
        %3061 = vmatpush.bf16.msra.mxu0 %v2893
        %3062 = vmatmul.bf16.gmra.mxu0 %v2622
        %v3063 = vpop.f32.mrf.mxu0
        %v3064 = vadd.f32 %v3015, %v3063
        %v3065 = vpop.f32.mrf.mxu0
        %v3066 = vadd.f32 %v3017, %v3065
        %3067 = vmatmul.bf16.gmra.mxu0 %v2626
        %v3068 = vpop.f32.mrf.mxu0
        %v3069 = vadd.f32 %v3020, %v3068
        %v3070 = vpop.f32.mrf.mxu0
        %v3071 = vadd.f32 %v3022, %v3070
        %3072 = vmatmul.bf16.gmra.mxu0 %v2630
        %v3073 = vpop.f32.mrf.mxu0
        %v3074 = vadd.f32 %v3025, %v3073
        %v3075 = vpop.f32.mrf.mxu0
        %v3076 = vadd.f32 %v3027, %v3075
        %3077 = vmatmul.bf16.gmra.mxu0 %v2634
        %v3078 = vpop.f32.mrf.mxu0
        %v3079 = vadd.f32 %v3030, %v3078
        %v3080 = vpop.f32.mrf.mxu0
        %v3081 = vadd.f32 %v3032, %v3080
        %3082 = vmatmul.bf16.gmra.mxu0 %v2638
        %v3083 = vpop.f32.mrf.mxu0
        %v3084 = vadd.f32 %v3035, %v3083
        %v3085 = vpop.f32.mrf.mxu0
        %v3086 = vadd.f32 %v3037, %v3085
        %3087 = vmatmul.bf16.gmra.mxu0 %v2642
        %v3088 = vpop.f32.mrf.mxu0
        %v3089 = vadd.f32 %v3040, %v3088
        %v3090 = vpop.f32.mrf.mxu0
        %v3091 = vadd.f32 %v3042, %v3090
        %3092 = vmatmul.bf16.gmra.mxu0 %v2646
        %v3093 = vpop.f32.mrf.mxu0
        %v3094 = vadd.f32 %v3045, %v3093
        %v3095 = vpop.f32.mrf.mxu0
        %v3096 = vadd.f32 %v3047, %v3095
        %3097 = vmatmul.bf16.gmra.mxu0 %v2650
        %v3098 = vpop.f32.mrf.mxu0
        %v3099 = vadd.f32 %v3050, %v3098
        %v3100 = vpop.f32.mrf.mxu0
        %v3101 = vadd.f32 %v3052, %v3100
        %3102 = vdwg.mxu0
        %3103 = vmatpush.bf16.msra.mxu0 %v2923
        %3104 = vmatpush.bf16.msra.mxu0 %v2921
        %3105 = vmatpush.bf16.msra.mxu0 %v2919
        %3106 = vmatpush.bf16.msra.mxu0 %v2917
        %3107 = vmatpush.bf16.msra.mxu0 %v2915
        %3108 = vmatpush.bf16.msra.mxu0 %v2913
        %3109 = vmatpush.bf16.msra.mxu0 %v2911
        %3110 = vmatpush.bf16.msra.mxu0 %v2909
        %3111 = vmatmul.bf16.gmra.mxu0 %v2623
        %v3112 = vpop.f32.mrf.mxu0
        %v3113 = vadd.f32 %v3064, %v3112
        %v3114 = vpop.f32.mrf.mxu0
        %v3115 = vadd.f32 %v3066, %v3114
        %3116 = vmatmul.bf16.gmra.mxu0 %v2627
        %v3117 = vpop.f32.mrf.mxu0
        %v3118 = vadd.f32 %v3069, %v3117
        %v3119 = vpop.f32.mrf.mxu0
        %v3120 = vadd.f32 %v3071, %v3119
        %3121 = vmatmul.bf16.gmra.mxu0 %v2631
        %v3122 = vpop.f32.mrf.mxu0
        %v3123 = vadd.f32 %v3074, %v3122
        %v3124 = vpop.f32.mrf.mxu0
        %v3125 = vadd.f32 %v3076, %v3124
        %3126 = vmatmul.bf16.gmra.mxu0 %v2635
        %v3127 = vpop.f32.mrf.mxu0
        %v3128 = vadd.f32 %v3079, %v3127
        %v3129 = vpop.f32.mrf.mxu0
        %v3130 = vadd.f32 %v3081, %v3129
        %3131 = vmatmul.bf16.gmra.mxu0 %v2639
        %v3132 = vpop.f32.mrf.mxu0
        %v3133 = vadd.f32 %v3084, %v3132
        %v3134 = vpop.f32.mrf.mxu0
        %v3135 = vadd.f32 %v3086, %v3134
        %3136 = vmatmul.bf16.gmra.mxu0 %v2643
        %v3137 = vpop.f32.mrf.mxu0
        %v3138 = vadd.f32 %v3089, %v3137
        %v3139 = vpop.f32.mrf.mxu0
        %v3140 = vadd.f32 %v3091, %v3139
        %3141 = vmatmul.bf16.gmra.mxu0 %v2647
        %v3142 = vpop.f32.mrf.mxu0
        %v3143 = vadd.f32 %v3094, %v3142
        %v3144 = vpop.f32.mrf.mxu0
        %v3145 = vadd.f32 %v3096, %v3144
        %3146 = vmatmul.bf16.gmra.mxu0 %v2651
        %v3147 = vpop.f32.mrf.mxu0
        %v3148 = vadd.f32 %v3099, %v3147
        %v3149 = vpop.f32.mrf.mxu0
        %v3150 = vadd.f32 %v3101, %v3149
        %3151 = vdwg.mxu0
        %3152 = vmatpush.bf16.msra.mxu0 %v2939
        %3153 = vmatpush.bf16.msra.mxu0 %v2937
        %3154 = vmatpush.bf16.msra.mxu0 %v2935
        %3155 = vmatpush.bf16.msra.mxu0 %v2933
        %3156 = vmatpush.bf16.msra.mxu0 %v2931
        %3157 = vmatpush.bf16.msra.mxu0 %v2929
        %3158 = vmatpush.bf16.msra.mxu0 %v2927
        %3159 = vmatpush.bf16.msra.mxu0 %v2925
        %3160 = vmatmul.bf16.gmra.mxu0 %v2624
        %v3161 = vpop.f32.mrf.mxu0
        %v3162 = vadd.f32 %v3113, %v3161
        %v3163 = vpop.f32.mrf.mxu0
        %v3164 = vadd.f32 %v3115, %v3163
        %3165 = vmatmul.bf16.gmra.mxu0 %v2628
        %v3166 = vpop.f32.mrf.mxu0
        %v3167 = vadd.f32 %v3118, %v3166
        %v3168 = vpop.f32.mrf.mxu0
        %v3169 = vadd.f32 %v3120, %v3168
        %3170 = vmatmul.bf16.gmra.mxu0 %v2632
        %v3171 = vpop.f32.mrf.mxu0
        %v3172 = vadd.f32 %v3123, %v3171
        %v3173 = vpop.f32.mrf.mxu0
        %v3174 = vadd.f32 %v3125, %v3173
        %3175 = vmatmul.bf16.gmra.mxu0 %v2636
        %v3176 = vpop.f32.mrf.mxu0
        %v3177 = vadd.f32 %v3128, %v3176
        %v3178 = vpop.f32.mrf.mxu0
        %v3179 = vadd.f32 %v3130, %v3178
        %3180 = vmatmul.bf16.gmra.mxu0 %v2640
        %v3181 = vpop.f32.mrf.mxu0
        %v3182 = vadd.f32 %v3133, %v3181
        %v3183 = vpop.f32.mrf.mxu0
        %v3184 = vadd.f32 %v3135, %v3183
        %3185 = vmatmul.bf16.gmra.mxu0 %v2644
        %v3186 = vpop.f32.mrf.mxu0
        %v3187 = vadd.f32 %v3138, %v3186
        %v3188 = vpop.f32.mrf.mxu0
        %v3189 = vadd.f32 %v3140, %v3188
        %3190 = vmatmul.bf16.gmra.mxu0 %v2648
        %v3191 = vpop.f32.mrf.mxu0
        %v3192 = vadd.f32 %v3143, %v3191
        %v3193 = vpop.f32.mrf.mxu0
        %v3194 = vadd.f32 %v3145, %v3193
        %3195 = vmatmul.bf16.gmra.mxu0 %v2652
        %v3196 = vpop.f32.mrf.mxu0
        %v3197 = vadd.f32 %v3148, %v3196
        %v3198 = vpop.f32.mrf.mxu0
        %v3199 = vadd.f32 %v3150, %v3198
        %3200 = vdwg.mxu0
        %3201 = vmatpush.bf16.msra.mxu0 %v2892
        %3202 = vmatpush.bf16.msra.mxu0 %v2890
        %3203 = vmatpush.bf16.msra.mxu0 %v2888
        %3204 = vmatpush.bf16.msra.mxu0 %v2886
        %3205 = vmatpush.bf16.msra.mxu0 %v2884
        %3206 = vmatpush.bf16.msra.mxu0 %v2882
        %3207 = vmatpush.bf16.msra.mxu0 %v2880
        %3208 = vmatpush.bf16.msra.mxu0 %v2878
        %3209 = vmatmul.bf16.gmra.mxu0 %v2621
        %v3210 = vpop.f32.mrf.mxu0
        %v3211 = vadd.f32 %v2522, %v3210
        %v3212 = vpop.f32.mrf.mxu0
        %v3213 = vadd.f32 %v2522, %v3212
        %3214 = vmatmul.bf16.gmra.mxu0 %v2625
        %v3215 = vpop.f32.mrf.mxu0
        %v3216 = vadd.f32 %v2522, %v3215
        %v3217 = vpop.f32.mrf.mxu0
        %v3218 = vadd.f32 %v2522, %v3217
        %3219 = vmatmul.bf16.gmra.mxu0 %v2629
        %v3220 = vpop.f32.mrf.mxu0
        %v3221 = vadd.f32 %v2522, %v3220
        %v3222 = vpop.f32.mrf.mxu0
        %v3223 = vadd.f32 %v2522, %v3222
        %3224 = vmatmul.bf16.gmra.mxu0 %v2633
        %v3225 = vpop.f32.mrf.mxu0
        %v3226 = vadd.f32 %v2522, %v3225
        %v3227 = vpop.f32.mrf.mxu0
        %v3228 = vadd.f32 %v2522, %v3227
        %3229 = vmatmul.bf16.gmra.mxu0 %v2637
        %v3230 = vpop.f32.mrf.mxu0
        %v3231 = vadd.f32 %v2522, %v3230
        %v3232 = vpop.f32.mrf.mxu0
        %v3233 = vadd.f32 %v2522, %v3232
        %3234 = vmatmul.bf16.gmra.mxu0 %v2641
        %v3235 = vpop.f32.mrf.mxu0
        %v3236 = vadd.f32 %v2522, %v3235
        %v3237 = vpop.f32.mrf.mxu0
        %v3238 = vadd.f32 %v2522, %v3237
        %3239 = vmatmul.bf16.gmra.mxu0 %v2645
        %v3240 = vpop.f32.mrf.mxu0
        %v3241 = vadd.f32 %v2522, %v3240
        %v3242 = vpop.f32.mrf.mxu0
        %v3243 = vadd.f32 %v2522, %v3242
        %3244 = vmatmul.bf16.gmra.mxu0 %v2649
        %v3245 = vpop.f32.mrf.mxu0
        %v3246 = vadd.f32 %v2522, %v3245
        %v3247 = vpop.f32.mrf.mxu0
        %v3248 = vadd.f32 %v2522, %v3247
        %3249 = vdwg.mxu0
        %3250 = vmatpush.bf16.msra.mxu0 %v2908
        %3251 = vmatpush.bf16.msra.mxu0 %v2906
        %3252 = vmatpush.bf16.msra.mxu0 %v2904
        %3253 = vmatpush.bf16.msra.mxu0 %v2902
        %3254 = vmatpush.bf16.msra.mxu0 %v2900
        %3255 = vmatpush.bf16.msra.mxu0 %v2898
        %3256 = vmatpush.bf16.msra.mxu0 %v2896
        %3257 = vmatpush.bf16.msra.mxu0 %v2894
        %3258 = vmatmul.bf16.gmra.mxu0 %v2622
        %v3259 = vpop.f32.mrf.mxu0
        %v3260 = vadd.f32 %v3211, %v3259
        %v3261 = vpop.f32.mrf.mxu0
        %v3262 = vadd.f32 %v3213, %v3261
        %3263 = vmatmul.bf16.gmra.mxu0 %v2626
        %v3264 = vpop.f32.mrf.mxu0
        %v3265 = vadd.f32 %v3216, %v3264
        %v3266 = vpop.f32.mrf.mxu0
        %v3267 = vadd.f32 %v3218, %v3266
        %3268 = vmatmul.bf16.gmra.mxu0 %v2630
        %v3269 = vpop.f32.mrf.mxu0
        %v3270 = vadd.f32 %v3221, %v3269
        %v3271 = vpop.f32.mrf.mxu0
        %v3272 = vadd.f32 %v3223, %v3271
        %3273 = vmatmul.bf16.gmra.mxu0 %v2634
        %v3274 = vpop.f32.mrf.mxu0
        %v3275 = vadd.f32 %v3226, %v3274
        %v3276 = vpop.f32.mrf.mxu0
        %v3277 = vadd.f32 %v3228, %v3276
        %3278 = vmatmul.bf16.gmra.mxu0 %v2638
        %v3279 = vpop.f32.mrf.mxu0
        %v3280 = vadd.f32 %v3231, %v3279
        %v3281 = vpop.f32.mrf.mxu0
        %v3282 = vadd.f32 %v3233, %v3281
        %3283 = vmatmul.bf16.gmra.mxu0 %v2642
        %v3284 = vpop.f32.mrf.mxu0
        %v3285 = vadd.f32 %v3236, %v3284
        %v3286 = vpop.f32.mrf.mxu0
        %v3287 = vadd.f32 %v3238, %v3286
        %3288 = vmatmul.bf16.gmra.mxu0 %v2646
        %v3289 = vpop.f32.mrf.mxu0
        %v3290 = vadd.f32 %v3241, %v3289
        %v3291 = vpop.f32.mrf.mxu0
        %v3292 = vadd.f32 %v3243, %v3291
        %3293 = vmatmul.bf16.gmra.mxu0 %v2650
        %v3294 = vpop.f32.mrf.mxu0
        %v3295 = vadd.f32 %v3246, %v3294
        %v3296 = vpop.f32.mrf.mxu0
        %v3297 = vadd.f32 %v3248, %v3296
        %3298 = vdwg.mxu0
        %3299 = vmatpush.bf16.msra.mxu0 %v2924
        %3300 = vmatpush.bf16.msra.mxu0 %v2922
        %3301 = vmatpush.bf16.msra.mxu0 %v2920
        %3302 = vmatpush.bf16.msra.mxu0 %v2918
        %3303 = vmatpush.bf16.msra.mxu0 %v2916
        %3304 = vmatpush.bf16.msra.mxu0 %v2914
        %3305 = vmatpush.bf16.msra.mxu0 %v2912
        %3306 = vmatpush.bf16.msra.mxu0 %v2910
        %3307 = vmatmul.bf16.gmra.mxu0 %v2623
        %v3308 = vpop.f32.mrf.mxu0
        %v3309 = vadd.f32 %v3260, %v3308
        %v3310 = vpop.f32.mrf.mxu0
        %v3311 = vadd.f32 %v3262, %v3310
        %3312 = vmatmul.bf16.gmra.mxu0 %v2627
        %v3313 = vpop.f32.mrf.mxu0
        %v3314 = vadd.f32 %v3265, %v3313
        %v3315 = vpop.f32.mrf.mxu0
        %v3316 = vadd.f32 %v3267, %v3315
        %3317 = vmatmul.bf16.gmra.mxu0 %v2631
        %v3318 = vpop.f32.mrf.mxu0
        %v3319 = vadd.f32 %v3270, %v3318
        %v3320 = vpop.f32.mrf.mxu0
        %v3321 = vadd.f32 %v3272, %v3320
        %3322 = vmatmul.bf16.gmra.mxu0 %v2635
        %v3323 = vpop.f32.mrf.mxu0
        %v3324 = vadd.f32 %v3275, %v3323
        %v3325 = vpop.f32.mrf.mxu0
        %v3326 = vadd.f32 %v3277, %v3325
        %3327 = vmatmul.bf16.gmra.mxu0 %v2639
        %v3328 = vpop.f32.mrf.mxu0
        %v3329 = vadd.f32 %v3280, %v3328
        %v3330 = vpop.f32.mrf.mxu0
        %v3331 = vadd.f32 %v3282, %v3330
        %3332 = vmatmul.bf16.gmra.mxu0 %v2643
        %v3333 = vpop.f32.mrf.mxu0
        %v3334 = vadd.f32 %v3285, %v3333
        %v3335 = vpop.f32.mrf.mxu0
        %v3336 = vadd.f32 %v3287, %v3335
        %3337 = vmatmul.bf16.gmra.mxu0 %v2647
        %v3338 = vpop.f32.mrf.mxu0
        %v3339 = vadd.f32 %v3290, %v3338
        %v3340 = vpop.f32.mrf.mxu0
        %v3341 = vadd.f32 %v3292, %v3340
        %3342 = vmatmul.bf16.gmra.mxu0 %v2651
        %v3343 = vpop.f32.mrf.mxu0
        %v3344 = vadd.f32 %v3295, %v3343
        %v3345 = vpop.f32.mrf.mxu0
        %v3346 = vadd.f32 %v3297, %v3345
        %3347 = vdwg.mxu0
        %3348 = vmatpush.bf16.msra.mxu0 %v2940
        %3349 = vmatpush.bf16.msra.mxu0 %v2938
        %3350 = vmatpush.bf16.msra.mxu0 %v2936
        %3351 = vmatpush.bf16.msra.mxu0 %v2934
        %3352 = vmatpush.bf16.msra.mxu0 %v2932
        %3353 = vmatpush.bf16.msra.mxu0 %v2930
        %3354 = vmatpush.bf16.msra.mxu0 %v2928
        %3355 = vmatpush.bf16.msra.mxu0 %v2926
        %3356 = vmatmul.bf16.gmra.mxu0 %v2624
        %v3357 = vpop.f32.mrf.mxu0
        %v3358 = vadd.f32 %v3309, %v3357
        %v3359 = vpop.f32.mrf.mxu0
        %v3360 = vadd.f32 %v3311, %v3359
        %3361 = vmatmul.bf16.gmra.mxu0 %v2628
        %v3362 = vpop.f32.mrf.mxu0
        %v3363 = vadd.f32 %v3314, %v3362
        %v3364 = vpop.f32.mrf.mxu0
        %v3365 = vadd.f32 %v3316, %v3364
        %3366 = vmatmul.bf16.gmra.mxu0 %v2632
        %v3367 = vpop.f32.mrf.mxu0
        %v3368 = vadd.f32 %v3319, %v3367
        %v3369 = vpop.f32.mrf.mxu0
        %v3370 = vadd.f32 %v3321, %v3369
        %3371 = vmatmul.bf16.gmra.mxu0 %v2636
        %v3372 = vpop.f32.mrf.mxu0
        %v3373 = vadd.f32 %v3324, %v3372
        %v3374 = vpop.f32.mrf.mxu0
        %v3375 = vadd.f32 %v3326, %v3374
        %3376 = vmatmul.bf16.gmra.mxu0 %v2640
        %v3377 = vpop.f32.mrf.mxu0
        %v3378 = vadd.f32 %v3329, %v3377
        %v3379 = vpop.f32.mrf.mxu0
        %v3380 = vadd.f32 %v3331, %v3379
        %3381 = vmatmul.bf16.gmra.mxu0 %v2644
        %v3382 = vpop.f32.mrf.mxu0
        %v3383 = vadd.f32 %v3334, %v3382
        %v3384 = vpop.f32.mrf.mxu0
        %v3385 = vadd.f32 %v3336, %v3384
        %3386 = vmatmul.bf16.gmra.mxu0 %v2648
        %v3387 = vpop.f32.mrf.mxu0
        %v3388 = vadd.f32 %v3339, %v3387
        %v3389 = vpop.f32.mrf.mxu0
        %v3390 = vadd.f32 %v3341, %v3389
        %3391 = vmatmul.bf16.gmra.mxu0 %v2652
        %v3392 = vpop.f32.mrf.mxu0
        %v3393 = vadd.f32 %v3344, %v3392
        %v3394 = vpop.f32.mrf.mxu0
        %v3395 = vadd.f32 %v3346, %v3394
        %3396 = vdwg.mxu0
        %v3397 = vtanh.pop %v3162
        %v3398 = vtanh.pop %v3358
        %v3399 = vtanh.pop %v3164
        %v3400 = vtanh.pop %v3360
        %v3401 = vtanh.pop %v3167
        %v3402 = vtanh.pop %v3363
        %v3403 = vtanh.pop %v3169
        %v3404 = vtanh.pop %v3365
        %v3405 = vtanh.pop %v3172
        %v3406 = vtanh.pop %v3368
        %v3407 = vtanh.pop %v3174
        %v3408 = vtanh.pop %v3370
        %v3409 = vtanh.pop %v3177
        %v3410 = vtanh.pop %v3373
        %v3411 = vtanh.pop %v3179
        %v3412 = vtanh.pop %v3375
        %v3413 = vtanh.pop %v3182
        %v3414 = vtanh.pop %v3378
        %v3415 = vtanh.pop %v3184
        %v3416 = vtanh.pop %v3380
        %v3417 = vtanh.pop %v3187
        %v3418 = vtanh.pop %v3383
        %v3419 = vtanh.pop %v3189
        %v3420 = vtanh.pop %v3385
        %v3421 = vtanh.pop %v3192
        %v3422 = vtanh.pop %v3388
        %v3423 = vtanh.pop %v3194
        %v3424 = vtanh.pop %v3390
        %v3425 = vtanh.pop %v3197
        %v3426 = vtanh.pop %v3393
        %v3427 = vtanh.pop %v3199
        %v3428 = vtanh.pop %v3395
        %v3429 = vpack.c.bf16 %v3399, %v3397
        %v3430 = vpack.c.bf16 %v3400, %v3398
        %v3431 = vpack.c.bf16 %v3403, %v3401
        %v3432 = vpack.c.bf16 %v3404, %v3402
        %v3433 = vpack.c.bf16 %v3407, %v3405
        %v3434 = vpack.c.bf16 %v3408, %v3406
        %v3435 = vpack.c.bf16 %v3411, %v3409
        %v3436 = vpack.c.bf16 %v3412, %v3410
        %v3437 = vpack.c.bf16 %v3415, %v3413
        %v3438 = vpack.c.bf16 %v3416, %v3414
        %v3439 = vpack.c.bf16 %v3419, %v3417
        %v3440 = vpack.c.bf16 %v3420, %v3418
        %v3441 = vpack.c.bf16 %v3423, %v3421
        %v3442 = vpack.c.bf16 %v3424, %v3422
        %v3443 = vpack.c.bf16 %v3427, %v3425
        %v3444 = vpack.c.bf16 %v3428, %v3426
        %v3445 = vld [vmem:[%s9] sm:$0xf]
        %v3446 = vld [vmem:[%s9 + $0x4] sm:$0xf]
        %v3447 = vld [vmem:[%s9 + $0x8] sm:$0xf]
        %v3448 = vld [vmem:[%s9 + $0xc] sm:$0xf]
        %v3449 = vld [vmem:[%s9 + $0x10] sm:$0xf]
        %v3450 = vld [vmem:[%s9 + $0x14] sm:$0xf]
        %v3451 = vld [vmem:[%s9 + $0x18] sm:$0xf]
        %v3452 = vld [vmem:[%s9 + $0x1c] sm:$0xf]
        %v3453 = vld [vmem:[%s9 + $0x20] sm:$0xf]
        %v3454 = vld [vmem:[%s9 + $0x24] sm:$0xf]
        %v3455 = vld [vmem:[%s9 + $0x28] sm:$0xf]
        %v3456 = vld [vmem:[%s9 + $0x2c] sm:$0xf]
        %v3457 = vld [vmem:[%s9 + $0x30] sm:$0xf]
        %v3458 = vld [vmem:[%s9 + $0x34] sm:$0xf]
        %v3459 = vld [vmem:[%s9 + $0x38] sm:$0xf]
        %v3460 = vld [vmem:[%s9 + $0x3c] sm:$0xf]
        %v3461 = vld [vmem:[%s9 + $0x40] sm:$0xf]
        %v3462 = vld [vmem:[%s9 + $0x44] sm:$0xf]
        %v3463 = vld [vmem:[%s9 + $0x48] sm:$0xf]
        %v3464 = vld [vmem:[%s9 + $0x4c] sm:$0xf]
        %v3465 = vld [vmem:[%s9 + $0x50] sm:$0xf]
        %v3466 = vld [vmem:[%s9 + $0x54] sm:$0xf]
        %v3467 = vld [vmem:[%s9 + $0x58] sm:$0xf]
        %v3468 = vld [vmem:[%s9 + $0x5c] sm:$0xf]
        %v3469 = vld [vmem:[%s9 + $0x60] sm:$0xf]
        %v3470 = vld [vmem:[%s9 + $0x64] sm:$0xf]
        %v3471 = vld [vmem:[%s9 + $0x68] sm:$0xf]
        %v3472 = vld [vmem:[%s9 + $0x6c] sm:$0xf]
        %v3473 = vld [vmem:[%s9 + $0x70] sm:$0xf]
        %v3474 = vld [vmem:[%s9 + $0x74] sm:$0xf]
        %v3475 = vld [vmem:[%s9 + $0x78] sm:$0xf]
        %v3476 = vld [vmem:[%s9 + $0x7c] sm:$0xf]
        %v3477 = vld [vmem:[%s10] sm:$0x1]
        %v3479 = vperm.slane %v3477, 0
        %v3513 = vunpack.c.l.b16 %v3445
        %v3514 = vunpack.c.l.b16 %v3446
        %v3515 = vunpack.c.l.b16 %v3447
        %v3516 = vunpack.c.l.b16 %v3448
        %v3517 = vunpack.c.l.b16 %v3449
        %v3518 = vunpack.c.l.b16 %v3450
        %v3519 = vunpack.c.l.b16 %v3451
        %v3520 = vunpack.c.l.b16 %v3452
        %v3521 = vunpack.c.l.b16 %v3453
        %v3522 = vunpack.c.l.b16 %v3454
        %v3523 = vunpack.c.l.b16 %v3455
        %v3524 = vunpack.c.l.b16 %v3456
        %v3525 = vunpack.c.l.b16 %v3457
        %v3526 = vunpack.c.l.b16 %v3458
        %v3527 = vunpack.c.l.b16 %v3459
        %v3528 = vunpack.c.l.b16 %v3460
        %v3529 = vunpack.c.l.b16 %v3461
        %v3530 = vunpack.c.l.b16 %v3462
        %v3531 = vunpack.c.l.b16 %v3463
        %v3532 = vunpack.c.l.b16 %v3464
        %v3533 = vunpack.c.l.b16 %v3465
        %v3534 = vunpack.c.l.b16 %v3466
        %v3535 = vunpack.c.l.b16 %v3467
        %v3536 = vunpack.c.l.b16 %v3468
        %v3537 = vunpack.c.l.b16 %v3469
        %v3538 = vunpack.c.l.b16 %v3470
        %v3539 = vunpack.c.l.b16 %v3471
        %v3540 = vunpack.c.l.b16 %v3472
        %v3541 = vunpack.c.l.b16 %v3473
        %v3542 = vunpack.c.l.b16 %v3474
        %v3543 = vunpack.c.l.b16 %v3475
        %v3544 = vunpack.c.l.b16 %v3476
        %v3545 = vpack.c.b16 %v3514, %v3513
        %v3546 = vpack.c.b16 %v3516, %v3515
        %v3547 = vpack.c.b16 %v3518, %v3517
        %v3548 = vpack.c.b16 %v3520, %v3519
        %v3549 = vpack.c.b16 %v3522, %v3521
        %v3550 = vpack.c.b16 %v3524, %v3523
        %v3551 = vpack.c.b16 %v3526, %v3525
        %v3552 = vpack.c.b16 %v3528, %v3527
        %v3553 = vpack.c.b16 %v3530, %v3529
        %v3554 = vpack.c.b16 %v3532, %v3531
        %v3555 = vpack.c.b16 %v3534, %v3533
        %v3556 = vpack.c.b16 %v3536, %v3535
        %v3557 = vpack.c.b16 %v3538, %v3537
        %v3558 = vpack.c.b16 %v3540, %v3539
        %v3559 = vpack.c.b16 %v3542, %v3541
        %v3560 = vpack.c.b16 %v3544, %v3543
        %3577 = vmatpush.bf16.msra.mxu0 %v3552
        %3578 = vmatpush.bf16.msra.mxu0 %v3551
        %3579 = vmatpush.bf16.msra.mxu0 %v3550
        %3580 = vmatpush.bf16.msra.mxu0 %v3549
        %3581 = vmatpush.bf16.msra.mxu0 %v3548
        %3582 = vmatpush.bf16.msra.mxu0 %v3547
        %3583 = vmatpush.bf16.msra.mxu0 %v3546
        %3584 = vmatpush.bf16.msra.mxu0 %v3545
        %3585 = vmatmul.bf16.gmra.mxu0 %v3429
        %v3586 = vpop.f32.mrf.mxu0
        %v3587 = vadd.f32 %v3479, %v3586
        %v3588 = vpop.f32.mrf.mxu0
        %v3589 = vadd.f32 %v3479, %v3588
        %3590 = vmatmul.bf16.gmra.mxu0 %v3431
        %v3591 = vpop.f32.mrf.mxu0
        %v3592 = vadd.f32 %v3479, %v3591
        %v3593 = vpop.f32.mrf.mxu0
        %v3594 = vadd.f32 %v3479, %v3593
        %3595 = vmatmul.bf16.gmra.mxu0 %v3433
        %v3596 = vpop.f32.mrf.mxu0
        %v3597 = vadd.f32 %v3479, %v3596
        %v3598 = vpop.f32.mrf.mxu0
        %v3599 = vadd.f32 %v3479, %v3598
        %3600 = vmatmul.bf16.gmra.mxu0 %v3435
        %v3601 = vpop.f32.mrf.mxu0
        %v3602 = vadd.f32 %v3479, %v3601
        %v3603 = vpop.f32.mrf.mxu0
        %v3604 = vadd.f32 %v3479, %v3603
        %3605 = vmatmul.bf16.gmra.mxu0 %v3437
        %v3606 = vpop.f32.mrf.mxu0
        %v3607 = vadd.f32 %v3479, %v3606
        %v3608 = vpop.f32.mrf.mxu0
        %v3609 = vadd.f32 %v3479, %v3608
        %3610 = vmatmul.bf16.gmra.mxu0 %v3439
        %v3611 = vpop.f32.mrf.mxu0
        %v3612 = vadd.f32 %v3479, %v3611
        %v3613 = vpop.f32.mrf.mxu0
        %v3614 = vadd.f32 %v3479, %v3613
        %3615 = vmatmul.bf16.gmra.mxu0 %v3441
        %v3616 = vpop.f32.mrf.mxu0
        %v3617 = vadd.f32 %v3479, %v3616
        %v3618 = vpop.f32.mrf.mxu0
        %v3619 = vadd.f32 %v3479, %v3618
        %3620 = vmatmul.bf16.gmra.mxu0 %v3443
        %v3621 = vpop.f32.mrf.mxu0
        %v3622 = vadd.f32 %v3479, %v3621
        %v3623 = vpop.f32.mrf.mxu0
        %v3624 = vadd.f32 %v3479, %v3623
        %3625 = vdwg.mxu0
        %3626 = vmatpush.bf16.msra.mxu0 %v3560
        %3627 = vmatpush.bf16.msra.mxu0 %v3559
        %3628 = vmatpush.bf16.msra.mxu0 %v3558
        %3629 = vmatpush.bf16.msra.mxu0 %v3557
        %3630 = vmatpush.bf16.msra.mxu0 %v3556
        %3631 = vmatpush.bf16.msra.mxu0 %v3555
        %3632 = vmatpush.bf16.msra.mxu0 %v3554
        %3633 = vmatpush.bf16.msra.mxu0 %v3553
        %3634 = vmatmul.bf16.gmra.mxu0 %v3430
        %v3635 = vpop.f32.mrf.mxu0
        %v3636 = vadd.f32 %v3587, %v3635
        %v3637 = vpop.f32.mrf.mxu0
        %v3638 = vadd.f32 %v3589, %v3637
        %3639 = vmatmul.bf16.gmra.mxu0 %v3432
        %v3640 = vpop.f32.mrf.mxu0
        %v3641 = vadd.f32 %v3592, %v3640
        %v3642 = vpop.f32.mrf.mxu0
        %v3643 = vadd.f32 %v3594, %v3642
        %3644 = vmatmul.bf16.gmra.mxu0 %v3434
        %v3645 = vpop.f32.mrf.mxu0
        %v3646 = vadd.f32 %v3597, %v3645
        %v3647 = vpop.f32.mrf.mxu0
        %v3648 = vadd.f32 %v3599, %v3647
        %3649 = vmatmul.bf16.gmra.mxu0 %v3436
        %v3650 = vpop.f32.mrf.mxu0
        %v3651 = vadd.f32 %v3602, %v3650
        %v3652 = vpop.f32.mrf.mxu0
        %v3653 = vadd.f32 %v3604, %v3652
        %3654 = vmatmul.bf16.gmra.mxu0 %v3438
        %v3655 = vpop.f32.mrf.mxu0
        %v3656 = vadd.f32 %v3607, %v3655
        %v3657 = vpop.f32.mrf.mxu0
        %v3658 = vadd.f32 %v3609, %v3657
        %3659 = vmatmul.bf16.gmra.mxu0 %v3440
        %v3660 = vpop.f32.mrf.mxu0
        %v3661 = vadd.f32 %v3612, %v3660
        %v3662 = vpop.f32.mrf.mxu0
        %v3663 = vadd.f32 %v3614, %v3662
        %3664 = vmatmul.bf16.gmra.mxu0 %v3442
        %v3665 = vpop.f32.mrf.mxu0
        %v3666 = vadd.f32 %v3617, %v3665
        %v3667 = vpop.f32.mrf.mxu0
        %v3668 = vadd.f32 %v3619, %v3667
        %3669 = vmatmul.bf16.gmra.mxu0 %v3444
        %v3670 = vpop.f32.mrf.mxu0
        %v3671 = vadd.f32 %v3622, %v3670
        %v3672 = vpop.f32.mrf.mxu0
        %v3673 = vadd.f32 %v3624, %v3672
        %3674 = vdwg.mxu0
        %v3675 = vtanh.pop %v3636
        %v3676 = vtanh.pop %v3638
        %v3677 = vtanh.pop %v3641
        %v3678 = vtanh.pop %v3643
        %v3679 = vtanh.pop %v3646
        %v3680 = vtanh.pop %v3648
        %v3681 = vtanh.pop %v3651
        %v3682 = vtanh.pop %v3653
        %v3683 = vtanh.pop %v3656
        %v3684 = vtanh.pop %v3658
        %v3685 = vtanh.pop %v3661
        %v3686 = vtanh.pop %v3663
        %v3687 = vtanh.pop %v3666
        %v3688 = vtanh.pop %v3668
        %v3689 = vtanh.pop %v3671
        %v3690 = vtanh.pop %v3673
        %v3691 = vpack.c.bf16 %v3676, %v3675
        %v3692 = vpack.c.bf16 %v3678, %v3677
        %v3693 = vpack.c.bf16 %v3680, %v3679
        %v3694 = vpack.c.bf16 %v3682, %v3681
        %v3695 = vpack.c.bf16 %v3684, %v3683
        %v3696 = vpack.c.bf16 %v3686, %v3685
        %v3697 = vpack.c.bf16 %v3688, %v3687
        %v3698 = vpack.c.bf16 %v3690, %v3689
        %v3699 = vld [vmem:[#allocation7] sm:$0xf]
        %v3700 = vld [vmem:[#allocation7 + $0x4] sm:$0xf]
        %v3701 = vld [vmem:[#allocation7 + $0x8] sm:$0xf]
        %v3702 = vld [vmem:[#allocation7 + $0xc] sm:$0xf]
        %v3703 = vld [vmem:[#allocation7 + $0x10] sm:$0xf]
        %v3704 = vld [vmem:[#allocation7 + $0x14] sm:$0xf]
        %v3705 = vld [vmem:[#allocation7 + $0x18] sm:$0xf]
        %v3706 = vld [vmem:[#allocation7 + $0x1c] sm:$0xf]
        %v3707 = vld [vmem:[#allocation7 + $0x20] sm:$0xf]
        %v3708 = vld [vmem:[#allocation7 + $0x24] sm:$0xf]
        %v3709 = vld [vmem:[#allocation7 + $0x28] sm:$0xf]
        %v3710 = vld [vmem:[#allocation7 + $0x2c] sm:$0xf]
        %v3711 = vld [vmem:[#allocation7 + $0x30] sm:$0xf]
        %v3712 = vld [vmem:[#allocation7 + $0x34] sm:$0xf]
        %v3713 = vld [vmem:[#allocation7 + $0x38] sm:$0xf]
        %v3714 = vld [vmem:[#allocation7 + $0x3c] sm:$0xf]
        %v3715 = vld [vmem:[#allocation7 + $0x40] sm:$0xf]
        %v3716 = vld [vmem:[#allocation7 + $0x44] sm:$0xf]
        %v3717 = vld [vmem:[#allocation7 + $0x48] sm:$0xf]
        %v3718 = vld [vmem:[#allocation7 + $0x4c] sm:$0xf]
        %v3719 = vld [vmem:[#allocation7 + $0x50] sm:$0xf]
        %v3720 = vld [vmem:[#allocation7 + $0x54] sm:$0xf]
        %v3721 = vld [vmem:[#allocation7 + $0x58] sm:$0xf]
        %v3722 = vld [vmem:[#allocation7 + $0x5c] sm:$0xf]
        %v3723 = vld [vmem:[#allocation7 + $0x60] sm:$0xf]
        %v3724 = vld [vmem:[#allocation7 + $0x64] sm:$0xf]
        %v3725 = vld [vmem:[#allocation7 + $0x68] sm:$0xf]
        %v3726 = vld [vmem:[#allocation7 + $0x6c] sm:$0xf]
        %v3727 = vld [vmem:[#allocation7 + $0x70] sm:$0xf]
        %v3728 = vld [vmem:[#allocation7 + $0x74] sm:$0xf]
        %v3729 = vld [vmem:[#allocation7 + $0x78] sm:$0xf]
        %v3730 = vld [vmem:[#allocation7 + $0x7c] sm:$0xf]
        %v3747 = vunpack.c.l.b16 %v3715
        %v3748 = vunpack.c.l.b16 %v3716
        %v3749 = vunpack.c.l.b16 %v3717
        %v3750 = vunpack.c.l.b16 %v3718
        %v3751 = vunpack.c.l.b16 %v3719
        %v3752 = vunpack.c.l.b16 %v3720
        %v3753 = vunpack.c.l.b16 %v3721
        %v3754 = vunpack.c.l.b16 %v3722
        %v3755 = vunpack.c.l.b16 %v3723
        %v3756 = vunpack.c.l.b16 %v3724
        %v3757 = vunpack.c.l.b16 %v3725
        %v3758 = vunpack.c.l.b16 %v3726
        %v3759 = vunpack.c.l.b16 %v3727
        %v3760 = vunpack.c.l.b16 %v3728
        %v3761 = vunpack.c.l.b16 %v3729
        %v3762 = vunpack.c.l.b16 %v3730
        %v3763 = vpack.c.b16 %v3748, %v3747
        %v3764 = vpack.c.b16 %v3750, %v3749
        %v3765 = vpack.c.b16 %v3752, %v3751
        %v3766 = vpack.c.b16 %v3754, %v3753
        %v3767 = vpack.c.b16 %v3756, %v3755
        %v3768 = vpack.c.b16 %v3758, %v3757
        %v3769 = vpack.c.b16 %v3760, %v3759
        %v3770 = vpack.c.b16 %v3762, %v3761
        %3779 = vmatpush.bf16.msra.mxu0 %v3770
        %3780 = vmatpush.bf16.msra.mxu0 %v3769
        %3781 = vmatpush.bf16.msra.mxu0 %v3768
        %3782 = vmatpush.bf16.msra.mxu0 %v3767
        %3783 = vmatpush.bf16.msra.mxu0 %v3766
        %3784 = vmatpush.bf16.msra.mxu0 %v3765
        %3785 = vmatpush.bf16.msra.mxu0 %v3764
        %3786 = vmatpush.bf16.msra.mxu0 %v3763
        %3787 = vmatmul.bf16.gmra.mxu0 %v3691
        %v3788 = vpop.f32.mrf.mxu0
        %v3789 = vadd.f32 0.0, %v3788
        %v3790 = vpop.f32.mrf.mxu0
        %v3791 = vadd.f32 0.0, %v3790
        %3792 = vmatmul.bf16.gmra.mxu0 %v3692
        %v3793 = vpop.f32.mrf.mxu0
        %v3794 = vadd.f32 0.0, %v3793
        %v3795 = vpop.f32.mrf.mxu0
        %v3796 = vadd.f32 0.0, %v3795
        %3797 = vmatmul.bf16.gmra.mxu0 %v3693
        %v3798 = vpop.f32.mrf.mxu0
        %v3799 = vadd.f32 0.0, %v3798
        %v3800 = vpop.f32.mrf.mxu0
        %v3801 = vadd.f32 0.0, %v3800
        %3802 = vmatmul.bf16.gmra.mxu0 %v3694
        %v3803 = vpop.f32.mrf.mxu0
        %v3804 = vadd.f32 0.0, %v3803
        %v3805 = vpop.f32.mrf.mxu0
        %v3806 = vadd.f32 0.0, %v3805
        %3807 = vmatmul.bf16.gmra.mxu0 %v3695
        %v3808 = vpop.f32.mrf.mxu0
        %v3809 = vadd.f32 0.0, %v3808
        %v3810 = vpop.f32.mrf.mxu0
        %v3811 = vadd.f32 0.0, %v3810
        %3812 = vmatmul.bf16.gmra.mxu0 %v3696
        %v3813 = vpop.f32.mrf.mxu0
        %v3814 = vadd.f32 0.0, %v3813
        %v3815 = vpop.f32.mrf.mxu0
        %v3816 = vadd.f32 0.0, %v3815
        %3817 = vmatmul.bf16.gmra.mxu0 %v3697
        %v3818 = vpop.f32.mrf.mxu0
        %v3819 = vadd.f32 0.0, %v3818
        %v3820 = vpop.f32.mrf.mxu0
        %v3821 = vadd.f32 0.0, %v3820
        %3822 = vmatmul.bf16.gmra.mxu0 %v3698
        %v3823 = vpop.f32.mrf.mxu0
        %v3824 = vadd.f32 0.0, %v3823
        %v3825 = vpop.f32.mrf.mxu0
        %v3826 = vadd.f32 0.0, %v3825
        %3827 = vdwg.mxu0
        %v3844 = vunpack.c.l.b16 %v3699
        %v3845 = vunpack.c.l.b16 %v3700
        %v3846 = vunpack.c.l.b16 %v3701
        %v3847 = vunpack.c.l.b16 %v3702
        %v3848 = vunpack.c.l.b16 %v3703
        %v3849 = vunpack.c.l.b16 %v3704
        %v3850 = vunpack.c.l.b16 %v3705
        %v3851 = vunpack.c.l.b16 %v3706
        %v3852 = vunpack.c.l.b16 %v3707
        %v3853 = vunpack.c.l.b16 %v3708
        %v3854 = vunpack.c.l.b16 %v3709
        %v3855 = vunpack.c.l.b16 %v3710
        %v3856 = vunpack.c.l.b16 %v3711
        %v3857 = vunpack.c.l.b16 %v3712
        %v3858 = vunpack.c.l.b16 %v3713
        %v3859 = vunpack.c.l.b16 %v3714
        %v3860 = vpack.c.b16 %v3845, %v3844
        %v3861 = vpack.c.b16 %v3847, %v3846
        %v3862 = vpack.c.b16 %v3849, %v3848
        %v3863 = vpack.c.b16 %v3851, %v3850
        %v3864 = vpack.c.b16 %v3853, %v3852
        %v3865 = vpack.c.b16 %v3855, %v3854
        %v3866 = vpack.c.b16 %v3857, %v3856
        %v3867 = vpack.c.b16 %v3859, %v3858
        %3876 = vmatpush.bf16.msra.mxu0 %v3867
        %3877 = vmatpush.bf16.msra.mxu0 %v3866
        %3878 = vmatpush.bf16.msra.mxu0 %v3865
        %3879 = vmatpush.bf16.msra.mxu0 %v3864
        %3880 = vmatpush.bf16.msra.mxu0 %v3863
        %3881 = vmatpush.bf16.msra.mxu0 %v3862
        %3882 = vmatpush.bf16.msra.mxu0 %v3861
        %3883 = vmatpush.bf16.msra.mxu0 %v3860
        %3884 = vmatmul.bf16.gmra.mxu0 %v2447
        %v3885 = vpop.f32.mrf.mxu0
        %v3886 = vadd.f32 %v3789, %v3885
        %v3887 = vpop.f32.mrf.mxu0
        %v3888 = vadd.f32 %v3791, %v3887
        %3889 = vmatmul.bf16.gmra.mxu0 %v2448
        %v3890 = vpop.f32.mrf.mxu0
        %v3891 = vadd.f32 %v3794, %v3890
        %v3892 = vpop.f32.mrf.mxu0
        %v3893 = vadd.f32 %v3796, %v3892
        %3894 = vmatmul.bf16.gmra.mxu0 %v2449
        %v3895 = vpop.f32.mrf.mxu0
        %v3896 = vadd.f32 %v3799, %v3895
        %v3897 = vpop.f32.mrf.mxu0
        %v3898 = vadd.f32 %v3801, %v3897
        %3899 = vmatmul.bf16.gmra.mxu0 %v2450
        %v3900 = vpop.f32.mrf.mxu0
        %v3901 = vadd.f32 %v3804, %v3900
        %v3902 = vpop.f32.mrf.mxu0
        %v3903 = vadd.f32 %v3806, %v3902
        %3904 = vmatmul.bf16.gmra.mxu0 %v2451
        %v3905 = vpop.f32.mrf.mxu0
        %v3906 = vadd.f32 %v3809, %v3905
        %v3907 = vpop.f32.mrf.mxu0
        %v3908 = vadd.f32 %v3811, %v3907
        %3909 = vmatmul.bf16.gmra.mxu0 %v2452
        %v3910 = vpop.f32.mrf.mxu0
        %v3911 = vadd.f32 %v3814, %v3910
        %v3912 = vpop.f32.mrf.mxu0
        %v3913 = vadd.f32 %v3816, %v3912
        %3914 = vmatmul.bf16.gmra.mxu0 %v2453
        %v3915 = vpop.f32.mrf.mxu0
        %v3916 = vadd.f32 %v3819, %v3915
        %v3917 = vpop.f32.mrf.mxu0
        %v3918 = vadd.f32 %v3821, %v3917
        %3919 = vmatmul.bf16.gmra.mxu0 %v2454
        %v3920 = vpop.f32.mrf.mxu0
        %v3921 = vadd.f32 %v3824, %v3920
        %v3922 = vpop.f32.mrf.mxu0
        %v3923 = vadd.f32 %v3826, %v3922
        %3924 = vdwg.mxu0
        %v3925 = vld [vmem:[%s12] sm:$0x1]
        %v3927 = vperm.slane %v3925, 0
        %v3929 = vadd.f32 %v3886, %v3927
        %v3930 = vadd.f32 %v3888, %v3927
        %v3931 = vadd.f32 %v3891, %v3927
        %v3932 = vadd.f32 %v3893, %v3927
        %v3933 = vadd.f32 %v3896, %v3927
        %v3934 = vadd.f32 %v3898, %v3927
        %v3935 = vadd.f32 %v3901, %v3927
        %v3936 = vadd.f32 %v3903, %v3927
        %v3937 = vadd.f32 %v3906, %v3927
        %v3938 = vadd.f32 %v3908, %v3927
        %v3939 = vadd.f32 %v3911, %v3927
        %v3940 = vadd.f32 %v3913, %v3927
        %v3941 = vadd.f32 %v3916, %v3927
        %v3942 = vadd.f32 %v3918, %v3927
        %v3943 = vadd.f32 %v3921, %v3927
        %v3944 = vadd.f32 %v3923, %v3927
        %v3945 = vlaneseq
        %v3946 = vand.u32 %v3945, 127
        %vm3947 = vcmp.ge.s32.totalorder %v3946, 4
        %vm3948 = vcmp.lt.s32.totalorder %v3946, 8
        %vm3949 = vmand %vm3947, %vm3948
        %v3950 = vmax.f32 %v3929, 0.0
        %v3951 = vmax.f32 %v3930, 0.0
        %v3952 = vmax.f32 %v3931, 0.0
        %v3953 = vmax.f32 %v3932, 0.0
        %v3954 = vmax.f32 %v3933, 0.0
        %v3955 = vmax.f32 %v3934, 0.0
        %v3956 = vmax.f32 %v3935, 0.0
        %v3957 = vmax.f32 %v3936, 0.0
        %v3958 = vmax.f32 %v3937, 0.0
        %v3959 = vmax.f32 %v3938, 0.0
        %v3960 = vmax.f32 %v3939, 0.0
        %v3961 = vmax.f32 %v3940, 0.0
        %v3962 = vmax.f32 %v3941, 0.0
        %v3963 = vmax.f32 %v3942, 0.0
        %v3964 = vmax.f32 %v3943, 0.0
        %v3965 = vmax.f32 %v3944, 0.0
        %vm3966 = vcmp.ne.f32.partialorder %v3929, %v3929
        %vm3967 = vcmp.ne.f32.partialorder %v3930, %v3930
        %vm3968 = vcmp.ne.f32.partialorder %v3931, %v3931
        %vm3969 = vcmp.ne.f32.partialorder %v3932, %v3932
        %vm3970 = vcmp.ne.f32.partialorder %v3933, %v3933
        %vm3971 = vcmp.ne.f32.partialorder %v3934, %v3934
        %vm3972 = vcmp.ne.f32.partialorder %v3935, %v3935
        %vm3973 = vcmp.ne.f32.partialorder %v3936, %v3936
        %vm3974 = vcmp.ne.f32.partialorder %v3937, %v3937
        %vm3975 = vcmp.ne.f32.partialorder %v3938, %v3938
        %vm3976 = vcmp.ne.f32.partialorder %v3939, %v3939
        %vm3977 = vcmp.ne.f32.partialorder %v3940, %v3940
        %vm3978 = vcmp.ne.f32.partialorder %v3941, %v3941
        %vm3979 = vcmp.ne.f32.partialorder %v3942, %v3942
        %vm3980 = vcmp.ne.f32.partialorder %v3943, %v3943
        %vm3981 = vcmp.ne.f32.partialorder %v3944, %v3944
        %v3982 = vadd.f32 %v3929, 0.0
        %v3983 = vadd.f32 %v3930, 0.0
        %v3984 = vadd.f32 %v3931, 0.0
        %v3985 = vadd.f32 %v3932, 0.0
        %v3986 = vadd.f32 %v3933, 0.0
        %v3987 = vadd.f32 %v3934, 0.0
        %v3988 = vadd.f32 %v3935, 0.0
        %v3989 = vadd.f32 %v3936, 0.0
        %v3990 = vadd.f32 %v3937, 0.0
        %v3991 = vadd.f32 %v3938, 0.0
        %v3992 = vadd.f32 %v3939, 0.0
        %v3993 = vadd.f32 %v3940, 0.0
        %v3994 = vadd.f32 %v3941, 0.0
        %v3995 = vadd.f32 %v3942, 0.0
        %v3996 = vadd.f32 %v3943, 0.0
        %v3997 = vadd.f32 %v3944, 0.0
        %v3998 = vand.u32 2147483647, %v3929
        %v3999 = vand.u32 2147483647, %v3930
        %v4000 = vand.u32 2147483647, %v3931
        %v4001 = vand.u32 2147483647, %v3932
        %v4002 = vand.u32 2147483647, %v3933
        %v4003 = vand.u32 2147483647, %v3934
        %v4004 = vand.u32 2147483647, %v3935
        %v4005 = vand.u32 2147483647, %v3936
        %v4006 = vand.u32 2147483647, %v3937
        %v4007 = vand.u32 2147483647, %v3938
        %v4008 = vand.u32 2147483647, %v3939
        %v4009 = vand.u32 2147483647, %v3940
        %v4010 = vand.u32 2147483647, %v3941
        %v4011 = vand.u32 2147483647, %v3942
        %v4012 = vand.u32 2147483647, %v3943
        %v4013 = vand.u32 2147483647, %v3944
        %v4014 = vsub.f32 0.0, %v3998
        %v4015 = vsub.f32 0.0, %v3999
        %v4016 = vsub.f32 0.0, %v4000
        %v4017 = vsub.f32 0.0, %v4001
        %v4018 = vsub.f32 0.0, %v4002
        %v4019 = vsub.f32 0.0, %v4003
        %v4020 = vsub.f32 0.0, %v4004
        %v4021 = vsub.f32 0.0, %v4005
        %v4022 = vsub.f32 0.0, %v4006
        %v4023 = vsub.f32 0.0, %v4007
        %v4024 = vsub.f32 0.0, %v4008
        %v4025 = vsub.f32 0.0, %v4009
        %v4026 = vsub.f32 0.0, %v4010
        %v4027 = vsub.f32 0.0, %v4011
        %v4028 = vsub.f32 0.0, %v4012
        %v4029 = vsub.f32 0.0, %v4013
        %v4030 = vmul.f32 %v4014, 1.442695
        %v4031 = vpow.pop %v4030
        %v4032 = vmul.f32 %v4015, 1.442695
        %v4033 = vpow.pop %v4032
        %v4034 = vmul.f32 %v4016, 1.442695
        %v4035 = vpow.pop %v4034
        %v4036 = vmul.f32 %v4017, 1.442695
        %v4037 = vpow.pop %v4036
        %v4038 = vmul.f32 %v4018, 1.442695
        %v4039 = vpow.pop %v4038
        %v4040 = vmul.f32 %v4019, 1.442695
        %v4041 = vpow.pop %v4040
        %v4042 = vmul.f32 %v4020, 1.442695
        %v4043 = vpow.pop %v4042
        %v4044 = vmul.f32 %v4021, 1.442695
        %v4045 = vpow.pop %v4044
        %v4046 = vmul.f32 %v4022, 1.442695
        %v4047 = vpow.pop %v4046
        %v4048 = vmul.f32 %v4023, 1.442695
        %v4049 = vpow.pop %v4048
        %v4050 = vmul.f32 %v4024, 1.442695
        %v4051 = vpow.pop %v4050
        %v4052 = vmul.f32 %v4025, 1.442695
        %v4053 = vpow.pop %v4052
        %v4054 = vmul.f32 %v4026, 1.442695
        %v4055 = vpow.pop %v4054
        %v4056 = vmul.f32 %v4027, 1.442695
        %v4057 = vpow.pop %v4056
        %v4058 = vmul.f32 %v4028, 1.442695
        %v4059 = vpow.pop %v4058
        %v4060 = vmul.f32 %v4029, 1.442695
        %v4061 = vpow.pop %v4060
        %v4062 = vadd.f32 %v4031, 1.0
        %v4063 = vlog2.pop %v4062
        %v4064 = vmul.f32 %v4063, 0.6931472
        %v4065 = vmul.f32 -0.5, %v4031
        %v4066 = vadd.f32 %v4065, 1.0
        %v4067 = vmul.f32 %v4066, %v4031
        %v4068 = vand.u32 2147483647, %v4031
        %vm4069 = vcmp.lt.f32.partialorder %v4068, 0.0004427343
        %v4070 = vsel %vm4069, %v4067, %v4064
        %v4071 = vadd.f32 %v4033, 1.0
        %v4072 = vlog2.pop %v4071
        %v4073 = vmul.f32 %v4072, 0.6931472
        %v4074 = vmul.f32 -0.5, %v4033
        %v4075 = vadd.f32 %v4074, 1.0
        %v4076 = vmul.f32 %v4075, %v4033
        %v4077 = vand.u32 2147483647, %v4033
        %vm4078 = vcmp.lt.f32.partialorder %v4077, 0.0004427343
        %v4079 = vsel %vm4078, %v4076, %v4073
        %v4080 = vadd.f32 %v4035, 1.0
        %v4081 = vlog2.pop %v4080
        %v4082 = vmul.f32 %v4081, 0.6931472
        %v4083 = vmul.f32 -0.5, %v4035
        %v4084 = vadd.f32 %v4083, 1.0
        %v4085 = vmul.f32 %v4084, %v4035
        %v4086 = vand.u32 2147483647, %v4035
        %vm4087 = vcmp.lt.f32.partialorder %v4086, 0.0004427343
        %v4088 = vsel %vm4087, %v4085, %v4082
        %v4089 = vadd.f32 %v4037, 1.0
        %v4090 = vlog2.pop %v4089
        %v4091 = vmul.f32 %v4090, 0.6931472
        %v4092 = vmul.f32 -0.5, %v4037
        %v4093 = vadd.f32 %v4092, 1.0
        %v4094 = vmul.f32 %v4093, %v4037
        %v4095 = vand.u32 2147483647, %v4037
        %vm4096 = vcmp.lt.f32.partialorder %v4095, 0.0004427343
        %v4097 = vsel %vm4096, %v4094, %v4091
        %v4098 = vadd.f32 %v4039, 1.0
        %v4099 = vlog2.pop %v4098
        %v4100 = vmul.f32 %v4099, 0.6931472
        %v4101 = vmul.f32 -0.5, %v4039
        %v4102 = vadd.f32 %v4101, 1.0
        %v4103 = vmul.f32 %v4102, %v4039
        %v4104 = vand.u32 2147483647, %v4039
        %vm4105 = vcmp.lt.f32.partialorder %v4104, 0.0004427343
        %v4106 = vsel %vm4105, %v4103, %v4100
        %v4107 = vadd.f32 %v4041, 1.0
        %v4108 = vlog2.pop %v4107
        %v4109 = vmul.f32 %v4108, 0.6931472
        %v4110 = vmul.f32 -0.5, %v4041
        %v4111 = vadd.f32 %v4110, 1.0
        %v4112 = vmul.f32 %v4111, %v4041
        %v4113 = vand.u32 2147483647, %v4041
        %vm4114 = vcmp.lt.f32.partialorder %v4113, 0.0004427343
        %v4115 = vsel %vm4114, %v4112, %v4109
        %v4116 = vadd.f32 %v4043, 1.0
        %v4117 = vlog2.pop %v4116
        %v4118 = vmul.f32 %v4117, 0.6931472
        %v4119 = vmul.f32 -0.5, %v4043
        %v4120 = vadd.f32 %v4119, 1.0
        %v4121 = vmul.f32 %v4120, %v4043
        %v4122 = vand.u32 2147483647, %v4043
        %vm4123 = vcmp.lt.f32.partialorder %v4122, 0.0004427343
        %v4124 = vsel %vm4123, %v4121, %v4118
        %v4125 = vadd.f32 %v4045, 1.0
        %v4126 = vlog2.pop %v4125
        %v4127 = vmul.f32 %v4126, 0.6931472
        %v4128 = vmul.f32 -0.5, %v4045
        %v4129 = vadd.f32 %v4128, 1.0
        %v4130 = vmul.f32 %v4129, %v4045
        %v4131 = vand.u32 2147483647, %v4045
        %vm4132 = vcmp.lt.f32.partialorder %v4131, 0.0004427343
        %v4133 = vsel %vm4132, %v4130, %v4127
        %v4134 = vadd.f32 %v4047, 1.0
        %v4135 = vlog2.pop %v4134
        %v4136 = vmul.f32 %v4135, 0.6931472
        %v4137 = vmul.f32 -0.5, %v4047
        %v4138 = vadd.f32 %v4137, 1.0
        %v4139 = vmul.f32 %v4138, %v4047
        %v4140 = vand.u32 2147483647, %v4047
        %vm4141 = vcmp.lt.f32.partialorder %v4140, 0.0004427343
        %v4142 = vsel %vm4141, %v4139, %v4136
        %v4143 = vadd.f32 %v4049, 1.0
        %v4144 = vlog2.pop %v4143
        %v4145 = vmul.f32 %v4144, 0.6931472
        %v4146 = vmul.f32 -0.5, %v4049
        %v4147 = vadd.f32 %v4146, 1.0
        %v4148 = vmul.f32 %v4147, %v4049
        %v4149 = vand.u32 2147483647, %v4049
        %vm4150 = vcmp.lt.f32.partialorder %v4149, 0.0004427343
        %v4151 = vsel %vm4150, %v4148, %v4145
        %v4152 = vadd.f32 %v4051, 1.0
        %v4153 = vlog2.pop %v4152
        %v4154 = vmul.f32 %v4153, 0.6931472
        %v4155 = vmul.f32 -0.5, %v4051
        %v4156 = vadd.f32 %v4155, 1.0
        %v4157 = vmul.f32 %v4156, %v4051
        %v4158 = vand.u32 2147483647, %v4051
        %vm4159 = vcmp.lt.f32.partialorder %v4158, 0.0004427343
        %v4160 = vsel %vm4159, %v4157, %v4154
        %v4161 = vadd.f32 %v4053, 1.0
        %v4162 = vlog2.pop %v4161
        %v4163 = vmul.f32 %v4162, 0.6931472
        %v4164 = vmul.f32 -0.5, %v4053
        %v4165 = vadd.f32 %v4164, 1.0
        %v4166 = vmul.f32 %v4165, %v4053
        %v4167 = vand.u32 2147483647, %v4053
        %vm4168 = vcmp.lt.f32.partialorder %v4167, 0.0004427343
        %v4169 = vsel %vm4168, %v4166, %v4163
        %v4170 = vadd.f32 %v4055, 1.0
        %v4171 = vlog2.pop %v4170
        %v4172 = vmul.f32 %v4171, 0.6931472
        %v4173 = vmul.f32 -0.5, %v4055
        %v4174 = vadd.f32 %v4173, 1.0
        %v4175 = vmul.f32 %v4174, %v4055
        %v4176 = vand.u32 2147483647, %v4055
        %vm4177 = vcmp.lt.f32.partialorder %v4176, 0.0004427343
        %v4178 = vsel %vm4177, %v4175, %v4172
        %v4179 = vadd.f32 %v4057, 1.0
        %v4180 = vlog2.pop %v4179
        %v4181 = vmul.f32 %v4180, 0.6931472
        %v4182 = vmul.f32 -0.5, %v4057
        %v4183 = vadd.f32 %v4182, 1.0
        %v4184 = vmul.f32 %v4183, %v4057
        %v4185 = vand.u32 2147483647, %v4057
        %vm4186 = vcmp.lt.f32.partialorder %v4185, 0.0004427343
        %v4187 = vsel %vm4186, %v4184, %v4181
        %v4188 = vadd.f32 %v4059, 1.0
        %v4189 = vlog2.pop %v4188
        %v4190 = vmul.f32 %v4189, 0.6931472
        %v4191 = vmul.f32 -0.5, %v4059
        %v4192 = vadd.f32 %v4191, 1.0
        %v4193 = vmul.f32 %v4192, %v4059
        %v4194 = vand.u32 2147483647, %v4059
        %vm4195 = vcmp.lt.f32.partialorder %v4194, 0.0004427343
        %v4196 = vsel %vm4195, %v4193, %v4190
        %v4197 = vadd.f32 %v4061, 1.0
        %v4198 = vlog2.pop %v4197
        %v4199 = vmul.f32 %v4198, 0.6931472
        %v4200 = vmul.f32 -0.5, %v4061
        %v4201 = vadd.f32 %v4200, 1.0
        %v4202 = vmul.f32 %v4201, %v4061
        %v4203 = vand.u32 2147483647, %v4061
        %vm4204 = vcmp.lt.f32.partialorder %v4203, 0.0004427343
        %v4205 = vsel %vm4204, %v4202, %v4199
        %v4206 = vadd.f32 %v3950, %v4070
        %v4207 = vadd.f32 %v3951, %v4079
        %v4208 = vadd.f32 %v3952, %v4088
        %v4209 = vadd.f32 %v3953, %v4097
        %v4210 = vadd.f32 %v3954, %v4106
        %v4211 = vadd.f32 %v3955, %v4115
        %v4212 = vadd.f32 %v3956, %v4124
        %v4213 = vadd.f32 %v3957, %v4133
        %v4214 = vadd.f32 %v3958, %v4142
        %v4215 = vadd.f32 %v3959, %v4151
        %v4216 = vadd.f32 %v3960, %v4160
        %v4217 = vadd.f32 %v3961, %v4169
        %v4218 = vadd.f32 %v3962, %v4178
        %v4219 = vadd.f32 %v3963, %v4187
        %v4220 = vadd.f32 %v3964, %v4196
        %v4221 = vadd.f32 %v3965, %v4205
        %v4222 = vsel %vm3966, %v3982, %v4206
        %v4223 = vsel %vm3967, %v3983, %v4207
        %v4224 = vsel %vm3968, %v3984, %v4208
        %v4225 = vsel %vm3969, %v3985, %v4209
        %v4226 = vsel %vm3970, %v3986, %v4210
        %v4227 = vsel %vm3971, %v3987, %v4211
        %v4228 = vsel %vm3972, %v3988, %v4212
        %v4229 = vsel %vm3973, %v3989, %v4213
        %v4230 = vsel %vm3974, %v3990, %v4214
        %v4231 = vsel %vm3975, %v3991, %v4215
        %v4232 = vsel %vm3976, %v3992, %v4216
        %v4233 = vsel %vm3977, %v3993, %v4217
        %v4234 = vsel %vm3978, %v3994, %v4218
        %v4235 = vsel %vm3979, %v3995, %v4219
        %v4236 = vsel %vm3980, %v3996, %v4220
        %v4237 = vsel %vm3981, %v3997, %v4221
        %v4238 = vsel %vm3949, %v4222, %v3929
        %v4239 = vsel %vm3949, %v4223, %v3930
        %v4240 = vsel %vm3949, %v4224, %v3931
        %v4241 = vsel %vm3949, %v4225, %v3932
        %v4242 = vsel %vm3949, %v4226, %v3933
        %v4243 = vsel %vm3949, %v4227, %v3934
        %v4244 = vsel %vm3949, %v4228, %v3935
        %v4245 = vsel %vm3949, %v4229, %v3936
        %v4246 = vsel %vm3949, %v4230, %v3937
        %v4247 = vsel %vm3949, %v4231, %v3938
        %v4248 = vsel %vm3949, %v4232, %v3939
        %v4249 = vsel %vm3949, %v4233, %v3940
        %v4250 = vsel %vm3949, %v4234, %v3941
        %v4251 = vsel %vm3949, %v4235, %v3942
        %v4252 = vsel %vm3949, %v4236, %v3943
        %v4253 = vsel %vm3949, %v4237, %v3944
        %4254 = vst [vmem:[%s509] sm:$0xff] %v4238
        %4255 = vst [vmem:[%s509 + $0x8] sm:$0xff] %v4239
        %4256 = vst [vmem:[%s509 + $0x10] sm:$0xff] %v4240
        %4257 = vst [vmem:[%s509 + $0x18] sm:$0xff] %v4241
        %4258 = vst [vmem:[%s509 + $0x20] sm:$0xff] %v4242
        %4259 = vst [vmem:[%s509 + $0x28] sm:$0xff] %v4243
        %4260 = vst [vmem:[%s509 + $0x30] sm:$0xff] %v4244
        %4261 = vst [vmem:[%s509 + $0x38] sm:$0xff] %v4245
        %4262 = vst [vmem:[%s509 + $0x40] sm:$0xff] %v4246
        %4263 = vst [vmem:[%s509 + $0x48] sm:$0xff] %v4247
        %4264 = vst [vmem:[%s509 + $0x50] sm:$0xff] %v4248
        %4265 = vst [vmem:[%s509 + $0x58] sm:$0xff] %v4249
        %4266 = vst [vmem:[%s509 + $0x60] sm:$0xff] %v4250
        %4267 = vst [vmem:[%s509 + $0x68] sm:$0xff] %v4251
        %4268 = vst [vmem:[%s509 + $0x70] sm:$0xff] %v4252
        %4269 = vst [vmem:[%s509 + $0x78] sm:$0xff] %v4253
        %s4270 = smul.u32 16, %s27
        %p4271 = scmp.lt.s32.totalorder %s4270, 31
        %s4272 = scalar_select %p4271, %s4270, 31
        %s4273 = smul.addr %s4272, 8
        %s4274 = scalar_lea.vmem %s13, %s4273
        // Predicated region
        $region89: #{actor_critic_forward.1} parent=71 // pred_check
          %p4275 = pneg %p323
        $region90: #{actor_critic_forward.1} parent=71 // pred_check_branch
          %4277 = sbr.rel (%p4275) target = $region92
        $region91: #{actor_critic_forward.1} parent=71 // pred_region
          %s4278 = smul.u32 16, %s27
        $region92: #{actor_critic_forward.1} parent=71 // pred_fallthru
          _
      $region72: #{actor_critic_forward.1} parent=5 // pred_fallthru
        _
      %p4279 = scmp.le.s32.totalorder 2, %s22
      // Predicated region
      $region93: #{actor_critic_forward.1} parent=5 // pred_check
        %p4280 = pneg %p4279
      $region94: #{actor_critic_forward.1} parent=5 // pred_check_branch
        %4282 = sbr.rel (%p4280) target = $region96
      $region95: #{actor_critic_forward.1} parent=5 // pred_region
        %s4283 = ssub.s32 %s22, 2
        // Predicated region
        $region97: #{actor_critic_forward.1} parent=95 // pred_check
          %p4284 = pneg %p329
        $region98: #{actor_critic_forward.1} parent=95 // pred_check_branch
          %4286 = sbr.rel (%p4284) target = $region100
        $region99: #{actor_critic_forward.1} parent=95 // pred_region
          %s4287 = smul.u32 16, %s28
          %p4288 = scmp.lt.s32.totalorder %s4287, 31
          %s4289 = scalar_select %p4288, %s4287, 31
          %s4290 = smul.addr %s4289, 8
          %s4291 = scalar_lea.vmem %s13, %s4290
        $region100: #{actor_critic_forward.1} parent=95 // pred_fallthru
          _
      $region96: #{actor_critic_forward.1} parent=5 // pred_fallthru
        _
    $region6: #{actor_critic_forward.1} parent=1 // loop_footer
      %s26 = sadd.s32 1, %s22
    $region7: #{actor_critic_forward.1} parent=1 // loop_footer_branch
      %21 = sbr.rel target = $region3
    $region8: #{actor_critic_forward.1} parent=1 // loop_exit
      _
    %4292 = vsyncpa [#allocation3], 1
    %s4293 = scalar_lea.sflag [#allocation3], 1
    %4294 = vsyncpa %s4293, 1
    %4295 = vsyncpa [#allocation5], 1
    %4296 = vsyncpa [#allocation8], 1

</llo_original>
